<compile_context>
chip_gen: v7x
topology: tpu7x:2x2x1
jax: 0.10.0
libtpu: 0.0.40
codegen_flags: <defaults>
</compile_context>

<pallas_src>
import jax
import jax.numpy as jnp
from jax.experimental import pallas as pl
from jax.experimental.pallas import tpu as pltpu

# ---- module-consistent sizes (kept small, same as the accepted v1) ----------
INPUT_SIZE = 112            # script's global `input_size`
HIDDEN = 128                # d_model (multiple of num_heads=4)
FFN = 4 * HIDDEN            # dim_feedforward = hidden * 4
OUT = HIDDEN // 2           # output_proj width (64)
NUM_LAYERS = 2
LN_EPS = 1e-5               # nn.LayerNorm / TransformerEncoderLayer default
L2_EPS = 1e-12              # F.normalize default eps

IN_PAD = 128                # input features padded 112 -> 128 (lane-dense)
OUT_PAD = 128               # output features padded 64 -> 128 (lane-dense)
TM_MAX = 1024               # max rows per grid step
DOT_DTYPE = jnp.bfloat16    # MXU input dtype; accumulation stays f32

# Row indices inside the packed (NUM_VEC, 128) bias/LayerNorm vector blob.
V_BEFF = 0                  # fused input bias: bin·A0 + battn_0
def V_LAYER(l):             # per-layer: battn (zero for l=0), ln1g, ln1b, b2, ln2g, ln2b
    return 1 + 6 * l
V_BOUT = 1 + 6 * NUM_LAYERS
V_LNG = V_BOUT + 1
V_LNB = V_BOUT + 2
NUM_VEC = V_LNB + 1         # = 16

# Packed square-weight blob (L+1, 128, 128): [Win_eff, A_1..A_{L-1}, Wout_pad]


def _layernorm(h, g, b):
    mu = jnp.mean(h, axis=-1, keepdims=True)
    var = jnp.mean((h - mu) ** 2, axis=-1, keepdims=True)
    return (h - mu) * jax.lax.rsqrt(var + LN_EPS) * g + b


# ---------------------------------------------------------------------------
# Kernel: one grid step processes TM rows end-to-end.
# ---------------------------------------------------------------------------
def encoder_kernel(x_ref, sqw_ref, w1_ref, w2_ref, vec_ref, b1_ref, out_ref):
    # input_proj + layer-0 attention + residual, all folded into ONE matmul:
    #   pre0 = x @ (Win·(I + Wv0·Wo0)) + (bin·(I + Wv0·Wo0) + bv0·Wo0 + bo0)
    pre = jnp.dot(x_ref[...], sqw_ref[0],
                  preferred_element_type=jnp.float32) + vec_ref[V_BEFF]

    for l in range(NUM_LAYERS):
        base = V_LAYER(l)
        if l > 0:
            # attention + residual: pre = h @ (I + Wv·Wo) + (bv·Wo + bo)
            pre = jnp.dot(h.astype(DOT_DTYPE), sqw_ref[l],
                          preferred_element_type=jnp.float32) + vec_ref[base + 0]
        h = _layernorm(pre, vec_ref[base + 1], vec_ref[base + 2])
        # feed-forward: linear1 -> relu -> linear2, residual, LN
        ff = jnp.dot(h.astype(DOT_DTYPE), w1_ref[l],
                     preferred_element_type=jnp.float32) + b1_ref[l]
        ff = jnp.maximum(ff, 0.0)
        ff = jnp.dot(ff.astype(DOT_DTYPE), w2_ref[l],
                     preferred_element_type=jnp.float32) + vec_ref[base + 3]
        h = _layernorm(h + ff, vec_ref[base + 4], vec_ref[base + 5])

    # output_proj into a lane-dense 128-wide block; columns >= OUT are exactly
    # zero because wout/bout were zero-padded on the host.
    y = jnp.dot(h.astype(DOT_DTYPE), sqw_ref[NUM_LAYERS],
                preferred_element_type=jnp.float32) + vec_ref[V_BOUT]

    # Final LayerNorm over the real OUT=64 features.  Pad lanes of y are
    # exactly zero, so plain 128-lane sums are exact; lng/lnb pad lanes are
    # zero so the output pad lanes stay exactly zero — no mask / iota needed.
    inv_o = 1.0 / OUT
    mu = jnp.sum(y, axis=-1, keepdims=True) * inv_o
    ey2 = jnp.sum(y * y, axis=-1, keepdims=True) * inv_o
    var = ey2 - mu * mu
    yn = (y - mu) * jax.lax.rsqrt(var + LN_EPS) * vec_ref[V_LNG] + vec_ref[V_LNB]
    # L2 normalize: x / max(||x||, eps) == x * rsqrt(max(||x||^2, eps^2))
    ss = jnp.sum(yn * yn, axis=-1, keepdims=True)
    out_ref[...] = (yn * jax.lax.rsqrt(jnp.maximum(ss, L2_EPS * L2_EPS))
                    ).astype(out_ref.dtype)


# ---------------------------------------------------------------------------
# Parameters: module-faithful f32 params + host-side prep (fold / pad / pack).
# ---------------------------------------------------------------------------
def make_params(key):
    ks = jax.random.split(key, 18)
    w = lambda k, shape, s: jax.random.normal(k, shape, jnp.float32) * s
    L, H, F, O, I = NUM_LAYERS, HIDDEN, FFN, OUT, INPUT_SIZE
    return {
        "win":  w(ks[0], (I, H), 0.05),    "bin":  w(ks[1], (H,), 0.02),
        "wv":   w(ks[2], (L, H, H), 0.05), "bv":   w(ks[3], (L, H), 0.02),
        "wo":   w(ks[4], (L, H, H), 0.05), "bo":   w(ks[5], (L, H), 0.02),
        "ln1g": 1.0 + w(ks[6], (L, H), 0.02), "ln1b": w(ks[7], (L, H), 0.02),
        "w1":   w(ks[8], (L, H, F), 0.05), "b1":   w(ks[9], (L, F), 0.02),
        "w2":   w(ks[10], (L, F, H), 0.05), "b2":  w(ks[11], (L, H), 0.02),
        "ln2g": 1.0 + w(ks[12], (L, H), 0.02), "ln2b": w(ks[13], (L, H), 0.02),
        "wout": w(ks[14], (H, O), 0.05),   "bout": w(ks[15], (O,), 0.02),
        "lng":  1.0 + w(ks[16], (O,), 0.02), "lnb": w(ks[17], (O,), 0.02),
    }


def prepare_params(p):
    """Fold seq_len==1 attention (+residual +input_proj), pad, pack. All folds
    are done in f32; a single bf16 cast happens at the very end."""
    L, H, O, I = NUM_LAYERS, HIDDEN, OUT, INPUT_SIZE
    eye = jnp.eye(H, dtype=jnp.float32)
    # exact attention folding (seq_len == 1): attn(h) = h @ (Wv·Wo) + (bv·Wo+bo)
    wattn = jnp.einsum("lij,ljk->lik", p["wv"], p["wo"])            # (L,H,H)
    battn = jnp.einsum("li,lik->lk", p["bv"], p["wo"]) + p["bo"]    # (L,H)
    a = wattn + eye[None]          # residual folded: h + attn = h @ A + battn
    # compose input_proj into layer-0 attention
    win_pad = jnp.zeros((IN_PAD, H), jnp.float32).at[:I].set(p["win"])
    win_eff = win_pad @ a[0]                                        # (128,H)
    b_eff = p["bin"] @ a[0] + battn[0]                              # (H,)
    # pad output proj cols 64 -> 128 with zeros (lane-dense output block)
    wout_pad = jnp.zeros((H, OUT_PAD), jnp.float32).at[:, :O].set(p["wout"])
    padv = lambda v: jnp.zeros((OUT_PAD,), jnp.float32).at[:O].set(v)

    sqw = jnp.stack([win_eff] + [a[l] for l in range(1, L)] + [wout_pad])
    rows = [b_eff]
    for l in range(L):
        battn_row = jnp.zeros((H,), jnp.float32) if l == 0 else battn[l]
        rows += [battn_row, p["ln1g"][l], p["ln1b"][l],
                 p["b2"][l], p["ln2g"][l], p["ln2b"][l]]
    rows += [padv(p["bout"]), padv(p["lng"]), padv(p["lnb"])]
    vecs = jnp.stack(rows)                                          # (16, 128)
    assert vecs.shape == (NUM_VEC, HIDDEN)
    return {
        "sqw": sqw.astype(DOT_DTYPE),          # (L+1, 128, 128) bf16
        "w1": p["w1"].astype(DOT_DTYPE),       # (L, 128, 512)   bf16
        "w2": p["w2"].astype(DOT_DTYPE),       # (L, 512, 128)   bf16
        "vecs": vecs,                          # (16, 128)       f32
        "b1": p["b1"],                         # (L, 512)        f32
    }


# ---------------------------------------------------------------------------
# Wrappers
# ---------------------------------------------------------------------------
def _choose_tile(rows):
    """Rows/step: big enough to amortize per-step overhead (cap 1024), small
    enough to always give >= 2 grid steps (v7x: 2 TCs shard the parallel axis).
    Returns Python ints (shapes are static under jit)."""
    tm = ((max(rows, 2) + 1) // 2 + 127) // 128 * 128   # ceil(rows/2) -> x128
    tm = max(128, min(TM_MAX, tm))
    n_pad = max((rows + tm - 1) // tm, 2) * tm
    return tm, n_pad


def _encode_rows(xp, prep, tm):
    n_pad = xp.shape[0]
    return pl.pallas_call(
        encoder_kernel,
        out_shape=jax.ShapeDtypeStruct((n_pad, OUT_PAD), jnp.float32),
        grid_spec=pltpu.PrefetchScalarGridSpec(
            num_scalar_prefetch=0,
            grid=(n_pad // tm,),
            in_specs=[
                pl.BlockSpec((tm, IN_PAD), lambda i: (i, 0)),
                pl.BlockSpec(prep["sqw"].shape, lambda i: (0, 0, 0)),
                pl.BlockSpec(prep["w1"].shape, lambda i: (0, 0, 0)),
                pl.BlockSpec(prep["w2"].shape, lambda i: (0, 0, 0)),
                pl.BlockSpec(prep["vecs"].shape, lambda i: (0, 0)),
                pl.BlockSpec(prep["b1"].shape, lambda i: (0, 0)),
            ],
            out_specs=pl.BlockSpec((tm, OUT_PAD), lambda i: (i, 0)),
        ),
        compiler_params=pltpu.CompilerParams(
            dimension_semantics=("parallel",)),
    )(xp, prep["sqw"], prep["w1"], prep["w2"], prep["vecs"], prep["b1"])


@jax.jit
def siamese_forward(anchor, positive, negative, prep):
    n = anchor.shape[0]
    rows = 3 * n
    tm, n_pad = _choose_tile(rows)
    # single fused copy: stack the three branches, pad rows -> n_pad and
    # features 112 -> 128, and cast to bf16 (the only dtype the kernel needs).
    x = jnp.stack([anchor, positive, negative]).reshape(rows, INPUT_SIZE)
    xp = jnp.zeros((n_pad, IN_PAD), DOT_DTYPE).at[:rows, :INPUT_SIZE].set(
        x.astype(DOT_DTYPE))
    out = _encode_rows(xp, prep, tm)           # (n_pad, 128) f32, pad cols zero
    emb = out[:rows, :OUT]
    return emb[:n], emb[n:2 * n], emb[2 * n:]


# ---- pure-JAX f32 reference (module semantics, no folding/padding) ---------
def encoder_ref(x, p):
    h = x @ p["win"] + p["bin"]
    for l in range(NUM_LAYERS):
        attn = (h @ p["wv"][l] + p["bv"][l]) @ p["wo"][l] + p["bo"][l]
        h = _layernorm(h + attn, p["ln1g"][l], p["ln1b"][l])
        ff = jnp.maximum(h @ p["w1"][l] + p["b1"][l], 0.0) @ p["w2"][l] + p["b2"][l]
        h = _layernorm(h + ff, p["ln2g"][l], p["ln2b"][l])
    y = _layernorm(h @ p["wout"] + p["bout"], p["lng"], p["lnb"])
    return y / jnp.maximum(jnp.linalg.norm(y, axis=1, keepdims=True), L2_EPS)


if __name__ == "__main__":
    key = jax.random.PRNGKey(0)
    kp, ka, kpos, kn = jax.random.split(key, 4)
    params = make_params(kp)
    prep = prepare_params(params)

    N = 8
    anchor = jax.random.normal(ka, (N, INPUT_SIZE), jnp.float32)
    positive = jax.random.normal(kpos, (N, INPUT_SIZE), jnp.float32)
    negative = jax.random.normal(kn, (N, INPUT_SIZE), jnp.float32)

    a_out, p_out, n_out = jax.block_until_ready(
        siamese_forward(anchor, positive, negative, prep))

    # sanity check against the f32 reference (loose tol: bf16 MXU inputs)
    for got, inp in ((a_out, anchor), (p_out, positive), (n_out, negative)):
        ref = encoder_ref(inp, params)
        assert got.shape == (N, OUT)
        assert bool(jnp.all(jnp.isfinite(got))), "non-finite output"
        assert jnp.allclose(got, ref, atol=3e-2, rtol=3e-2), "mismatch vs reference"

    print("KERNEL_OK")
</pallas_src>

<mosaic_0001>
module attributes {stable_mosaic.version = 11 : i64} {
  func.func @encoder_kernel(%arg0: i32, %arg1: memref<128x128xbf16, #tpu.memory_space<vmem>>, %arg2: memref<3x128x128xbf16, #tpu.memory_space<vmem>>, %arg3: memref<2x128x512xbf16, #tpu.memory_space<vmem>>, %arg4: memref<2x512x128xbf16, #tpu.memory_space<vmem>>, %arg5: memref<16x128xf32, #tpu.memory_space<vmem>>, %arg6: memref<2x512xf32, #tpu.memory_space<vmem>>, %arg7: memref<128x128xf32, #tpu.memory_space<vmem>>) attributes {dimension_semantics = [#tpu.dimension_semantics<parallel>], iteration_bounds = array<i64: 2>, scalar_prefetch = 0 : i64, scratch_operands = 0 : i64, tpu.core_type = #tpu.core_type<tc>, window_params = [{transform_indices = @transform_0, window_bounds = array<i64: 128, 128>}, {pipeline_mode = #tpu.pipeline_mode<synchronous>, transform_indices = @transform_1, window_bounds = array<i64: 3, 128, 128>}, {pipeline_mode = #tpu.pipeline_mode<synchronous>, transform_indices = @transform_2, window_bounds = array<i64: 2, 128, 512>}, {pipeline_mode = #tpu.pipeline_mode<synchronous>, transform_indices = @transform_3, window_bounds = array<i64: 2, 512, 128>}, {pipeline_mode = #tpu.pipeline_mode<synchronous>, transform_indices = @transform_4, window_bounds = array<i64: 16, 128>}, {pipeline_mode = #tpu.pipeline_mode<synchronous>, transform_indices = @transform_5, window_bounds = array<i64: 2, 512>}, {transform_indices = @transform_6, window_bounds = array<i64: 128, 128>}]} {
    %c0 = arith.constant 0 : index
    %c0_0 = arith.constant 0 : index
    %0 = vector.load %arg1[%c0, %c0_0] : memref<128x128xbf16, #tpu.memory_space<vmem>>, vector<128x128xbf16>
    %c0_1 = arith.constant 0 : index
    %c0_2 = arith.constant 0 : index
    %c0_3 = arith.constant 0 : index
    %1 = vector.load %arg2[%c0_1, %c0_2, %c0_3] : memref<3x128x128xbf16, #tpu.memory_space<vmem>>, vector<1x128x128xbf16>
    %2 = vector.shape_cast %1 : vector<1x128x128xbf16> to vector<128x128xbf16>
    %cst = arith.constant dense<0.000000e+00> : vector<128x128xf32>
    %3 = tpu.matmul %0, %2, %cst {dimension_numbers = #tpu.dot_dimension_numbers<[1], [0], [0], [1], [0, 0, 1, 1], [], []>} : vector<128x128xbf16>, vector<128x128xbf16>, vector<128x128xf32> -> vector<128x128xf32>
    %c0_4 = arith.constant 0 : index
    %c0_5 = arith.constant 0 : index
    %4 = vector.load %arg5[%c0_4, %c0_5] : memref<16x128xf32, #tpu.memory_space<vmem>>, vector<1x128xf32>
    %5 = vector.shape_cast %4 : vector<1x128xf32> to vector<128xf32>
    %6 = vector.shape_cast %5 : vector<128xf32> to vector<1x128xf32>
    %7 = vector.broadcast %6 : vector<1x128xf32> to vector<128x128xf32>
    %8 = arith.addf %3, %7 : vector<128x128xf32>
    %c2 = arith.constant 2 : index
    %c0_6 = arith.constant 0 : index
    %9 = vector.load %arg5[%c2, %c0_6] : memref<16x128xf32, #tpu.memory_space<vmem>>, vector<1x128xf32>
    %10 = vector.shape_cast %9 : vector<1x128xf32> to vector<128xf32>
    %c3 = arith.constant 3 : index
    %c0_7 = arith.constant 0 : index
    %11 = vector.load %arg5[%c3, %c0_7] : memref<16x128xf32, #tpu.memory_space<vmem>>, vector<1x128xf32>
    %12 = vector.shape_cast %11 : vector<1x128xf32> to vector<128xf32>
    %cst_8 = arith.constant dense<0.000000e+00> : vector<128xf32>
    %13 = vector.multi_reduction <add>, %8, %cst_8 [1] : vector<128x128xf32> to vector<128xf32>
    %14 = vector.shape_cast %13 : vector<128xf32> to vector<128x1xf32>
    %cst_9 = arith.constant 1.280000e+02 : f32
    %15 = vector.broadcast %cst_9 : f32 to vector<128x1xf32>
    %16 = arith.divf %14, %15 : vector<128x1xf32>
    %17 = vector.broadcast %16 : vector<128x1xf32> to vector<128x128xf32>
    %18 = arith.subf %8, %17 : vector<128x128xf32>
    %19 = arith.mulf %18, %18 : vector<128x128xf32>
    %cst_10 = arith.constant dense<0.000000e+00> : vector<128xf32>
    %20 = vector.multi_reduction <add>, %19, %cst_10 [1] : vector<128x128xf32> to vector<128xf32>
    %21 = vector.shape_cast %20 : vector<128xf32> to vector<128x1xf32>
    %cst_11 = arith.constant 1.280000e+02 : f32
    %22 = vector.broadcast %cst_11 : f32 to vector<128x1xf32>
    %23 = arith.divf %21, %22 : vector<128x1xf32>
    %24 = vector.broadcast %16 : vector<128x1xf32> to vector<128x128xf32>
    %25 = arith.subf %8, %24 : vector<128x128xf32>
    %cst_12 = arith.constant 9.99999974E-6 : f32
    %26 = vector.broadcast %cst_12 : f32 to vector<128x1xf32>
    %27 = arith.addf %23, %26 : vector<128x1xf32>
    %28 = math.rsqrt %27 : vector<128x1xf32>
    %29 = vector.broadcast %28 : vector<128x1xf32> to vector<128x128xf32>
    %30 = arith.mulf %25, %29 : vector<128x128xf32>
    %31 = vector.shape_cast %10 : vector<128xf32> to vector<1x128xf32>
    %32 = vector.broadcast %31 : vector<1x128xf32> to vector<128x128xf32>
    %33 = arith.mulf %30, %32 : vector<128x128xf32>
    %34 = vector.shape_cast %12 : vector<128xf32> to vector<1x128xf32>
    %35 = vector.broadcast %34 : vector<1x128xf32> to vector<128x128xf32>
    %36 = arith.addf %33, %35 : vector<128x128xf32>
    %37 = arith.truncf %36 : vector<128x128xf32> to vector<128x128xbf16>
    %c0_13 = arith.constant 0 : index
    %c0_14 = arith.constant 0 : index
    %c0_15 = arith.constant 0 : index
    %38 = vector.load %arg3[%c0_13, %c0_14, %c0_15] : memref<2x128x512xbf16, #tpu.memory_space<vmem>>, vector<1x128x512xbf16>
    %39 = vector.shape_cast %38 : vector<1x128x512xbf16> to vector<128x512xbf16>
    %cst_16 = arith.constant dense<0.000000e+00> : vector<128x512xf32>
    %40 = tpu.matmul %37, %39, %cst_16 {dimension_numbers = #tpu.dot_dimension_numbers<[1], [0], [0], [1], [0, 0, 1, 1], [], []>} : vector<128x128xbf16>, vector<128x512xbf16>, vector<128x512xf32> -> vector<128x512xf32>
    %c0_17 = arith.constant 0 : index
    %c0_18 = arith.constant 0 : index
    %41 = vector.load %arg6[%c0_17, %c0_18] : memref<2x512xf32, #tpu.memory_space<vmem>>, vector<1x512xf32>
    %42 = vector.shape_cast %41 : vector<1x512xf32> to vector<512xf32>
    %43 = vector.shape_cast %42 : vector<512xf32> to vector<1x512xf32>
    %44 = vector.broadcast %43 : vector<1x512xf32> to vector<128x512xf32>
    %45 = arith.addf %40, %44 : vector<128x512xf32>
    %cst_19 = arith.constant 0.000000e+00 : f32
    %46 = vector.broadcast %cst_19 : f32 to vector<128x512xf32>
    %47 = arith.maximumf %45, %46 : vector<128x512xf32>
    %48 = arith.truncf %47 : vector<128x512xf32> to vector<128x512xbf16>
    %c0_20 = arith.constant 0 : index
    %c0_21 = arith.constant 0 : index
    %c0_22 = arith.constant 0 : index
    %49 = vector.load %arg4[%c0_20, %c0_21, %c0_22] : memref<2x512x128xbf16, #tpu.memory_space<vmem>>, vector<1x512x128xbf16>
    %50 = vector.shape_cast %49 : vector<1x512x128xbf16> to vector<512x128xbf16>
    %cst_23 = arith.constant dense<0.000000e+00> : vector<128x128xf32>
    %51 = tpu.matmul %48, %50, %cst_23 {dimension_numbers = #tpu.dot_dimension_numbers<[1], [0], [0], [1], [0, 0, 1, 1], [], []>} : vector<128x512xbf16>, vector<512x128xbf16>, vector<128x128xf32> -> vector<128x128xf32>
    %c4 = arith.constant 4 : index
    %c0_24 = arith.constant 0 : index
    %52 = vector.load %arg5[%c4, %c0_24] : memref<16x128xf32, #tpu.memory_space<vmem>>, vector<1x128xf32>
    %53 = vector.shape_cast %52 : vector<1x128xf32> to vector<128xf32>
    %54 = vector.shape_cast %53 : vector<128xf32> to vector<1x128xf32>
    %55 = vector.broadcast %54 : vector<1x128xf32> to vector<128x128xf32>
    %56 = arith.addf %51, %55 : vector<128x128xf32>
    %57 = arith.addf %36, %56 : vector<128x128xf32>
    %c5 = arith.constant 5 : index
    %c0_25 = arith.constant 0 : index
    %58 = vector.load %arg5[%c5, %c0_25] : memref<16x128xf32, #tpu.memory_space<vmem>>, vector<1x128xf32>
    %59 = vector.shape_cast %58 : vector<1x128xf32> to vector<128xf32>
    %c6 = arith.constant 6 : index
    %c0_26 = arith.constant 0 : index
    %60 = vector.load %arg5[%c6, %c0_26] : memref<16x128xf32, #tpu.memory_space<vmem>>, vector<1x128xf32>
    %61 = vector.shape_cast %60 : vector<1x128xf32> to vector<128xf32>
    %cst_27 = arith.constant dense<0.000000e+00> : vector<128xf32>
    %62 = vector.multi_reduction <add>, %57, %cst_27 [1] : vector<128x128xf32> to vector<128xf32>
    %63 = vector.shape_cast %62 : vector<128xf32> to vector<128x1xf32>
    %cst_28 = arith.constant 1.280000e+02 : f32
    %64 = vector.broadcast %cst_28 : f32 to vector<128x1xf32>
    %65 = arith.divf %63, %64 : vector<128x1xf32>
    %66 = vector.broadcast %65 : vector<128x1xf32> to vector<128x128xf32>
    %67 = arith.subf %57, %66 : vector<128x128xf32>
    %68 = arith.mulf %67, %67 : vector<128x128xf32>
    %cst_29 = arith.constant dense<0.000000e+00> : vector<128xf32>
    %69 = vector.multi_reduction <add>, %68, %cst_29 [1] : vector<128x128xf32> to vector<128xf32>
    %70 = vector.shape_cast %69 : vector<128xf32> to vector<128x1xf32>
    %cst_30 = arith.constant 1.280000e+02 : f32
    %71 = vector.broadcast %cst_30 : f32 to vector<128x1xf32>
    %72 = arith.divf %70, %71 : vector<128x1xf32>
    %73 = vector.broadcast %65 : vector<128x1xf32> to vector<128x128xf32>
    %74 = arith.subf %57, %73 : vector<128x128xf32>
    %cst_31 = arith.constant 9.99999974E-6 : f32
    %75 = vector.broadcast %cst_31 : f32 to vector<128x1xf32>
    %76 = arith.addf %72, %75 : vector<128x1xf32>
    %77 = math.rsqrt %76 : vector<128x1xf32>
    %78 = vector.broadcast %77 : vector<128x1xf32> to vector<128x128xf32>
    %79 = arith.mulf %74, %78 : vector<128x128xf32>
    %80 = vector.shape_cast %59 : vector<128xf32> to vector<1x128xf32>
    %81 = vector.broadcast %80 : vector<1x128xf32> to vector<128x128xf32>
    %82 = arith.mulf %79, %81 : vector<128x128xf32>
    %83 = vector.shape_cast %61 : vector<128xf32> to vector<1x128xf32>
    %84 = vector.broadcast %83 : vector<1x128xf32> to vector<128x128xf32>
    %85 = arith.addf %82, %84 : vector<128x128xf32>
    %86 = arith.truncf %85 : vector<128x128xf32> to vector<128x128xbf16>
    %c1 = arith.constant 1 : index
    %c0_32 = arith.constant 0 : index
    %c0_33 = arith.constant 0 : index
    %87 = vector.load %arg2[%c1, %c0_32, %c0_33] : memref<3x128x128xbf16, #tpu.memory_space<vmem>>, vector<1x128x128xbf16>
    %88 = vector.shape_cast %87 : vector<1x128x128xbf16> to vector<128x128xbf16>
    %cst_34 = arith.constant dense<0.000000e+00> : vector<128x128xf32>
    %89 = tpu.matmul %86, %88, %cst_34 {dimension_numbers = #tpu.dot_dimension_numbers<[1], [0], [0], [1], [0, 0, 1, 1], [], []>} : vector<128x128xbf16>, vector<128x128xbf16>, vector<128x128xf32> -> vector<128x128xf32>
    %c7 = arith.constant 7 : index
    %c0_35 = arith.constant 0 : index
    %90 = vector.load %arg5[%c7, %c0_35] : memref<16x128xf32, #tpu.memory_space<vmem>>, vector<1x128xf32>
    %91 = vector.shape_cast %90 : vector<1x128xf32> to vector<128xf32>
    %92 = vector.shape_cast %91 : vector<128xf32> to vector<1x128xf32>
    %93 = vector.broadcast %92 : vector<1x128xf32> to vector<128x128xf32>
    %94 = arith.addf %89, %93 : vector<128x128xf32>
    %c8 = arith.constant 8 : index
    %c0_36 = arith.constant 0 : index
    %95 = vector.load %arg5[%c8, %c0_36] : memref<16x128xf32, #tpu.memory_space<vmem>>, vector<1x128xf32>
    %96 = vector.shape_cast %95 : vector<1x128xf32> to vector<128xf32>
    %c9 = arith.constant 9 : index
    %c0_37 = arith.constant 0 : index
    %97 = vector.load %arg5[%c9, %c0_37] : memref<16x128xf32, #tpu.memory_space<vmem>>, vector<1x128xf32>
    %98 = vector.shape_cast %97 : vector<1x128xf32> to vector<128xf32>
    %cst_38 = arith.constant dense<0.000000e+00> : vector<128xf32>
    %99 = vector.multi_reduction <add>, %94, %cst_38 [1] : vector<128x128xf32> to vector<128xf32>
    %100 = vector.shape_cast %99 : vector<128xf32> to vector<128x1xf32>
    %cst_39 = arith.constant 1.280000e+02 : f32
    %101 = vector.broadcast %cst_39 : f32 to vector<128x1xf32>
    %102 = arith.divf %100, %101 : vector<128x1xf32>
    %103 = vector.broadcast %102 : vector<128x1xf32> to vector<128x128xf32>
    %104 = arith.subf %94, %103 : vector<128x128xf32>
    %105 = arith.mulf %104, %104 : vector<128x128xf32>
    %cst_40 = arith.constant dense<0.000000e+00> : vector<128xf32>
    %106 = vector.multi_reduction <add>, %105, %cst_40 [1] : vector<128x128xf32> to vector<128xf32>
    %107 = vector.shape_cast %106 : vector<128xf32> to vector<128x1xf32>
    %cst_41 = arith.constant 1.280000e+02 : f32
    %108 = vector.broadcast %cst_41 : f32 to vector<128x1xf32>
    %109 = arith.divf %107, %108 : vector<128x1xf32>
    %110 = vector.broadcast %102 : vector<128x1xf32> to vector<128x128xf32>
    %111 = arith.subf %94, %110 : vector<128x128xf32>
    %cst_42 = arith.constant 9.99999974E-6 : f32
    %112 = vector.broadcast %cst_42 : f32 to vector<128x1xf32>
    %113 = arith.addf %109, %112 : vector<128x1xf32>
    %114 = math.rsqrt %113 : vector<128x1xf32>
    %115 = vector.broadcast %114 : vector<128x1xf32> to vector<128x128xf32>
    %116 = arith.mulf %111, %115 : vector<128x128xf32>
    %117 = vector.shape_cast %96 : vector<128xf32> to vector<1x128xf32>
    %118 = vector.broadcast %117 : vector<1x128xf32> to vector<128x128xf32>
    %119 = arith.mulf %116, %118 : vector<128x128xf32>
    %120 = vector.shape_cast %98 : vector<128xf32> to vector<1x128xf32>
    %121 = vector.broadcast %120 : vector<1x128xf32> to vector<128x128xf32>
    %122 = arith.addf %119, %121 : vector<128x128xf32>
    %123 = arith.truncf %122 : vector<128x128xf32> to vector<128x128xbf16>
    %c1_43 = arith.constant 1 : index
    %c0_44 = arith.constant 0 : index
    %c0_45 = arith.constant 0 : index
    %124 = vector.load %arg3[%c1_43, %c0_44, %c0_45] : memref<2x128x512xbf16, #tpu.memory_space<vmem>>, vector<1x128x512xbf16>
    %125 = vector.shape_cast %124 : vector<1x128x512xbf16> to vector<128x512xbf16>
    %cst_46 = arith.constant dense<0.000000e+00> : vector<128x512xf32>
    %126 = tpu.matmul %123, %125, %cst_46 {dimension_numbers = #tpu.dot_dimension_numbers<[1], [0], [0], [1], [0, 0, 1, 1], [], []>} : vector<128x128xbf16>, vector<128x512xbf16>, vector<128x512xf32> -> vector<128x512xf32>
    %c1_47 = arith.constant 1 : index
    %c0_48 = arith.constant 0 : index
    %127 = vector.load %arg6[%c1_47, %c0_48] : memref<2x512xf32, #tpu.memory_space<vmem>>, vector<1x512xf32>
    %128 = vector.shape_cast %127 : vector<1x512xf32> to vector<512xf32>
    %129 = vector.shape_cast %128 : vector<512xf32> to vector<1x512xf32>
    %130 = vector.broadcast %129 : vector<1x512xf32> to vector<128x512xf32>
    %131 = arith.addf %126, %130 : vector<128x512xf32>
    %cst_49 = arith.constant 0.000000e+00 : f32
    %132 = vector.broadcast %cst_49 : f32 to vector<128x512xf32>
    %133 = arith.maximumf %131, %132 : vector<128x512xf32>
    %134 = arith.truncf %133 : vector<128x512xf32> to vector<128x512xbf16>
    %c1_50 = arith.constant 1 : index
    %c0_51 = arith.constant 0 : index
    %c0_52 = arith.constant 0 : index
    %135 = vector.load %arg4[%c1_50, %c0_51, %c0_52] : memref<2x512x128xbf16, #tpu.memory_space<vmem>>, vector<1x512x128xbf16>
    %136 = vector.shape_cast %135 : vector<1x512x128xbf16> to vector<512x128xbf16>
    %cst_53 = arith.constant dense<0.000000e+00> : vector<128x128xf32>
    %137 = tpu.matmul %134, %136, %cst_53 {dimension_numbers = #tpu.dot_dimension_numbers<[1], [0], [0], [1], [0, 0, 1, 1], [], []>} : vector<128x512xbf16>, vector<512x128xbf16>, vector<128x128xf32> -> vector<128x128xf32>
    %c10 = arith.constant 10 : index
    %c0_54 = arith.constant 0 : index
    %138 = vector.load %arg5[%c10, %c0_54] : memref<16x128xf32, #tpu.memory_space<vmem>>, vector<1x128xf32>
    %139 = vector.shape_cast %138 : vector<1x128xf32> to vector<128xf32>
    %140 = vector.shape_cast %139 : vector<128xf32> to vector<1x128xf32>
    %141 = vector.broadcast %140 : vector<1x128xf32> to vector<128x128xf32>
    %142 = arith.addf %137, %141 : vector<128x128xf32>
    %143 = arith.addf %122, %142 : vector<128x128xf32>
    %c11 = arith.constant 11 : index
    %c0_55 = arith.constant 0 : index
    %144 = vector.load %arg5[%c11, %c0_55] : memref<16x128xf32, #tpu.memory_space<vmem>>, vector<1x128xf32>
    %145 = vector.shape_cast %144 : vector<1x128xf32> to vector<128xf32>
    %c12 = arith.constant 12 : index
    %c0_56 = arith.constant 0 : index
    %146 = vector.load %arg5[%c12, %c0_56] : memref<16x128xf32, #tpu.memory_space<vmem>>, vector<1x128xf32>
    %147 = vector.shape_cast %146 : vector<1x128xf32> to vector<128xf32>
    %cst_57 = arith.constant dense<0.000000e+00> : vector<128xf32>
    %148 = vector.multi_reduction <add>, %143, %cst_57 [1] : vector<128x128xf32> to vector<128xf32>
    %149 = vector.shape_cast %148 : vector<128xf32> to vector<128x1xf32>
    %cst_58 = arith.constant 1.280000e+02 : f32
    %150 = vector.broadcast %cst_58 : f32 to vector<128x1xf32>
    %151 = arith.divf %149, %150 : vector<128x1xf32>
    %152 = vector.broadcast %151 : vector<128x1xf32> to vector<128x128xf32>
    %153 = arith.subf %143, %152 : vector<128x128xf32>
    %154 = arith.mulf %153, %153 : vector<128x128xf32>
    %cst_59 = arith.constant dense<0.000000e+00> : vector<128xf32>
    %155 = vector.multi_reduction <add>, %154, %cst_59 [1] : vector<128x128xf32> to vector<128xf32>
    %156 = vector.shape_cast %155 : vector<128xf32> to vector<128x1xf32>
    %cst_60 = arith.constant 1.280000e+02 : f32
    %157 = vector.broadcast %cst_60 : f32 to vector<128x1xf32>
    %158 = arith.divf %156, %157 : vector<128x1xf32>
    %159 = vector.broadcast %151 : vector<128x1xf32> to vector<128x128xf32>
    %160 = arith.subf %143, %159 : vector<128x128xf32>
    %cst_61 = arith.constant 9.99999974E-6 : f32
    %161 = vector.broadcast %cst_61 : f32 to vector<128x1xf32>
    %162 = arith.addf %158, %161 : vector<128x1xf32>
    %163 = math.rsqrt %162 : vector<128x1xf32>
    %164 = vector.broadcast %163 : vector<128x1xf32> to vector<128x128xf32>
    %165 = arith.mulf %160, %164 : vector<128x128xf32>
    %166 = vector.shape_cast %145 : vector<128xf32> to vector<1x128xf32>
    %167 = vector.broadcast %166 : vector<1x128xf32> to vector<128x128xf32>
    %168 = arith.mulf %165, %167 : vector<128x128xf32>
    %169 = vector.shape_cast %147 : vector<128xf32> to vector<1x128xf32>
    %170 = vector.broadcast %169 : vector<1x128xf32> to vector<128x128xf32>
    %171 = arith.addf %168, %170 : vector<128x128xf32>
    %172 = arith.truncf %171 : vector<128x128xf32> to vector<128x128xbf16>
    %c2_62 = arith.constant 2 : index
    %c0_63 = arith.constant 0 : index
    %c0_64 = arith.constant 0 : index
    %173 = vector.load %arg2[%c2_62, %c0_63, %c0_64] : memref<3x128x128xbf16, #tpu.memory_space<vmem>>, vector<1x128x128xbf16>
    %174 = vector.shape_cast %173 : vector<1x128x128xbf16> to vector<128x128xbf16>
    %cst_65 = arith.constant dense<0.000000e+00> : vector<128x128xf32>
    %175 = tpu.matmul %172, %174, %cst_65 {dimension_numbers = #tpu.dot_dimension_numbers<[1], [0], [0], [1], [0, 0, 1, 1], [], []>} : vector<128x128xbf16>, vector<128x128xbf16>, vector<128x128xf32> -> vector<128x128xf32>
    %c13 = arith.constant 13 : index
    %c0_66 = arith.constant 0 : index
    %176 = vector.load %arg5[%c13, %c0_66] : memref<16x128xf32, #tpu.memory_space<vmem>>, vector<1x128xf32>
    %177 = vector.shape_cast %176 : vector<1x128xf32> to vector<128xf32>
    %178 = vector.shape_cast %177 : vector<128xf32> to vector<1x128xf32>
    %179 = vector.broadcast %178 : vector<1x128xf32> to vector<128x128xf32>
    %180 = arith.addf %175, %179 : vector<128x128xf32>
    %cst_67 = arith.constant dense<0.000000e+00> : vector<128xf32>
    %181 = vector.multi_reduction <add>, %180, %cst_67 [1] : vector<128x128xf32> to vector<128xf32>
    %182 = vector.shape_cast %181 : vector<128xf32> to vector<128x1xf32>
    %cst_68 = arith.constant 1.562500e-02 : f32
    %183 = vector.broadcast %cst_68 : f32 to vector<128x1xf32>
    %184 = arith.mulf %182, %183 : vector<128x1xf32>
    %185 = arith.mulf %180, %180 : vector<128x128xf32>
    %cst_69 = arith.constant dense<0.000000e+00> : vector<128xf32>
    %186 = vector.multi_reduction <add>, %185, %cst_69 [1] : vector<128x128xf32> to vector<128xf32>
    %187 = vector.shape_cast %186 : vector<128xf32> to vector<128x1xf32>
    %cst_70 = arith.constant 1.562500e-02 : f32
    %188 = vector.broadcast %cst_70 : f32 to vector<128x1xf32>
    %189 = arith.mulf %187, %188 : vector<128x1xf32>
    %190 = arith.mulf %184, %184 : vector<128x1xf32>
    %191 = arith.subf %189, %190 : vector<128x1xf32>
    %192 = vector.broadcast %184 : vector<128x1xf32> to vector<128x128xf32>
    %193 = arith.subf %180, %192 : vector<128x128xf32>
    %cst_71 = arith.constant 9.99999974E-6 : f32
    %194 = vector.broadcast %cst_71 : f32 to vector<128x1xf32>
    %195 = arith.addf %191, %194 : vector<128x1xf32>
    %196 = math.rsqrt %195 : vector<128x1xf32>
    %197 = vector.broadcast %196 : vector<128x1xf32> to vector<128x128xf32>
    %198 = arith.mulf %193, %197 : vector<128x128xf32>
    %c14 = arith.constant 14 : index
    %c0_72 = arith.constant 0 : index
    %199 = vector.load %arg5[%c14, %c0_72] : memref<16x128xf32, #tpu.memory_space<vmem>>, vector<1x128xf32>
    %200 = vector.shape_cast %199 : vector<1x128xf32> to vector<128xf32>
    %201 = vector.shape_cast %200 : vector<128xf32> to vector<1x128xf32>
    %202 = vector.broadcast %201 : vector<1x128xf32> to vector<128x128xf32>
    %203 = arith.mulf %198, %202 : vector<128x128xf32>
    %c15 = arith.constant 15 : index
    %c0_73 = arith.constant 0 : index
    %204 = vector.load %arg5[%c15, %c0_73] : memref<16x128xf32, #tpu.memory_space<vmem>>, vector<1x128xf32>
    %205 = vector.shape_cast %204 : vector<1x128xf32> to vector<128xf32>
    %206 = vector.shape_cast %205 : vector<128xf32> to vector<1x128xf32>
    %207 = vector.broadcast %206 : vector<1x128xf32> to vector<128x128xf32>
    %208 = arith.addf %203, %207 : vector<128x128xf32>
    %209 = arith.mulf %208, %208 : vector<128x128xf32>
    %cst_74 = arith.constant dense<0.000000e+00> : vector<128xf32>
    %210 = vector.multi_reduction <add>, %209, %cst_74 [1] : vector<128x128xf32> to vector<128xf32>
    %211 = vector.shape_cast %210 : vector<128xf32> to vector<128x1xf32>
    %cst_75 = arith.constant 1.000000e-24 : f32
    %212 = vector.broadcast %cst_75 : f32 to vector<128x1xf32>
    %213 = arith.maximumf %211, %212 : vector<128x1xf32>
    %214 = math.rsqrt %213 : vector<128x1xf32>
    %215 = vector.broadcast %214 : vector<128x1xf32> to vector<128x128xf32>
    %216 = arith.mulf %208, %215 : vector<128x128xf32>
    %c0_76 = arith.constant 0 : index
    %c0_77 = arith.constant 0 : index
    %217 = vector.load %arg7[%c0_76, %c0_77] : memref<128x128xf32, #tpu.memory_space<vmem>>, vector<128x128xf32>
    tpu.vector_store %arg7[%c0_76, %c0_77], %216 {strides = array<i32>} : memref<128x128xf32, #tpu.memory_space<vmem>>, vector<128x128xf32>,
    return
  }
  func.func @transform_0(%arg0: i32) -> (i32, i32) {
    %c0_i32 = arith.constant 0 : i32
    %c0_i32_0 = arith.constant 0 : i32
    return %arg0, %c0_i32 : i32, i32
  }
  func.func @transform_1(%arg0: i32) -> (i32, i32, i32) {
    %c0_i32 = arith.constant 0 : i32
    %c0_i32_0 = arith.constant 0 : i32
    %c0_i32_1 = arith.constant 0 : i32
    %c0_i32_2 = arith.constant 0 : i32
    return %c0_i32, %c0_i32_0, %c0_i32_1 : i32, i32, i32
  }
  func.func @transform_2(%arg0: i32) -> (i32, i32, i32) {
    %c0_i32 = arith.constant 0 : i32
    %c0_i32_0 = arith.constant 0 : i32
    %c0_i32_1 = arith.constant 0 : i32
    %c0_i32_2 = arith.constant 0 : i32
    return %c0_i32, %c0_i32_0, %c0_i32_1 : i32, i32, i32
  }
  func.func @transform_3(%arg0: i32) -> (i32, i32, i32) {
    %c0_i32 = arith.constant 0 : i32
    %c0_i32_0 = arith.constant 0 : i32
    %c0_i32_1 = arith.constant 0 : i32
    %c0_i32_2 = arith.constant 0 : i32
    return %c0_i32, %c0_i32_0, %c0_i32_1 : i32, i32, i32
  }
  func.func @transform_4(%arg0: i32) -> (i32, i32) {
    %c0_i32 = arith.constant 0 : i32
    %c0_i32_0 = arith.constant 0 : i32
    %c0_i32_1 = arith.constant 0 : i32
    return %c0_i32, %c0_i32_0 : i32, i32
  }
  func.func @transform_5(%arg0: i32) -> (i32, i32) {
    %c0_i32 = arith.constant 0 : i32
    %c0_i32_0 = arith.constant 0 : i32
    %c0_i32_1 = arith.constant 0 : i32
    return %c0_i32, %c0_i32_0 : i32, i32
  }
  func.func @transform_6(%arg0: i32) -> (i32, i32) {
    %c0_i32 = arith.constant 0 : i32
    %c0_i32_0 = arith.constant 0 : i32
    return %arg0, %c0_i32 : i32, i32
  }
}

</mosaic_0001>

<llo_original>
// kernel: siamese_forward.1
$region0: #{siamese_forward.1}
  #allocation0 [shape = 'u32[]', space=smem, size = 0x4, offset = 0x4, fixed_abs, tag = 'smem constant byte address 0x4 - core index']
  #allocation1 [shape = 'u32[144,128]{1,0:T(1,128)}', space=vmem, size = 0x12000, scoped, tag = 'internal scratch']
  %s0 = inlined_call_operand.vmem [shape: bf16[256,128], index: 0, kind: input, shape index: {}]
  %s1 = inlined_call_operand.vmem [shape: bf16[3,128,128], index: 1, kind: input, shape index: {}]
  %s2 = inlined_call_operand.hbm [shape: bf16[2,128,512], index: 2, kind: input, shape index: {}]
  %s3 = inlined_call_operand.hbm [shape: bf16[2,512,128], index: 3, kind: input, shape index: {}]
  %s4 = inlined_call_operand.vmem [shape: f32[16,128], index: 4, kind: input, shape index: {}]
  %s5 = inlined_call_operand.vmem [shape: f32[2,512], index: 5, kind: input, shape index: {}]
  %s6 = inlined_call_operand.vmem [shape: f32[256,128], index: 6, kind: output, shape index: {}]
  %s7 = sld [smem:[#allocation0]]
  $region65: #{siamese_forward.1} parent=0
    _
  %s9 = ssub.s32 1, %s7
  %s10 = scalar_select 0, %s9, %s7
  $region1: #{siamese_forward.1} parent=0
    #allocation2 [shape = 'u8[262144]{0}', space=vmem, size = 0x40000, scoped, tag = 'input window, operand 2, single buffered']
    #allocation3 [shape = 's32[2]{0}', space=sflag, size = 0x8, scoped, tag = 'scoped memory for siamese_forward.1']
    #allocation4 [shape = 'u8[262144]{0}', space=vmem, size = 0x40000, scoped, tag = 'input window, operand 3, single buffered']
    #allocation5 [shape = 's32[1]{0}', space=sflag, size = 0x4, scoped, tag = 'scoped memory for siamese_forward.1']
    %11 = vsyncpa [#allocation3], 0
    %12 = vsyncpa [#allocation5], 0
    loop: start=0, step=1, limit=4
    $region2: #{siamese_forward.1} parent=1 // loop_pre_header
      _
    $region3: #{siamese_forward.1} parent=1 // loop_header
      %s14 = sphi 0, %s18
      %p15 = scmp.ge.s32.totalorder %s14, 4
      %s24 = sphi 0, %s26
      %s27 = sphi 0, %s24
      %s28 = sphi 0, %s27
      %s44 = sphi 0, %s28
      %s48 = sphi 0, %s48
      %s50 = sphi 0, %s48
      %s51 = sphi 0, %s50
      %s65 = sphi 0, %s51
      %s69 = sphi 0, %s69
      %s71 = sphi 0, %s69
      %s72 = sphi 0, %s71
      %s86 = sphi 0, %s72
      %s90 = sphi 0, %s90
      %s92 = sphi 0, %s90
      %s93 = sphi 0, %s92
      %s107 = sphi 0, %s93
      %s111 = sphi 0, %s111
      %s113 = sphi 0, %s111
      %s114 = sphi 0, %s113
      %s128 = sphi 0, %s114
      %s132 = sphi 0, %s132
      %s134 = sphi 0, %s132
      %s135 = sphi 0, %s134
      %s149 = sphi 0, %s135
      %s155 = sphi 0, %s157
      %s158 = sphi 0, %s155
      %s159 = sphi 0, %s158
      %s175 = sphi 0, %s159
    $region4: #{siamese_forward.1} parent=1 // loop_header_branch
      %17 = sbr.rel (%p15) target = $region8
    $region5: #{siamese_forward.1} parent=1 // loop_body
      %s19 = ssub.s32 %s14, 1
      %s20 = ssub.s32 %s14, 2
      %s21 = sadd.s32 %s14, 1
      %s22 = ssub.s32 %s14, %s21
      %p23 = scmp.eq.s32.totalorder %s22, 0
      %s25 = sadd.s32 %s24, 1
      %s26 = scalar_select %p23, %s24, %s25
      %p29 = pneg %p23
      %p30 = scmp.eq.s32.totalorder %s14, 1
      %p31 = por %p29, %p30
      %p32 = scmp.ne.s32.totalorder %s24, %s27
      %p33 = scmp.eq.s32.totalorder %s14, 0
      %p34 = por %p32, %p33
      %p35 = scmp.ne.s32.totalorder %s24, %s27
      %p36 = scmp.eq.s32.totalorder %s19, 1
      %p37 = por %p35, %p36
      %p38 = scmp.ne.s32.totalorder %s27, %s28
      %p39 = scmp.eq.s32.totalorder %s19, 0
      %p40 = por %p38, %p39
      %p41 = scmp.ne.s32.totalorder %s27, %s28
      %p42 = scmp.eq.s32.totalorder %s20, 1
      %p43 = por %p41, %p42
      %p45 = scmp.ne.s32.totalorder %s28, %s44
      %p46 = scmp.eq.s32.totalorder %s20, 0
      %p47 = por %p45, %p46
      %s49 = sadd.s32 %s48, 1
      %p52 = scmp.eq.s32.totalorder %s14, 1
      %p53 = scmp.ne.s32.totalorder %s48, %s50
      %p54 = scmp.eq.s32.totalorder %s14, 0
      %p55 = por %p53, %p54
      %p56 = scmp.ne.s32.totalorder %s48, %s50
      %p57 = scmp.eq.s32.totalorder %s19, 1
      %p58 = por %p56, %p57
      %p59 = scmp.ne.s32.totalorder %s50, %s51
      %p60 = scmp.eq.s32.totalorder %s19, 0
      %p61 = por %p59, %p60
      %p62 = scmp.ne.s32.totalorder %s50, %s51
      %p63 = scmp.eq.s32.totalorder %s20, 1
      %p64 = por %p62, %p63
      %p66 = scmp.ne.s32.totalorder %s51, %s65
      %p67 = scmp.eq.s32.totalorder %s20, 0
      %p68 = por %p66, %p67
      %s70 = sadd.s32 %s69, 1
      %p73 = scmp.eq.s32.totalorder %s14, 1
      %p74 = scmp.ne.s32.totalorder %s69, %s71
      %p75 = scmp.eq.s32.totalorder %s14, 0
      %p76 = por %p74, %p75
      %p77 = scmp.ne.s32.totalorder %s69, %s71
      %p78 = scmp.eq.s32.totalorder %s19, 1
      %p79 = por %p77, %p78
      %p80 = scmp.ne.s32.totalorder %s71, %s72
      %p81 = scmp.eq.s32.totalorder %s19, 0
      %p82 = por %p80, %p81
      %p83 = scmp.ne.s32.totalorder %s71, %s72
      %p84 = scmp.eq.s32.totalorder %s20, 1
      %p85 = por %p83, %p84
      %p87 = scmp.ne.s32.totalorder %s72, %s86
      %p88 = scmp.eq.s32.totalorder %s20, 0
      %p89 = por %p87, %p88
      %s91 = sadd.s32 %s90, 1
      %p94 = scmp.eq.s32.totalorder %s14, 1
      %p95 = scmp.ne.s32.totalorder %s90, %s92
      %p96 = scmp.eq.s32.totalorder %s14, 0
      %p97 = por %p95, %p96
      %p98 = scmp.ne.s32.totalorder %s90, %s92
      %p99 = scmp.eq.s32.totalorder %s19, 1
      %p100 = por %p98, %p99
      %p101 = scmp.ne.s32.totalorder %s92, %s93
      %p102 = scmp.eq.s32.totalorder %s19, 0
      %p103 = por %p101, %p102
      %p104 = scmp.ne.s32.totalorder %s92, %s93
      %p105 = scmp.eq.s32.totalorder %s20, 1
      %p106 = por %p104, %p105
      %p108 = scmp.ne.s32.totalorder %s93, %s107
      %p109 = scmp.eq.s32.totalorder %s20, 0
      %p110 = por %p108, %p109
      %s112 = sadd.s32 %s111, 1
      %p115 = scmp.eq.s32.totalorder %s14, 1
      %p116 = scmp.ne.s32.totalorder %s111, %s113
      %p117 = scmp.eq.s32.totalorder %s14, 0
      %p118 = por %p116, %p117
      %p119 = scmp.ne.s32.totalorder %s111, %s113
      %p120 = scmp.eq.s32.totalorder %s19, 1
      %p121 = por %p119, %p120
      %p122 = scmp.ne.s32.totalorder %s113, %s114
      %p123 = scmp.eq.s32.totalorder %s19, 0
      %p124 = por %p122, %p123
      %p125 = scmp.ne.s32.totalorder %s113, %s114
      %p126 = scmp.eq.s32.totalorder %s20, 1
      %p127 = por %p125, %p126
      %p129 = scmp.ne.s32.totalorder %s114, %s128
      %p130 = scmp.eq.s32.totalorder %s20, 0
      %p131 = por %p129, %p130
      %s133 = sadd.s32 %s132, 1
      %p136 = scmp.eq.s32.totalorder %s14, 1
      %p137 = scmp.ne.s32.totalorder %s132, %s134
      %p138 = scmp.eq.s32.totalorder %s14, 0
      %p139 = por %p137, %p138
      %p140 = scmp.ne.s32.totalorder %s132, %s134
      %p141 = scmp.eq.s32.totalorder %s19, 1
      %p142 = por %p140, %p141
      %p143 = scmp.ne.s32.totalorder %s134, %s135
      %p144 = scmp.eq.s32.totalorder %s19, 0
      %p145 = por %p143, %p144
      %p146 = scmp.ne.s32.totalorder %s134, %s135
      %p147 = scmp.eq.s32.totalorder %s20, 1
      %p148 = por %p146, %p147
      %p150 = scmp.ne.s32.totalorder %s135, %s149
      %p151 = scmp.eq.s32.totalorder %s20, 0
      %p152 = por %p150, %p151
      %s153 = ssub.s32 %s14, %s21
      %p154 = scmp.eq.s32.totalorder %s153, 0
      %s156 = sadd.s32 %s155, 1
      %s157 = scalar_select %p154, %s155, %s156
      %p160 = pneg %p154
      %p161 = scmp.eq.s32.totalorder %s14, 1
      %p162 = por %p160, %p161
      %p163 = scmp.ne.s32.totalorder %s155, %s158
      %p164 = scmp.eq.s32.totalorder %s14, 0
      %p165 = por %p163, %p164
      %p166 = scmp.ne.s32.totalorder %s155, %s158
      %p167 = scmp.eq.s32.totalorder %s19, 1
      %p168 = por %p166, %p167
      %p169 = scmp.ne.s32.totalorder %s158, %s159
      %p170 = scmp.eq.s32.totalorder %s19, 0
      %p171 = por %p169, %p170
      %p172 = scmp.ne.s32.totalorder %s158, %s159
      %p173 = scmp.eq.s32.totalorder %s20, 1
      %p174 = por %p172, %p173
      %p176 = scmp.ne.s32.totalorder %s159, %s175
      %p177 = scmp.eq.s32.totalorder %s20, 0
      %p178 = por %p176, %p177
      %p179 = scmp.le.s32.totalorder 1, %s14
      %p180 = scmp.lt.s32.totalorder %s14, 3
      %p181 = pnand %p179, %p180
      %p182 = pneg %p181
      // Predicated region
      $region9: #{siamese_forward.1} parent=5 // pred_check
        _
      $region10: #{siamese_forward.1} parent=5 // pred_check_branch
        %184 = sbr.rel (%p181) target = $region12
      $region11: #{siamese_forward.1} parent=5 // pred_region
        %s185 = ssub.s32 %s14, 1
        // Predicated region
        $region13: #{siamese_forward.1} parent=11 // pred_check
          %p186 = pneg %p61
        $region14: #{siamese_forward.1} parent=11 // pred_check_branch
          %188 = sbr.rel (%p186) target = $region16
        $region15: #{siamese_forward.1} parent=11 // pred_region
          _
        $region16: #{siamese_forward.1} parent=11 // pred_fallthru
          _
        // Predicated region
        $region17: #{siamese_forward.1} parent=11 // pred_check
          %p189 = pneg %p82
        $region18: #{siamese_forward.1} parent=11 // pred_check_branch
          %191 = sbr.rel (%p189) target = $region20
        $region19: #{siamese_forward.1} parent=11 // pred_region
          %s193 = ssub.s32 8192, 8192
          %194 = vsyncadd [#allocation3], %s193
          %s195 = sshll.u32 [#allocation2], 4
          %s196 = int_to_ptr.vmem [resolvable:$true] %s195
          %201 = dma.hbm_to_vmem [thread:$0]  %s2, 8192, %s196, [#allocation3], 256, 256, 16
        $region20: #{siamese_forward.1} parent=11 // pred_fallthru
          _
        // Predicated region
        $region21: #{siamese_forward.1} parent=11 // pred_check
          %p202 = pneg %p103
        $region22: #{siamese_forward.1} parent=11 // pred_check_branch
          %204 = sbr.rel (%p202) target = $region24
        $region23: #{siamese_forward.1} parent=11 // pred_region
          %s206 = ssub.s32 8192, 8192
          %207 = vsyncadd [#allocation5], %s206
          %s208 = sshll.u32 [#allocation4], 4
          %s209 = int_to_ptr.vmem [resolvable:$true] %s208
          %214 = dma.hbm_to_vmem [thread:$0]  %s3, 8192, %s209, [#allocation5], 64, 64, 4
        $region24: #{siamese_forward.1} parent=11 // pred_fallthru
          _
        // Predicated region
        $region25: #{siamese_forward.1} parent=11 // pred_check
          %p215 = pneg %p124
        $region26: #{siamese_forward.1} parent=11 // pred_check_branch
          %217 = sbr.rel (%p215) target = $region28
        $region27: #{siamese_forward.1} parent=11 // pred_region
          _
        $region28: #{siamese_forward.1} parent=11 // pred_fallthru
          _
        // Predicated region
        $region29: #{siamese_forward.1} parent=11 // pred_check
          %p218 = pneg %p145
        $region30: #{siamese_forward.1} parent=11 // pred_check_branch
          %220 = sbr.rel (%p218) target = $region32
        $region31: #{siamese_forward.1} parent=11 // pred_region
          _
        $region32: #{siamese_forward.1} parent=11 // pred_fallthru
          _
      $region12: #{siamese_forward.1} parent=5 // pred_fallthru
        _
      %p221 = scmp.lt.s32.totalorder %s14, 2
      // Predicated region
      $region33: #{siamese_forward.1} parent=5 // pred_check
        %p222 = pneg %p221
      $region34: #{siamese_forward.1} parent=5 // pred_check_branch
        %224 = sbr.rel (%p222) target = $region36
      $region35: #{siamese_forward.1} parent=5 // pred_region
        // Predicated region
        $region37: #{siamese_forward.1} parent=35 // pred_check
          %p225 = pneg %p34
        $region38: #{siamese_forward.1} parent=35 // pred_check_branch
          %227 = sbr.rel (%p225) target = $region40
        $region39: #{siamese_forward.1} parent=35 // pred_region
          %s228 = smul.u32 16, %s14
          %p229 = scmp.lt.s32.totalorder %s228, 31
          %s230 = scalar_select %p229, %s228, 31
          %s231 = smul.addr %s230, 4
          %s232 = scalar_lea.vmem %s0, %s231
          %s233 = smul.u32 16, %s14
        $region40: #{siamese_forward.1} parent=35 // pred_fallthru
          _
      $region36: #{siamese_forward.1} parent=5 // pred_fallthru
        _
      %p234 = scmp.le.s32.totalorder 1, %s14
      %p235 = scmp.lt.s32.totalorder %s14, 3
      %p236 = pnand %p234, %p235
      %p237 = pneg %p236
      // Predicated region
      $region41: #{siamese_forward.1} parent=5 // pred_check
        _
      $region42: #{siamese_forward.1} parent=5 // pred_check_branch
        %239 = sbr.rel (%p236) target = $region44
      $region43: #{siamese_forward.1} parent=5 // pred_region
        %s240 = ssub.s32 %s14, 1
        // Predicated region
        $region45: #{siamese_forward.1} parent=43 // pred_check
          %p241 = pneg %p82
        $region46: #{siamese_forward.1} parent=43 // pred_check_branch
          %243 = sbr.rel (%p241) target = $region48
        $region47: #{siamese_forward.1} parent=43 // pred_region
          %244 = dma.done [#allocation3], 8192
        $region48: #{siamese_forward.1} parent=43 // pred_fallthru
          _
        // Predicated region
        $region49: #{siamese_forward.1} parent=43 // pred_check
          %p245 = pneg %p103
        $region50: #{siamese_forward.1} parent=43 // pred_check_branch
          %247 = sbr.rel (%p245) target = $region52
        $region51: #{siamese_forward.1} parent=43 // pred_region
          %248 = dma.done [#allocation5], 8192
        $region52: #{siamese_forward.1} parent=43 // pred_fallthru
          _
        %s249 = smul.u32 16, %s19
        %p250 = scmp.lt.s32.totalorder %s249, 31
        %s251 = scalar_select %p250, %s249, 31
        %s252 = smul.addr %s251, 4
        %s253 = scalar_lea.vmem %s0, %s252
        %p254 = pneg %p40
        %p255 = pneg %p37
        %p256 = pneg %p61
        %p257 = pneg %p58
        %p258 = pneg %p82
        %p259 = pneg %p79
        %p260 = pneg %p103
        %p261 = pneg %p100
        %p262 = pneg %p124
        %p263 = pneg %p121
        %p264 = pneg %p145
        %p265 = pneg %p142
        %p266 = pneg %p171
        %p267 = pneg %p168
        %s268 = smul.u32 16, %s19
        %p269 = scmp.lt.s32.totalorder %s268, 31
        %s270 = scalar_select %p269, %s268, 31
        %s271 = smul.addr %s270, 8
        %s272 = scalar_lea.vmem %s6, %s271
        %s273 = smul.u32 16, %s19
        %p274 = scmp.lt.s32.totalorder %s273, 31
        %s275 = scalar_select %p274, %s273, 31
        %s276 = smul.addr %s275, 4
        %s277 = scalar_lea.vmem %s0, %s276
        %s278 = smul.u32 16, %s19
        %s279 = smul.u32 16, %s19
        %p280 = scmp.lt.s32.totalorder %s279, 31
        %s281 = scalar_select %p280, %s279, 31
        %s282 = smul.addr %s281, 8
        %s283 = scalar_lea.vmem %s6, %s282
        %s284 = smul.u32 16, %s19
        %v286 = vld [vmem:[%s277] sm:$0xf]
        %v287 = vld [vmem:[%s277 + $0x4] sm:$0xf]
        %v288 = vld [vmem:[%s277 + $0x8] sm:$0xf]
        %v289 = vld [vmem:[%s277 + $0xc] sm:$0xf]
        %v290 = vld [vmem:[%s277 + $0x10] sm:$0xf]
        %v291 = vld [vmem:[%s277 + $0x14] sm:$0xf]
        %v292 = vld [vmem:[%s277 + $0x18] sm:$0xf]
        %v293 = vld [vmem:[%s277 + $0x1c] sm:$0xf]
        %v294 = vld [vmem:[%s277 + $0x20] sm:$0xf]
        %v295 = vld [vmem:[%s277 + $0x24] sm:$0xf]
        %v296 = vld [vmem:[%s277 + $0x28] sm:$0xf]
        %v297 = vld [vmem:[%s277 + $0x2c] sm:$0xf]
        %v298 = vld [vmem:[%s277 + $0x30] sm:$0xf]
        %v299 = vld [vmem:[%s277 + $0x34] sm:$0xf]
        %v300 = vld [vmem:[%s277 + $0x38] sm:$0xf]
        %v301 = vld [vmem:[%s277 + $0x3c] sm:$0xf]
        %v302 = vld [vmem:[%s1] sm:$0xf]
        %v303 = vld [vmem:[%s1 + $0x4] sm:$0xf]
        %v304 = vld [vmem:[%s1 + $0x8] sm:$0xf]
        %v305 = vld [vmem:[%s1 + $0xc] sm:$0xf]
        %v306 = vld [vmem:[%s1 + $0x10] sm:$0xf]
        %v307 = vld [vmem:[%s1 + $0x14] sm:$0xf]
        %v308 = vld [vmem:[%s1 + $0x18] sm:$0xf]
        %v309 = vld [vmem:[%s1 + $0x1c] sm:$0xf]
        %v310 = vld [vmem:[%s1 + $0x20] sm:$0xf]
        %v311 = vld [vmem:[%s1 + $0x24] sm:$0xf]
        %v312 = vld [vmem:[%s1 + $0x28] sm:$0xf]
        %v313 = vld [vmem:[%s1 + $0x2c] sm:$0xf]
        %v314 = vld [vmem:[%s1 + $0x30] sm:$0xf]
        %v315 = vld [vmem:[%s1 + $0x34] sm:$0xf]
        %v316 = vld [vmem:[%s1 + $0x38] sm:$0xf]
        %v317 = vld [vmem:[%s1 + $0x3c] sm:$0xf]
        %v318 = vld [vmem:[%s4] sm:$0x1]
        %v319 = vlaneseq
        %v320 = vshrl.u32 %v319, 7
        %v321 = vsub.s32 0, %v320
        %v322 = vrot.slane %v318, %v321
        %v339 = vunpack.c.l.b16 %v286
        %v340 = vunpack.c.l.b16 %v287
        %v341 = vunpack.c.l.b16 %v288
        %v342 = vunpack.c.l.b16 %v289
        %v343 = vunpack.c.l.b16 %v290
        %v344 = vunpack.c.l.b16 %v291
        %v345 = vunpack.c.l.b16 %v292
        %v346 = vunpack.c.l.b16 %v293
        %v347 = vunpack.c.l.b16 %v294
        %v348 = vunpack.c.l.b16 %v295
        %v349 = vunpack.c.l.b16 %v296
        %v350 = vunpack.c.l.b16 %v297
        %v351 = vunpack.c.l.b16 %v298
        %v352 = vunpack.c.l.b16 %v299
        %v353 = vunpack.c.l.b16 %v300
        %v354 = vunpack.c.l.b16 %v301
        %v355 = vpack.c.b16 %v340, %v339
        %v356 = vpack.c.b16 %v342, %v341
        %v357 = vpack.c.b16 %v344, %v343
        %v358 = vpack.c.b16 %v346, %v345
        %v359 = vpack.c.b16 %v348, %v347
        %v360 = vpack.c.b16 %v350, %v349
        %v361 = vpack.c.b16 %v352, %v351
        %v362 = vpack.c.b16 %v354, %v353
        %v387 = vunpack.c.l.b16 %v302
        %v388 = vunpack.c.l.b16 %v303
        %v389 = vunpack.c.l.b16 %v304
        %v390 = vunpack.c.l.b16 %v305
        %v391 = vunpack.c.l.b16 %v306
        %v392 = vunpack.c.l.b16 %v307
        %v393 = vunpack.c.l.b16 %v308
        %v394 = vunpack.c.l.b16 %v309
        %v395 = vunpack.c.l.b16 %v310
        %v396 = vunpack.c.l.b16 %v311
        %v397 = vunpack.c.l.b16 %v312
        %v398 = vunpack.c.l.b16 %v313
        %v399 = vunpack.c.l.b16 %v314
        %v400 = vunpack.c.l.b16 %v315
        %v401 = vunpack.c.l.b16 %v316
        %v402 = vunpack.c.l.b16 %v317
        %v403 = vpack.c.b16 %v388, %v387
        %v404 = vpack.c.b16 %v390, %v389
        %v405 = vpack.c.b16 %v392, %v391
        %v406 = vpack.c.b16 %v394, %v393
        %v407 = vpack.c.b16 %v396, %v395
        %v408 = vpack.c.b16 %v398, %v397
        %v409 = vpack.c.b16 %v400, %v399
        %v410 = vpack.c.b16 %v402, %v401
        %419 = vmatprep.subr.bf16.mxu0 0
        %420 = vmatpush1.bf16.msra.mxu0 %v403
        %421 = vmatprep.subr.bf16.mxu0 0
        %422 = vmatpush1.bf16.msra.mxu0 %v404
        %423 = vmatprep.subr.bf16.mxu0 0
        %424 = vmatpush1.bf16.msra.mxu0 %v405
        %425 = vmatprep.subr.bf16.mxu0 0
        %426 = vmatpush1.bf16.msra.mxu0 %v406
        %427 = vmatprep.subr.bf16.mxu0 0
        %428 = vmatpush1.bf16.msra.mxu0 %v407
        %429 = vmatprep.subr.bf16.mxu0 0
        %430 = vmatpush1.bf16.msra.mxu0 %v408
        %431 = vmatprep.subr.bf16.mxu0 0
        %432 = vmatpush1.bf16.msra.mxu0 %v409
        %433 = vmatprep.subr.bf16.mxu0 0
        %434 = vmatpush1.bf16.msra.mxu0 %v410
        %435 = vmatprep.subr.bf16.mxu0 0
        %436 = vmatpush1.bf16.msra.mxu0 0
        %437 = vmatprep.subr.bf16.mxu0 0
        %438 = vmatpush1.bf16.msra.mxu0 0
        %439 = vmatprep.subr.bf16.mxu0 0
        %440 = vmatpush1.bf16.msra.mxu0 0
        %441 = vmatprep.subr.bf16.mxu0 0
        %442 = vmatpush1.bf16.msra.mxu0 0
        %443 = vmatprep.subr.bf16.mxu0 0
        %444 = vmatpush1.bf16.msra.mxu0 0
        %445 = vmatprep.subr.bf16.mxu0 0
        %446 = vmatpush1.bf16.msra.mxu0 0
        %447 = vmatprep.subr.bf16.mxu0 0
        %448 = vmatpush1.bf16.msra.mxu0 0
        %449 = vmatprep.subr.bf16.mxu0 0
        %450 = vmatpush1.bf16.msra.mxu0 0
        %451 = vmatprep.mubr.bf16.mxu0 0
        %452 = vmatmul.mubr.bf16.gmra.mrb[0].mxu0 %v355
        %v453 = vpop.f32.mrb[0].mxu0
        %v454 = vadd.f32 %v322, %v453
        %v455 = vpop.f32.mrb[0].mxu0
        %v456 = vpop.f32.mrb[0].mxu0
        %v457 = vadd.f32 %v322, %v456
        %v458 = vpop.f32.mrb[0].mxu0
        %459 = vmatprep.mubr.bf16.mxu0 0
        %460 = vmatmul.mubr.bf16.gmra.mrb[0].mxu0 %v356
        %v461 = vpop.f32.mrb[0].mxu0
        %v462 = vadd.f32 %v322, %v461
        %v463 = vpop.f32.mrb[0].mxu0
        %v464 = vpop.f32.mrb[0].mxu0
        %v465 = vadd.f32 %v322, %v464
        %v466 = vpop.f32.mrb[0].mxu0
        %467 = vmatprep.mubr.bf16.mxu0 0
        %468 = vmatmul.mubr.bf16.gmra.mrb[0].mxu0 %v357
        %v469 = vpop.f32.mrb[0].mxu0
        %v470 = vadd.f32 %v322, %v469
        %v471 = vpop.f32.mrb[0].mxu0
        %v472 = vpop.f32.mrb[0].mxu0
        %v473 = vadd.f32 %v322, %v472
        %v474 = vpop.f32.mrb[0].mxu0
        %475 = vmatprep.mubr.bf16.mxu0 0
        %476 = vmatmul.mubr.bf16.gmra.mrb[0].mxu0 %v358
        %v477 = vpop.f32.mrb[0].mxu0
        %v478 = vadd.f32 %v322, %v477
        %v479 = vpop.f32.mrb[0].mxu0
        %v480 = vpop.f32.mrb[0].mxu0
        %v481 = vadd.f32 %v322, %v480
        %v482 = vpop.f32.mrb[0].mxu0
        %483 = vmatprep.mubr.bf16.mxu0 0
        %484 = vmatmul.mubr.bf16.gmra.mrb[0].mxu0 %v359
        %v485 = vpop.f32.mrb[0].mxu0
        %v486 = vadd.f32 %v322, %v485
        %v487 = vpop.f32.mrb[0].mxu0
        %v488 = vpop.f32.mrb[0].mxu0
        %v489 = vadd.f32 %v322, %v488
        %v490 = vpop.f32.mrb[0].mxu0
        %491 = vmatprep.mubr.bf16.mxu0 0
        %492 = vmatmul.mubr.bf16.gmra.mrb[0].mxu0 %v360
        %v493 = vpop.f32.mrb[0].mxu0
        %v494 = vadd.f32 %v322, %v493
        %v495 = vpop.f32.mrb[0].mxu0
        %v496 = vpop.f32.mrb[0].mxu0
        %v497 = vadd.f32 %v322, %v496
        %v498 = vpop.f32.mrb[0].mxu0
        %499 = vmatprep.mubr.bf16.mxu0 0
        %500 = vmatmul.mubr.bf16.gmra.mrb[0].mxu0 %v361
        %v501 = vpop.f32.mrb[0].mxu0
        %v502 = vadd.f32 %v322, %v501
        %v503 = vpop.f32.mrb[0].mxu0
        %v504 = vpop.f32.mrb[0].mxu0
        %v505 = vadd.f32 %v322, %v504
        %v506 = vpop.f32.mrb[0].mxu0
        %507 = vmatprep.mubr.bf16.mxu0 0
        %508 = vmatmul.mubr.bf16.gmra.mrb[0].mxu0 %v362
        %v509 = vpop.f32.mrb[0].mxu0
        %v510 = vadd.f32 %v322, %v509
        %v511 = vpop.f32.mrb[0].mxu0
        %v512 = vpop.f32.mrb[0].mxu0
        %v513 = vadd.f32 %v322, %v512
        %v514 = vpop.f32.mrb[0].mxu0
        %515 = vdwg.mxu0
        %v516 = vld [vmem:[%s4 + $0x2] sm:$0x1]
        %v517 = vld [vmem:[%s4 + $0x3] sm:$0x1]
        %518 = vadd.xlane.f32.xlu0 %v454
        %v519 = vpop.xlane.xlu0 %518
        %520 = vadd.xlane.f32.xlu0 %v457
        %v521 = vpop.xlane.xlu0 %520
        %522 = vadd.xlane.f32.xlu0 %v462
        %v523 = vpop.xlane.xlu0 %522
        %524 = vadd.xlane.f32.xlu0 %v465
        %v525 = vpop.xlane.xlu0 %524
        %526 = vadd.xlane.f32.xlu0 %v470
        %v527 = vpop.xlane.xlu0 %526
        %528 = vadd.xlane.f32.xlu0 %v473
        %v529 = vpop.xlane.xlu0 %528
        %530 = vadd.xlane.f32.xlu0 %v478
        %v531 = vpop.xlane.xlu0 %530
        %532 = vadd.xlane.f32.xlu0 %v481
        %v533 = vpop.xlane.xlu0 %532
        %534 = vadd.xlane.f32.xlu0 %v486
        %v535 = vpop.xlane.xlu0 %534
        %536 = vadd.xlane.f32.xlu0 %v489
        %v537 = vpop.xlane.xlu0 %536
        %538 = vadd.xlane.f32.xlu0 %v494
        %v539 = vpop.xlane.xlu0 %538
        %540 = vadd.xlane.f32.xlu0 %v497
        %v541 = vpop.xlane.xlu0 %540
        %542 = vadd.xlane.f32.xlu0 %v502
        %v543 = vpop.xlane.xlu0 %542
        %544 = vadd.xlane.f32.xlu0 %v505
        %v545 = vpop.xlane.xlu0 %544
        %546 = vadd.xlane.f32.xlu0 %v510
        %v547 = vpop.xlane.xlu0 %546
        %548 = vadd.xlane.f32.xlu0 %v513
        %v549 = vpop.xlane.xlu0 %548
        %v550 = vrcp.pop 128.0
        %v551 = vmul.f32 %v519, %v550
        %v552 = vmul.f32 %v521, %v550
        %v553 = vmul.f32 %v523, %v550
        %v554 = vmul.f32 %v525, %v550
        %v555 = vmul.f32 %v527, %v550
        %v556 = vmul.f32 %v529, %v550
        %v557 = vmul.f32 %v531, %v550
        %v558 = vmul.f32 %v533, %v550
        %v559 = vmul.f32 %v535, %v550
        %v560 = vmul.f32 %v537, %v550
        %v561 = vmul.f32 %v539, %v550
        %v562 = vmul.f32 %v541, %v550
        %v563 = vmul.f32 %v543, %v550
        %v564 = vmul.f32 %v545, %v550
        %v565 = vmul.f32 %v547, %v550
        %v566 = vmul.f32 %v549, %v550
        %v567 = vsub.f32 %v454, %v551
        %v568 = vsub.f32 %v457, %v552
        %v569 = vsub.f32 %v462, %v553
        %v570 = vsub.f32 %v465, %v554
        %v571 = vsub.f32 %v470, %v555
        %v572 = vsub.f32 %v473, %v556
        %v573 = vsub.f32 %v478, %v557
        %v574 = vsub.f32 %v481, %v558
        %v575 = vsub.f32 %v486, %v559
        %v576 = vsub.f32 %v489, %v560
        %v577 = vsub.f32 %v494, %v561
        %v578 = vsub.f32 %v497, %v562
        %v579 = vsub.f32 %v502, %v563
        %v580 = vsub.f32 %v505, %v564
        %v581 = vsub.f32 %v510, %v565
        %v582 = vsub.f32 %v513, %v566
        %v583 = vmul.f32 %v567, %v567
        %v584 = vmul.f32 %v568, %v568
        %v585 = vmul.f32 %v569, %v569
        %v586 = vmul.f32 %v570, %v570
        %v587 = vmul.f32 %v571, %v571
        %v588 = vmul.f32 %v572, %v572
        %v589 = vmul.f32 %v573, %v573
        %v590 = vmul.f32 %v574, %v574
        %v591 = vmul.f32 %v575, %v575
        %v592 = vmul.f32 %v576, %v576
        %v593 = vmul.f32 %v577, %v577
        %v594 = vmul.f32 %v578, %v578
        %v595 = vmul.f32 %v579, %v579
        %v596 = vmul.f32 %v580, %v580
        %v597 = vmul.f32 %v581, %v581
        %v598 = vmul.f32 %v582, %v582
        %599 = vadd.xlane.f32.xlu0 %v583
        %v600 = vpop.xlane.xlu0 %599
        %601 = vadd.xlane.f32.xlu0 %v584
        %v602 = vpop.xlane.xlu0 %601
        %603 = vadd.xlane.f32.xlu0 %v585
        %v604 = vpop.xlane.xlu0 %603
        %605 = vadd.xlane.f32.xlu0 %v586
        %v606 = vpop.xlane.xlu0 %605
        %607 = vadd.xlane.f32.xlu0 %v587
        %v608 = vpop.xlane.xlu0 %607
        %609 = vadd.xlane.f32.xlu0 %v588
        %v610 = vpop.xlane.xlu0 %609
        %611 = vadd.xlane.f32.xlu0 %v589
        %v612 = vpop.xlane.xlu0 %611
        %613 = vadd.xlane.f32.xlu0 %v590
        %v614 = vpop.xlane.xlu0 %613
        %615 = vadd.xlane.f32.xlu0 %v591
        %v616 = vpop.xlane.xlu0 %615
        %617 = vadd.xlane.f32.xlu0 %v592
        %v618 = vpop.xlane.xlu0 %617
        %619 = vadd.xlane.f32.xlu0 %v593
        %v620 = vpop.xlane.xlu0 %619
        %621 = vadd.xlane.f32.xlu0 %v594
        %v622 = vpop.xlane.xlu0 %621
        %623 = vadd.xlane.f32.xlu0 %v595
        %v624 = vpop.xlane.xlu0 %623
        %625 = vadd.xlane.f32.xlu0 %v596
        %v626 = vpop.xlane.xlu0 %625
        %627 = vadd.xlane.f32.xlu0 %v597
        %v628 = vpop.xlane.xlu0 %627
        %629 = vadd.xlane.f32.xlu0 %v598
        %v630 = vpop.xlane.xlu0 %629
        %v631 = vmul.f32 %v600, %v550
        %v632 = vmul.f32 %v602, %v550
        %v633 = vmul.f32 %v604, %v550
        %v634 = vmul.f32 %v606, %v550
        %v635 = vmul.f32 %v608, %v550
        %v636 = vmul.f32 %v610, %v550
        %v637 = vmul.f32 %v612, %v550
        %v638 = vmul.f32 %v614, %v550
        %v639 = vmul.f32 %v616, %v550
        %v640 = vmul.f32 %v618, %v550
        %v641 = vmul.f32 %v620, %v550
        %v642 = vmul.f32 %v622, %v550
        %v643 = vmul.f32 %v624, %v550
        %v644 = vmul.f32 %v626, %v550
        %v645 = vmul.f32 %v628, %v550
        %v646 = vmul.f32 %v630, %v550
        %v647 = vadd.f32 %v631, 1e-05
        %v648 = vadd.f32 %v632, 1e-05
        %v649 = vadd.f32 %v633, 1e-05
        %v650 = vadd.f32 %v634, 1e-05
        %v651 = vadd.f32 %v635, 1e-05
        %v652 = vadd.f32 %v636, 1e-05
        %v653 = vadd.f32 %v637, 1e-05
        %v654 = vadd.f32 %v638, 1e-05
        %v655 = vadd.f32 %v639, 1e-05
        %v656 = vadd.f32 %v640, 1e-05
        %v657 = vadd.f32 %v641, 1e-05
        %v658 = vadd.f32 %v642, 1e-05
        %v659 = vadd.f32 %v643, 1e-05
        %v660 = vadd.f32 %v644, 1e-05
        %v661 = vadd.f32 %v645, 1e-05
        %v662 = vadd.f32 %v646, 1e-05
        %v663 = vrsqrt.pop %v647
        %v664 = vrsqrt.pop %v648
        %v665 = vrsqrt.pop %v649
        %v666 = vrsqrt.pop %v650
        %v667 = vrsqrt.pop %v651
        %v668 = vrsqrt.pop %v652
        %v669 = vrsqrt.pop %v653
        %v670 = vrsqrt.pop %v654
        %v671 = vrsqrt.pop %v655
        %v672 = vrsqrt.pop %v656
        %v673 = vrsqrt.pop %v657
        %v674 = vrsqrt.pop %v658
        %v675 = vrsqrt.pop %v659
        %v676 = vrsqrt.pop %v660
        %v677 = vrsqrt.pop %v661
        %v678 = vrsqrt.pop %v662
        %v679 = vmul.f32 %v567, %v663
        %v680 = vmul.f32 %v568, %v664
        %v681 = vmul.f32 %v569, %v665
        %v682 = vmul.f32 %v570, %v666
        %v683 = vmul.f32 %v571, %v667
        %v684 = vmul.f32 %v572, %v668
        %v685 = vmul.f32 %v573, %v669
        %v686 = vmul.f32 %v574, %v670
        %v687 = vmul.f32 %v575, %v671
        %v688 = vmul.f32 %v576, %v672
        %v689 = vmul.f32 %v577, %v673
        %v690 = vmul.f32 %v578, %v674
        %v691 = vmul.f32 %v579, %v675
        %v692 = vmul.f32 %v580, %v676
        %v693 = vmul.f32 %v581, %v677
        %v694 = vmul.f32 %v582, %v678
        %v695 = vlaneseq
        %v696 = vshrl.u32 %v695, 7
        %v697 = vsub.s32 0, %v696
        %v698 = vrot.slane %v516, %v697
        %v699 = vmul.f32 %v679, %v698
        %v700 = vmul.f32 %v680, %v698
        %v701 = vmul.f32 %v681, %v698
        %v702 = vmul.f32 %v682, %v698
        %v703 = vmul.f32 %v683, %v698
        %v704 = vmul.f32 %v684, %v698
        %v705 = vmul.f32 %v685, %v698
        %v706 = vmul.f32 %v686, %v698
        %v707 = vmul.f32 %v687, %v698
        %v708 = vmul.f32 %v688, %v698
        %v709 = vmul.f32 %v689, %v698
        %v710 = vmul.f32 %v690, %v698
        %v711 = vmul.f32 %v691, %v698
        %v712 = vmul.f32 %v692, %v698
        %v713 = vmul.f32 %v693, %v698
        %v714 = vmul.f32 %v694, %v698
        %v715 = vlaneseq
        %v716 = vshrl.u32 %v715, 7
        %v717 = vsub.s32 0, %v716
        %v718 = vrot.slane %v517, %v717
        %v719 = vadd.f32 %v699, %v718
        %v720 = vadd.f32 %v700, %v718
        %v721 = vadd.f32 %v701, %v718
        %v722 = vadd.f32 %v702, %v718
        %v723 = vadd.f32 %v703, %v718
        %v724 = vadd.f32 %v704, %v718
        %v725 = vadd.f32 %v705, %v718
        %v726 = vadd.f32 %v706, %v718
        %v727 = vadd.f32 %v707, %v718
        %v728 = vadd.f32 %v708, %v718
        %v729 = vadd.f32 %v709, %v718
        %v730 = vadd.f32 %v710, %v718
        %v731 = vadd.f32 %v711, %v718
        %v732 = vadd.f32 %v712, %v718
        %v733 = vadd.f32 %v713, %v718
        %v734 = vadd.f32 %v714, %v718
        %v735 = vpack.c.bf16 %v720, %v719
        %v736 = vpack.c.bf16 %v722, %v721
        %v737 = vpack.c.bf16 %v724, %v723
        %v738 = vpack.c.bf16 %v726, %v725
        %v739 = vpack.c.bf16 %v728, %v727
        %v740 = vpack.c.bf16 %v730, %v729
        %v741 = vpack.c.bf16 %v732, %v731
        %v742 = vpack.c.bf16 %v734, %v733
        %v743 = vld [vmem:[#allocation2] sm:$0xff]
        %v744 = vld [vmem:[#allocation2 + $0x8] sm:$0xff]
        %v745 = vld [vmem:[#allocation2 + $0x10] sm:$0xff]
        %v746 = vld [vmem:[#allocation2 + $0x18] sm:$0xff]
        %v747 = vld [vmem:[#allocation2 + $0x20] sm:$0xff]
        %v748 = vld [vmem:[#allocation2 + $0x28] sm:$0xff]
        %v749 = vld [vmem:[#allocation2 + $0x30] sm:$0xff]
        %v750 = vld [vmem:[#allocation2 + $0x38] sm:$0xff]
        %v751 = vld [vmem:[#allocation2 + $0x40] sm:$0xff]
        %v752 = vld [vmem:[#allocation2 + $0x48] sm:$0xff]
        %v753 = vld [vmem:[#allocation2 + $0x50] sm:$0xff]
        %v754 = vld [vmem:[#allocation2 + $0x58] sm:$0xff]
        %v755 = vld [vmem:[#allocation2 + $0x60] sm:$0xff]
        %v756 = vld [vmem:[#allocation2 + $0x68] sm:$0xff]
        %v757 = vld [vmem:[#allocation2 + $0x70] sm:$0xff]
        %v758 = vld [vmem:[#allocation2 + $0x78] sm:$0xff]
        %v759 = vld [vmem:[#allocation2 + $0x80] sm:$0xff]
        %v760 = vld [vmem:[#allocation2 + $0x88] sm:$0xff]
        %v761 = vld [vmem:[#allocation2 + $0x90] sm:$0xff]
        %v762 = vld [vmem:[#allocation2 + $0x98] sm:$0xff]
        %v763 = vld [vmem:[#allocation2 + $0xa0] sm:$0xff]
        %v764 = vld [vmem:[#allocation2 + $0xa8] sm:$0xff]
        %v765 = vld [vmem:[#allocation2 + $0xb0] sm:$0xff]
        %v766 = vld [vmem:[#allocation2 + $0xb8] sm:$0xff]
        %v767 = vld [vmem:[#allocation2 + $0xc0] sm:$0xff]
        %v768 = vld [vmem:[#allocation2 + $0xc8] sm:$0xff]
        %v769 = vld [vmem:[#allocation2 + $0xd0] sm:$0xff]
        %v770 = vld [vmem:[#allocation2 + $0xd8] sm:$0xff]
        %v771 = vld [vmem:[#allocation2 + $0xe0] sm:$0xff]
        %v772 = vld [vmem:[#allocation2 + $0xe8] sm:$0xff]
        %v773 = vld [vmem:[#allocation2 + $0xf0] sm:$0xff]
        %v774 = vld [vmem:[#allocation2 + $0xf8] sm:$0xff]
        %v775 = vld [vmem:[%s5] ss:$2 sm:$0xf]
        %v777 = vlaneseq
        %v778 = vshrl.u32 %v777, 7
        %v779 = vsub.s32 0, %v778
        %v780 = vrot.slane %v775, %v779
        %v781 = vlaneseq
        %v782 = vshrl.u32 %v781, 7
        %v783 = vsub.s32 1, %v782
        %v784 = vrot.slane %v775, %v783
        %v785 = vlaneseq
        %v786 = vshrl.u32 %v785, 7
        %v787 = vsub.s32 2, %v786
        %v788 = vrot.slane %v775, %v787
        %v789 = vlaneseq
        %v790 = vshrl.u32 %v789, 7
        %v791 = vsub.s32 3, %v790
        %v792 = vrot.slane %v775, %v791
        %v829 = vunpack.c.l.b16 %v743
        %v830 = vunpack.c.h.b16 %v743
        %v831 = vunpack.c.l.b16 %v744
        %v832 = vunpack.c.h.b16 %v744
        %v833 = vunpack.c.l.b16 %v745
        %v834 = vunpack.c.h.b16 %v745
        %v835 = vunpack.c.l.b16 %v746
        %v836 = vunpack.c.h.b16 %v746
        %v837 = vunpack.c.l.b16 %v747
        %v838 = vunpack.c.h.b16 %v747
        %v839 = vunpack.c.l.b16 %v748
        %v840 = vunpack.c.h.b16 %v748
        %v841 = vunpack.c.l.b16 %v749
        %v842 = vunpack.c.h.b16 %v749
        %v843 = vunpack.c.l.b16 %v750
        %v844 = vunpack.c.h.b16 %v750
        %v845 = vunpack.c.l.b16 %v751
        %v846 = vunpack.c.h.b16 %v751
        %v847 = vunpack.c.l.b16 %v752
        %v848 = vunpack.c.h.b16 %v752
        %v849 = vunpack.c.l.b16 %v753
        %v850 = vunpack.c.h.b16 %v753
        %v851 = vunpack.c.l.b16 %v754
        %v852 = vunpack.c.h.b16 %v754
        %v853 = vunpack.c.l.b16 %v755
        %v854 = vunpack.c.h.b16 %v755
        %v855 = vunpack.c.l.b16 %v756
        %v856 = vunpack.c.h.b16 %v756
        %v857 = vunpack.c.l.b16 %v757
        %v858 = vunpack.c.h.b16 %v757
        %v859 = vunpack.c.l.b16 %v758
        %v860 = vunpack.c.h.b16 %v758
        %v861 = vunpack.c.l.b16 %v759
        %v862 = vunpack.c.h.b16 %v759
        %v863 = vunpack.c.l.b16 %v760
        %v864 = vunpack.c.h.b16 %v760
        %v865 = vunpack.c.l.b16 %v761
        %v866 = vunpack.c.h.b16 %v761
        %v867 = vunpack.c.l.b16 %v762
        %v868 = vunpack.c.h.b16 %v762
        %v869 = vunpack.c.l.b16 %v763
        %v870 = vunpack.c.h.b16 %v763
        %v871 = vunpack.c.l.b16 %v764
        %v872 = vunpack.c.h.b16 %v764
        %v873 = vunpack.c.l.b16 %v765
        %v874 = vunpack.c.h.b16 %v765
        %v875 = vunpack.c.l.b16 %v766
        %v876 = vunpack.c.h.b16 %v766
        %v877 = vunpack.c.l.b16 %v767
        %v878 = vunpack.c.h.b16 %v767
        %v879 = vunpack.c.l.b16 %v768
        %v880 = vunpack.c.h.b16 %v768
        %v881 = vunpack.c.l.b16 %v769
        %v882 = vunpack.c.h.b16 %v769
        %v883 = vunpack.c.l.b16 %v770
        %v884 = vunpack.c.h.b16 %v770
        %v885 = vunpack.c.l.b16 %v771
        %v886 = vunpack.c.h.b16 %v771
        %v887 = vunpack.c.l.b16 %v772
        %v888 = vunpack.c.h.b16 %v772
        %v889 = vunpack.c.l.b16 %v773
        %v890 = vunpack.c.h.b16 %v773
        %v891 = vunpack.c.l.b16 %v774
        %v892 = vunpack.c.h.b16 %v774
        %v893 = vpack.c.b16 %v833, %v829
        %v894 = vpack.c.b16 %v834, %v830
        %v895 = vpack.c.b16 %v835, %v831
        %v896 = vpack.c.b16 %v836, %v832
        %v897 = vpack.c.b16 %v841, %v837
        %v898 = vpack.c.b16 %v842, %v838
        %v899 = vpack.c.b16 %v843, %v839
        %v900 = vpack.c.b16 %v844, %v840
        %v901 = vpack.c.b16 %v849, %v845
        %v902 = vpack.c.b16 %v850, %v846
        %v903 = vpack.c.b16 %v851, %v847
        %v904 = vpack.c.b16 %v852, %v848
        %v905 = vpack.c.b16 %v857, %v853
        %v906 = vpack.c.b16 %v858, %v854
        %v907 = vpack.c.b16 %v859, %v855
        %v908 = vpack.c.b16 %v860, %v856
        %v909 = vpack.c.b16 %v865, %v861
        %v910 = vpack.c.b16 %v866, %v862
        %v911 = vpack.c.b16 %v867, %v863
        %v912 = vpack.c.b16 %v868, %v864
        %v913 = vpack.c.b16 %v873, %v869
        %v914 = vpack.c.b16 %v874, %v870
        %v915 = vpack.c.b16 %v875, %v871
        %v916 = vpack.c.b16 %v876, %v872
        %v917 = vpack.c.b16 %v881, %v877
        %v918 = vpack.c.b16 %v882, %v878
        %v919 = vpack.c.b16 %v883, %v879
        %v920 = vpack.c.b16 %v884, %v880
        %v921 = vpack.c.b16 %v889, %v885
        %v922 = vpack.c.b16 %v890, %v886
        %v923 = vpack.c.b16 %v891, %v887
        %v924 = vpack.c.b16 %v892, %v888
        %957 = vmatprep.subr.bf16.mxu0 %v894
        %958 = vmatpush1.bf16.msra.mxu0 %v893
        %959 = vmatprep.subr.bf16.mxu0 %v898
        %960 = vmatpush1.bf16.msra.mxu0 %v897
        %961 = vmatprep.subr.bf16.mxu0 %v902
        %962 = vmatpush1.bf16.msra.mxu0 %v901
        %963 = vmatprep.subr.bf16.mxu0 %v906
        %964 = vmatpush1.bf16.msra.mxu0 %v905
        %965 = vmatprep.subr.bf16.mxu0 %v910
        %966 = vmatpush1.bf16.msra.mxu0 %v909
        %967 = vmatprep.subr.bf16.mxu0 %v914
        %968 = vmatpush1.bf16.msra.mxu0 %v913
        %969 = vmatprep.subr.bf16.mxu0 %v918
        %970 = vmatpush1.bf16.msra.mxu0 %v917
        %971 = vmatprep.subr.bf16.mxu0 %v922
        %972 = vmatpush1.bf16.msra.mxu0 %v921
        %973 = vmatprep.subr.bf16.mxu0 0
        %974 = vmatpush1.bf16.msra.mxu0 0
        %975 = vmatprep.subr.bf16.mxu0 0
        %976 = vmatpush1.bf16.msra.mxu0 0
        %977 = vmatprep.subr.bf16.mxu0 0
        %978 = vmatpush1.bf16.msra.mxu0 0
        %979 = vmatprep.subr.bf16.mxu0 0
        %980 = vmatpush1.bf16.msra.mxu0 0
        %981 = vmatprep.subr.bf16.mxu0 0
        %982 = vmatpush1.bf16.msra.mxu0 0
        %983 = vmatprep.subr.bf16.mxu0 0
        %984 = vmatpush1.bf16.msra.mxu0 0
        %985 = vmatprep.subr.bf16.mxu0 0
        %986 = vmatpush1.bf16.msra.mxu0 0
        %987 = vmatprep.subr.bf16.mxu0 0
        %988 = vmatpush1.bf16.msra.mxu0 0
        %989 = vmatprep.mubr.bf16.mxu0 0
        %990 = vmatmul.mubr.bf16.gmra.mrb[0].mxu0 %v735
        %v991 = vpop.f32.mrb[0].mxu0
        %v992 = vadd.f32 %v780, %v991
        %v993 = vpop.f32.mrb[0].mxu0
        %v994 = vadd.f32 %v784, %v993
        %v995 = vpop.f32.mrb[0].mxu0
        %v996 = vadd.f32 %v780, %v995
        %v997 = vpop.f32.mrb[0].mxu0
        %v998 = vadd.f32 %v784, %v997
        %999 = vmatprep.mubr.bf16.mxu0 0
        %1000 = vmatmul.mubr.bf16.gmra.mrb[0].mxu0 %v736
        %v1001 = vpop.f32.mrb[0].mxu0
        %v1002 = vadd.f32 %v780, %v1001
        %v1003 = vpop.f32.mrb[0].mxu0
        %v1004 = vadd.f32 %v784, %v1003
        %v1005 = vpop.f32.mrb[0].mxu0
        %v1006 = vadd.f32 %v780, %v1005
        %v1007 = vpop.f32.mrb[0].mxu0
        %v1008 = vadd.f32 %v784, %v1007
        %1009 = vmatprep.mubr.bf16.mxu0 0
        %1010 = vmatmul.mubr.bf16.gmra.mrb[0].mxu0 %v737
        %v1011 = vpop.f32.mrb[0].mxu0
        %v1012 = vadd.f32 %v780, %v1011
        %v1013 = vpop.f32.mrb[0].mxu0
        %v1014 = vadd.f32 %v784, %v1013
        %v1015 = vpop.f32.mrb[0].mxu0
        %v1016 = vadd.f32 %v780, %v1015
        %v1017 = vpop.f32.mrb[0].mxu0
        %v1018 = vadd.f32 %v784, %v1017
        %1019 = vmatprep.mubr.bf16.mxu0 0
        %1020 = vmatmul.mubr.bf16.gmra.mrb[0].mxu0 %v738
        %v1021 = vpop.f32.mrb[0].mxu0
        %v1022 = vadd.f32 %v780, %v1021
        %v1023 = vpop.f32.mrb[0].mxu0
        %v1024 = vadd.f32 %v784, %v1023
        %v1025 = vpop.f32.mrb[0].mxu0
        %v1026 = vadd.f32 %v780, %v1025
        %v1027 = vpop.f32.mrb[0].mxu0
        %v1028 = vadd.f32 %v784, %v1027
        %1029 = vmatprep.mubr.bf16.mxu0 0
        %1030 = vmatmul.mubr.bf16.gmra.mrb[0].mxu0 %v739
        %v1031 = vpop.f32.mrb[0].mxu0
        %v1032 = vadd.f32 %v780, %v1031
        %v1033 = vpop.f32.mrb[0].mxu0
        %v1034 = vadd.f32 %v784, %v1033
        %v1035 = vpop.f32.mrb[0].mxu0
        %v1036 = vadd.f32 %v780, %v1035
        %v1037 = vpop.f32.mrb[0].mxu0
        %v1038 = vadd.f32 %v784, %v1037
        %1039 = vmatprep.mubr.bf16.mxu0 0
        %1040 = vmatmul.mubr.bf16.gmra.mrb[0].mxu0 %v740
        %v1041 = vpop.f32.mrb[0].mxu0
        %v1042 = vadd.f32 %v780, %v1041
        %v1043 = vpop.f32.mrb[0].mxu0
        %v1044 = vadd.f32 %v784, %v1043
        %v1045 = vpop.f32.mrb[0].mxu0
        %v1046 = vadd.f32 %v780, %v1045
        %v1047 = vpop.f32.mrb[0].mxu0
        %v1048 = vadd.f32 %v784, %v1047
        %1049 = vmatprep.mubr.bf16.mxu0 0
        %1050 = vmatmul.mubr.bf16.gmra.mrb[0].mxu0 %v741
        %v1051 = vpop.f32.mrb[0].mxu0
        %v1052 = vadd.f32 %v780, %v1051
        %v1053 = vpop.f32.mrb[0].mxu0
        %v1054 = vadd.f32 %v784, %v1053
        %v1055 = vpop.f32.mrb[0].mxu0
        %v1056 = vadd.f32 %v780, %v1055
        %v1057 = vpop.f32.mrb[0].mxu0
        %v1058 = vadd.f32 %v784, %v1057
        %1059 = vmatprep.mubr.bf16.mxu0 0
        %1060 = vmatmul.mubr.bf16.gmra.mrb[0].mxu0 %v742
        %v1061 = vpop.f32.mrb[0].mxu0
        %v1062 = vadd.f32 %v780, %v1061
        %v1063 = vpop.f32.mrb[0].mxu0
        %v1064 = vadd.f32 %v784, %v1063
        %v1065 = vpop.f32.mrb[0].mxu0
        %v1066 = vadd.f32 %v780, %v1065
        %v1067 = vpop.f32.mrb[0].mxu0
        %v1068 = vadd.f32 %v784, %v1067
        %1069 = vdwg.mxu0
        %1070 = vmatprep.subr.bf16.mxu0 %v896
        %1071 = vmatpush1.bf16.msra.mxu0 %v895
        %1072 = vmatprep.subr.bf16.mxu0 %v900
        %1073 = vmatpush1.bf16.msra.mxu0 %v899
        %1074 = vmatprep.subr.bf16.mxu0 %v904
        %1075 = vmatpush1.bf16.msra.mxu0 %v903
        %1076 = vmatprep.subr.bf16.mxu0 %v908
        %1077 = vmatpush1.bf16.msra.mxu0 %v907
        %1078 = vmatprep.subr.bf16.mxu0 %v912
        %1079 = vmatpush1.bf16.msra.mxu0 %v911
        %1080 = vmatprep.subr.bf16.mxu0 %v916
        %1081 = vmatpush1.bf16.msra.mxu0 %v915
        %1082 = vmatprep.subr.bf16.mxu0 %v920
        %1083 = vmatpush1.bf16.msra.mxu0 %v919
        %1084 = vmatprep.subr.bf16.mxu0 %v924
        %1085 = vmatpush1.bf16.msra.mxu0 %v923
        %1086 = vmatprep.subr.bf16.mxu0 0
        %1087 = vmatpush1.bf16.msra.mxu0 0
        %1088 = vmatprep.subr.bf16.mxu0 0
        %1089 = vmatpush1.bf16.msra.mxu0 0
        %1090 = vmatprep.subr.bf16.mxu0 0
        %1091 = vmatpush1.bf16.msra.mxu0 0
        %1092 = vmatprep.subr.bf16.mxu0 0
        %1093 = vmatpush1.bf16.msra.mxu0 0
        %1094 = vmatprep.subr.bf16.mxu0 0
        %1095 = vmatpush1.bf16.msra.mxu0 0
        %1096 = vmatprep.subr.bf16.mxu0 0
        %1097 = vmatpush1.bf16.msra.mxu0 0
        %1098 = vmatprep.subr.bf16.mxu0 0
        %1099 = vmatpush1.bf16.msra.mxu0 0
        %1100 = vmatprep.subr.bf16.mxu0 0
        %1101 = vmatpush1.bf16.msra.mxu0 0
        %1102 = vmatprep.mubr.bf16.mxu0 0
        %1103 = vmatmul.mubr.bf16.gmra.mrb[0].mxu0 %v735
        %v1104 = vpop.f32.mrb[0].mxu0
        %v1105 = vadd.f32 %v788, %v1104
        %v1106 = vpop.f32.mrb[0].mxu0
        %v1107 = vadd.f32 %v792, %v1106
        %v1108 = vpop.f32.mrb[0].mxu0
        %v1109 = vadd.f32 %v788, %v1108
        %v1110 = vpop.f32.mrb[0].mxu0
        %v1111 = vadd.f32 %v792, %v1110
        %1112 = vmatprep.mubr.bf16.mxu0 0
        %1113 = vmatmul.mubr.bf16.gmra.mrb[0].mxu0 %v736
        %v1114 = vpop.f32.mrb[0].mxu0
        %v1115 = vadd.f32 %v788, %v1114
        %v1116 = vpop.f32.mrb[0].mxu0
        %v1117 = vadd.f32 %v792, %v1116
        %v1118 = vpop.f32.mrb[0].mxu0
        %v1119 = vadd.f32 %v788, %v1118
        %v1120 = vpop.f32.mrb[0].mxu0
        %v1121 = vadd.f32 %v792, %v1120
        %1122 = vmatprep.mubr.bf16.mxu0 0
        %1123 = vmatmul.mubr.bf16.gmra.mrb[0].mxu0 %v737
        %v1124 = vpop.f32.mrb[0].mxu0
        %v1125 = vadd.f32 %v788, %v1124
        %v1126 = vpop.f32.mrb[0].mxu0
        %v1127 = vadd.f32 %v792, %v1126
        %v1128 = vpop.f32.mrb[0].mxu0
        %v1129 = vadd.f32 %v788, %v1128
        %v1130 = vpop.f32.mrb[0].mxu0
        %v1131 = vadd.f32 %v792, %v1130
        %1132 = vmatprep.mubr.bf16.mxu0 0
        %1133 = vmatmul.mubr.bf16.gmra.mrb[0].mxu0 %v738
        %v1134 = vpop.f32.mrb[0].mxu0
        %v1135 = vadd.f32 %v788, %v1134
        %v1136 = vpop.f32.mrb[0].mxu0
        %v1137 = vadd.f32 %v792, %v1136
        %v1138 = vpop.f32.mrb[0].mxu0
        %v1139 = vadd.f32 %v788, %v1138
        %v1140 = vpop.f32.mrb[0].mxu0
        %v1141 = vadd.f32 %v792, %v1140
        %1142 = vmatprep.mubr.bf16.mxu0 0
        %1143 = vmatmul.mubr.bf16.gmra.mrb[0].mxu0 %v739
        %v1144 = vpop.f32.mrb[0].mxu0
        %v1145 = vadd.f32 %v788, %v1144
        %v1146 = vpop.f32.mrb[0].mxu0
        %v1147 = vadd.f32 %v792, %v1146
        %v1148 = vpop.f32.mrb[0].mxu0
        %v1149 = vadd.f32 %v788, %v1148
        %v1150 = vpop.f32.mrb[0].mxu0
        %v1151 = vadd.f32 %v792, %v1150
        %1152 = vmatprep.mubr.bf16.mxu0 0
        %1153 = vmatmul.mubr.bf16.gmra.mrb[0].mxu0 %v740
        %v1154 = vpop.f32.mrb[0].mxu0
        %v1155 = vadd.f32 %v788, %v1154
        %v1156 = vpop.f32.mrb[0].mxu0
        %v1157 = vadd.f32 %v792, %v1156
        %v1158 = vpop.f32.mrb[0].mxu0
        %v1159 = vadd.f32 %v788, %v1158
        %v1160 = vpop.f32.mrb[0].mxu0
        %v1161 = vadd.f32 %v792, %v1160
        %1162 = vmatprep.mubr.bf16.mxu0 0
        %1163 = vmatmul.mubr.bf16.gmra.mrb[0].mxu0 %v741
        %v1164 = vpop.f32.mrb[0].mxu0
        %v1165 = vadd.f32 %v788, %v1164
        %v1166 = vpop.f32.mrb[0].mxu0
        %v1167 = vadd.f32 %v792, %v1166
        %v1168 = vpop.f32.mrb[0].mxu0
        %v1169 = vadd.f32 %v788, %v1168
        %v1170 = vpop.f32.mrb[0].mxu0
        %v1171 = vadd.f32 %v792, %v1170
        %1172 = vmatprep.mubr.bf16.mxu0 0
        %1173 = vmatmul.mubr.bf16.gmra.mrb[0].mxu0 %v742
        %v1174 = vpop.f32.mrb[0].mxu0
        %v1175 = vadd.f32 %v788, %v1174
        %v1176 = vpop.f32.mrb[0].mxu0
        %v1177 = vadd.f32 %v792, %v1176
        %v1178 = vpop.f32.mrb[0].mxu0
        %v1179 = vadd.f32 %v788, %v1178
        %v1180 = vpop.f32.mrb[0].mxu0
        %v1181 = vadd.f32 %v792, %v1180
        %1182 = vdwg.mxu0
        %v1183 = vmax.f32 %v992, 0.0
        %v1184 = vmax.f32 %v994, 0.0
        %v1185 = vmax.f32 %v1105, 0.0
        %v1186 = vmax.f32 %v1107, 0.0
        %v1187 = vmax.f32 %v996, 0.0
        %v1188 = vmax.f32 %v998, 0.0
        %v1189 = vmax.f32 %v1109, 0.0
        %v1190 = vmax.f32 %v1111, 0.0
        %v1191 = vmax.f32 %v1002, 0.0
        %v1192 = vmax.f32 %v1004, 0.0
        %v1193 = vmax.f32 %v1115, 0.0
        %v1194 = vmax.f32 %v1117, 0.0
        %v1195 = vmax.f32 %v1006, 0.0
        %v1196 = vmax.f32 %v1008, 0.0
        %v1197 = vmax.f32 %v1119, 0.0
        %v1198 = vmax.f32 %v1121, 0.0
        %v1199 = vmax.f32 %v1012, 0.0
        %v1200 = vmax.f32 %v1014, 0.0
        %v1201 = vmax.f32 %v1125, 0.0
        %v1202 = vmax.f32 %v1127, 0.0
        %v1203 = vmax.f32 %v1016, 0.0
        %v1204 = vmax.f32 %v1018, 0.0
        %v1205 = vmax.f32 %v1129, 0.0
        %v1206 = vmax.f32 %v1131, 0.0
        %v1207 = vmax.f32 %v1022, 0.0
        %v1208 = vmax.f32 %v1024, 0.0
        %v1209 = vmax.f32 %v1135, 0.0
        %v1210 = vmax.f32 %v1137, 0.0
        %v1211 = vmax.f32 %v1026, 0.0
        %v1212 = vmax.f32 %v1028, 0.0
        %v1213 = vmax.f32 %v1139, 0.0
        %v1214 = vmax.f32 %v1141, 0.0
        %v1215 = vmax.f32 %v1032, 0.0
        %v1216 = vmax.f32 %v1034, 0.0
        %v1217 = vmax.f32 %v1145, 0.0
        %v1218 = vmax.f32 %v1147, 0.0
        %v1219 = vmax.f32 %v1036, 0.0
        %v1220 = vmax.f32 %v1038, 0.0
        %v1221 = vmax.f32 %v1149, 0.0
        %v1222 = vmax.f32 %v1151, 0.0
        %v1223 = vmax.f32 %v1042, 0.0
        %v1224 = vmax.f32 %v1044, 0.0
        %v1225 = vmax.f32 %v1155, 0.0
        %v1226 = vmax.f32 %v1157, 0.0
        %v1227 = vmax.f32 %v1046, 0.0
        %v1228 = vmax.f32 %v1048, 0.0
        %v1229 = vmax.f32 %v1159, 0.0
        %v1230 = vmax.f32 %v1161, 0.0
        %v1231 = vmax.f32 %v1052, 0.0
        %v1232 = vmax.f32 %v1054, 0.0
        %v1233 = vmax.f32 %v1165, 0.0
        %v1234 = vmax.f32 %v1167, 0.0
        %v1235 = vmax.f32 %v1056, 0.0
        %v1236 = vmax.f32 %v1058, 0.0
        %v1237 = vmax.f32 %v1169, 0.0
        %v1238 = vmax.f32 %v1171, 0.0
        %v1239 = vmax.f32 %v1062, 0.0
        %v1240 = vmax.f32 %v1064, 0.0
        %v1241 = vmax.f32 %v1175, 0.0
        %v1242 = vmax.f32 %v1177, 0.0
        %v1243 = vmax.f32 %v1066, 0.0
        %v1244 = vmax.f32 %v1068, 0.0
        %v1245 = vmax.f32 %v1179, 0.0
        %v1246 = vmax.f32 %v1181, 0.0
        %v1247 = vpack.c.bf16 %v1187, %v1183
        %v1248 = vpack.c.bf16 %v1188, %v1184
        %v1249 = vpack.c.bf16 %v1189, %v1185
        %v1250 = vpack.c.bf16 %v1190, %v1186
        %v1251 = vpack.c.bf16 %v1195, %v1191
        %v1252 = vpack.c.bf16 %v1196, %v1192
        %v1253 = vpack.c.bf16 %v1197, %v1193
        %v1254 = vpack.c.bf16 %v1198, %v1194
        %v1255 = vpack.c.bf16 %v1203, %v1199
        %v1256 = vpack.c.bf16 %v1204, %v1200
        %v1257 = vpack.c.bf16 %v1205, %v1201
        %v1258 = vpack.c.bf16 %v1206, %v1202
        %v1259 = vpack.c.bf16 %v1211, %v1207
        %v1260 = vpack.c.bf16 %v1212, %v1208
        %v1261 = vpack.c.bf16 %v1213, %v1209
        %v1262 = vpack.c.bf16 %v1214, %v1210
        %v1263 = vpack.c.bf16 %v1219, %v1215
        %v1264 = vpack.c.bf16 %v1220, %v1216
        %v1265 = vpack.c.bf16 %v1221, %v1217
        %v1266 = vpack.c.bf16 %v1222, %v1218
        %v1267 = vpack.c.bf16 %v1227, %v1223
        %v1268 = vpack.c.bf16 %v1228, %v1224
        %v1269 = vpack.c.bf16 %v1229, %v1225
        %v1270 = vpack.c.bf16 %v1230, %v1226
        %v1271 = vpack.c.bf16 %v1235, %v1231
        %v1272 = vpack.c.bf16 %v1236, %v1232
        %v1273 = vpack.c.bf16 %v1237, %v1233
        %v1274 = vpack.c.bf16 %v1238, %v1234
        %v1275 = vpack.c.bf16 %v1243, %v1239
        %v1276 = vpack.c.bf16 %v1244, %v1240
        %v1277 = vpack.c.bf16 %v1245, %v1241
        %v1278 = vpack.c.bf16 %v1246, %v1242
        %v1279 = vld [vmem:[#allocation4] sm:$0xf]
        %v1280 = vld [vmem:[#allocation4 + $0x4] sm:$0xf]
        %v1281 = vld [vmem:[#allocation4 + $0x8] sm:$0xf]
        %v1282 = vld [vmem:[#allocation4 + $0xc] sm:$0xf]
        %v1283 = vld [vmem:[#allocation4 + $0x10] sm:$0xf]
        %v1284 = vld [vmem:[#allocation4 + $0x14] sm:$0xf]
        %v1285 = vld [vmem:[#allocation4 + $0x18] sm:$0xf]
        %v1286 = vld [vmem:[#allocation4 + $0x1c] sm:$0xf]
        %v1287 = vld [vmem:[#allocation4 + $0x20] sm:$0xf]
        %v1288 = vld [vmem:[#allocation4 + $0x24] sm:$0xf]
        %v1289 = vld [vmem:[#allocation4 + $0x28] sm:$0xf]
        %v1290 = vld [vmem:[#allocation4 + $0x2c] sm:$0xf]
        %v1291 = vld [vmem:[#allocation4 + $0x30] sm:$0xf]
        %v1292 = vld [vmem:[#allocation4 + $0x34] sm:$0xf]
        %v1293 = vld [vmem:[#allocation4 + $0x38] sm:$0xf]
        %v1294 = vld [vmem:[#allocation4 + $0x3c] sm:$0xf]
        %v1295 = vld [vmem:[#allocation4 + $0x40] sm:$0xf]
        %v1296 = vld [vmem:[#allocation4 + $0x44] sm:$0xf]
        %v1297 = vld [vmem:[#allocation4 + $0x48] sm:$0xf]
        %v1298 = vld [vmem:[#allocation4 + $0x4c] sm:$0xf]
        %v1299 = vld [vmem:[#allocation4 + $0x50] sm:$0xf]
        %v1300 = vld [vmem:[#allocation4 + $0x54] sm:$0xf]
        %v1301 = vld [vmem:[#allocation4 + $0x58] sm:$0xf]
        %v1302 = vld [vmem:[#allocation4 + $0x5c] sm:$0xf]
        %v1303 = vld [vmem:[#allocation4 + $0x60] sm:$0xf]
        %v1304 = vld [vmem:[#allocation4 + $0x64] sm:$0xf]
        %v1305 = vld [vmem:[#allocation4 + $0x68] sm:$0xf]
        %v1306 = vld [vmem:[#allocation4 + $0x6c] sm:$0xf]
        %v1307 = vld [vmem:[#allocation4 + $0x70] sm:$0xf]
        %v1308 = vld [vmem:[#allocation4 + $0x74] sm:$0xf]
        %v1309 = vld [vmem:[#allocation4 + $0x78] sm:$0xf]
        %v1310 = vld [vmem:[#allocation4 + $0x7c] sm:$0xf]
        %v1311 = vld [vmem:[#allocation4 + $0x80] sm:$0xf]
        %v1312 = vld [vmem:[#allocation4 + $0x84] sm:$0xf]
        %v1313 = vld [vmem:[#allocation4 + $0x88] sm:$0xf]
        %v1314 = vld [vmem:[#allocation4 + $0x8c] sm:$0xf]
        %v1315 = vld [vmem:[#allocation4 + $0x90] sm:$0xf]
        %v1316 = vld [vmem:[#allocation4 + $0x94] sm:$0xf]
        %v1317 = vld [vmem:[#allocation4 + $0x98] sm:$0xf]
        %v1318 = vld [vmem:[#allocation4 + $0x9c] sm:$0xf]
        %v1319 = vld [vmem:[#allocation4 + $0xa0] sm:$0xf]
        %v1320 = vld [vmem:[#allocation4 + $0xa4] sm:$0xf]
        %v1321 = vld [vmem:[#allocation4 + $0xa8] sm:$0xf]
        %v1322 = vld [vmem:[#allocation4 + $0xac] sm:$0xf]
        %v1323 = vld [vmem:[#allocation4 + $0xb0] sm:$0xf]
        %v1324 = vld [vmem:[#allocation4 + $0xb4] sm:$0xf]
        %v1325 = vld [vmem:[#allocation4 + $0xb8] sm:$0xf]
        %v1326 = vld [vmem:[#allocation4 + $0xbc] sm:$0xf]
        %v1327 = vld [vmem:[#allocation4 + $0xc0] sm:$0xf]
        %v1328 = vld [vmem:[#allocation4 + $0xc4] sm:$0xf]
        %v1329 = vld [vmem:[#allocation4 + $0xc8] sm:$0xf]
        %v1330 = vld [vmem:[#allocation4 + $0xcc] sm:$0xf]
        %v1331 = vld [vmem:[#allocation4 + $0xd0] sm:$0xf]
        %v1332 = vld [vmem:[#allocation4 + $0xd4] sm:$0xf]
        %v1333 = vld [vmem:[#allocation4 + $0xd8] sm:$0xf]
        %v1334 = vld [vmem:[#allocation4 + $0xdc] sm:$0xf]
        %v1335 = vld [vmem:[#allocation4 + $0xe0] sm:$0xf]
        %v1336 = vld [vmem:[#allocation4 + $0xe4] sm:$0xf]
        %v1337 = vld [vmem:[#allocation4 + $0xe8] sm:$0xf]
        %v1338 = vld [vmem:[#allocation4 + $0xec] sm:$0xf]
        %v1339 = vld [vmem:[#allocation4 + $0xf0] sm:$0xf]
        %v1340 = vld [vmem:[#allocation4 + $0xf4] sm:$0xf]
        %v1341 = vld [vmem:[#allocation4 + $0xf8] sm:$0xf]
        %v1342 = vld [vmem:[#allocation4 + $0xfc] sm:$0xf]
        %v1343 = vld [vmem:[%s4 + $0x4] sm:$0x1]
        %v1344 = vlaneseq
        %v1345 = vshrl.u32 %v1344, 7
        %v1346 = vsub.s32 0, %v1345
        %v1347 = vrot.slane %v1343, %v1346
        %v1412 = vunpack.c.l.b16 %v1279
        %v1413 = vunpack.c.l.b16 %v1280
        %v1414 = vunpack.c.l.b16 %v1281
        %v1415 = vunpack.c.l.b16 %v1282
        %v1416 = vunpack.c.l.b16 %v1283
        %v1417 = vunpack.c.l.b16 %v1284
        %v1418 = vunpack.c.l.b16 %v1285
        %v1419 = vunpack.c.l.b16 %v1286
        %v1420 = vunpack.c.l.b16 %v1287
        %v1421 = vunpack.c.l.b16 %v1288
        %v1422 = vunpack.c.l.b16 %v1289
        %v1423 = vunpack.c.l.b16 %v1290
        %v1424 = vunpack.c.l.b16 %v1291
        %v1425 = vunpack.c.l.b16 %v1292
        %v1426 = vunpack.c.l.b16 %v1293
        %v1427 = vunpack.c.l.b16 %v1294
        %v1428 = vunpack.c.l.b16 %v1295
        %v1429 = vunpack.c.l.b16 %v1296
        %v1430 = vunpack.c.l.b16 %v1297
        %v1431 = vunpack.c.l.b16 %v1298
        %v1432 = vunpack.c.l.b16 %v1299
        %v1433 = vunpack.c.l.b16 %v1300
        %v1434 = vunpack.c.l.b16 %v1301
        %v1435 = vunpack.c.l.b16 %v1302
        %v1436 = vunpack.c.l.b16 %v1303
        %v1437 = vunpack.c.l.b16 %v1304
        %v1438 = vunpack.c.l.b16 %v1305
        %v1439 = vunpack.c.l.b16 %v1306
        %v1440 = vunpack.c.l.b16 %v1307
        %v1441 = vunpack.c.l.b16 %v1308
        %v1442 = vunpack.c.l.b16 %v1309
        %v1443 = vunpack.c.l.b16 %v1310
        %v1444 = vunpack.c.l.b16 %v1311
        %v1445 = vunpack.c.l.b16 %v1312
        %v1446 = vunpack.c.l.b16 %v1313
        %v1447 = vunpack.c.l.b16 %v1314
        %v1448 = vunpack.c.l.b16 %v1315
        %v1449 = vunpack.c.l.b16 %v1316
        %v1450 = vunpack.c.l.b16 %v1317
        %v1451 = vunpack.c.l.b16 %v1318
        %v1452 = vunpack.c.l.b16 %v1319
        %v1453 = vunpack.c.l.b16 %v1320
        %v1454 = vunpack.c.l.b16 %v1321
        %v1455 = vunpack.c.l.b16 %v1322
        %v1456 = vunpack.c.l.b16 %v1323
        %v1457 = vunpack.c.l.b16 %v1324
        %v1458 = vunpack.c.l.b16 %v1325
        %v1459 = vunpack.c.l.b16 %v1326
        %v1460 = vunpack.c.l.b16 %v1327
        %v1461 = vunpack.c.l.b16 %v1328
        %v1462 = vunpack.c.l.b16 %v1329
        %v1463 = vunpack.c.l.b16 %v1330
        %v1464 = vunpack.c.l.b16 %v1331
        %v1465 = vunpack.c.l.b16 %v1332
        %v1466 = vunpack.c.l.b16 %v1333
        %v1467 = vunpack.c.l.b16 %v1334
        %v1468 = vunpack.c.l.b16 %v1335
        %v1469 = vunpack.c.l.b16 %v1336
        %v1470 = vunpack.c.l.b16 %v1337
        %v1471 = vunpack.c.l.b16 %v1338
        %v1472 = vunpack.c.l.b16 %v1339
        %v1473 = vunpack.c.l.b16 %v1340
        %v1474 = vunpack.c.l.b16 %v1341
        %v1475 = vunpack.c.l.b16 %v1342
        %v1476 = vpack.c.b16 %v1413, %v1412
        %v1477 = vpack.c.b16 %v1415, %v1414
        %v1478 = vpack.c.b16 %v1417, %v1416
        %v1479 = vpack.c.b16 %v1419, %v1418
        %v1480 = vpack.c.b16 %v1421, %v1420
        %v1481 = vpack.c.b16 %v1423, %v1422
        %v1482 = vpack.c.b16 %v1425, %v1424
        %v1483 = vpack.c.b16 %v1427, %v1426
        %v1484 = vpack.c.b16 %v1429, %v1428
        %v1485 = vpack.c.b16 %v1431, %v1430
        %v1486 = vpack.c.b16 %v1433, %v1432
        %v1487 = vpack.c.b16 %v1435, %v1434
        %v1488 = vpack.c.b16 %v1437, %v1436
        %v1489 = vpack.c.b16 %v1439, %v1438
        %v1490 = vpack.c.b16 %v1441, %v1440
        %v1491 = vpack.c.b16 %v1443, %v1442
        %v1492 = vpack.c.b16 %v1445, %v1444
        %v1493 = vpack.c.b16 %v1447, %v1446
        %v1494 = vpack.c.b16 %v1449, %v1448
        %v1495 = vpack.c.b16 %v1451, %v1450
        %v1496 = vpack.c.b16 %v1453, %v1452
        %v1497 = vpack.c.b16 %v1455, %v1454
        %v1498 = vpack.c.b16 %v1457, %v1456
        %v1499 = vpack.c.b16 %v1459, %v1458
        %v1500 = vpack.c.b16 %v1461, %v1460
        %v1501 = vpack.c.b16 %v1463, %v1462
        %v1502 = vpack.c.b16 %v1465, %v1464
        %v1503 = vpack.c.b16 %v1467, %v1466
        %v1504 = vpack.c.b16 %v1469, %v1468
        %v1505 = vpack.c.b16 %v1471, %v1470
        %v1506 = vpack.c.b16 %v1473, %v1472
        %v1507 = vpack.c.b16 %v1475, %v1474
        %1540 = vmatprep.subr.bf16.mxu0 0
        %1541 = vmatpush1.bf16.msra.mxu0 %v1476
        %1542 = vmatprep.subr.bf16.mxu0 0
        %1543 = vmatpush1.bf16.msra.mxu0 %v1477
        %1544 = vmatprep.subr.bf16.mxu0 0
        %1545 = vmatpush1.bf16.msra.mxu0 %v1478
        %1546 = vmatprep.subr.bf16.mxu0 0
        %1547 = vmatpush1.bf16.msra.mxu0 %v1479
        %1548 = vmatprep.subr.bf16.mxu0 0
        %1549 = vmatpush1.bf16.msra.mxu0 %v1480
        %1550 = vmatprep.subr.bf16.mxu0 0
        %1551 = vmatpush1.bf16.msra.mxu0 %v1481
        %1552 = vmatprep.subr.bf16.mxu0 0
        %1553 = vmatpush1.bf16.msra.mxu0 %v1482
        %1554 = vmatprep.subr.bf16.mxu0 0
        %1555 = vmatpush1.bf16.msra.mxu0 %v1483
        %1556 = vmatprep.subr.bf16.mxu0 0
        %1557 = vmatpush1.bf16.msra.mxu0 %v1484
        %1558 = vmatprep.subr.bf16.mxu0 0
        %1559 = vmatpush1.bf16.msra.mxu0 %v1485
        %1560 = vmatprep.subr.bf16.mxu0 0
        %1561 = vmatpush1.bf16.msra.mxu0 %v1486
        %1562 = vmatprep.subr.bf16.mxu0 0
        %1563 = vmatpush1.bf16.msra.mxu0 %v1487
        %1564 = vmatprep.subr.bf16.mxu0 0
        %1565 = vmatpush1.bf16.msra.mxu0 %v1488
        %1566 = vmatprep.subr.bf16.mxu0 0
        %1567 = vmatpush1.bf16.msra.mxu0 %v1489
        %1568 = vmatprep.subr.bf16.mxu0 0
        %1569 = vmatpush1.bf16.msra.mxu0 %v1490
        %1570 = vmatprep.subr.bf16.mxu0 0
        %1571 = vmatpush1.bf16.msra.mxu0 %v1491
        %1572 = vmatprep.mubr.bf16.mxu0 %v1248
        %1573 = vmatmul.mubr.bf16.gmra.mrb[0].mxu0 %v1247
        %v1574 = vpop.f32.mrb[0].mxu0
        %v1575 = vadd.f32 %v1347, %v1574
        %v1576 = vpop.f32.mrb[0].mxu0
        %v1577 = vpop.f32.mrb[0].mxu0
        %v1578 = vadd.f32 %v1347, %v1577
        %v1579 = vpop.f32.mrb[0].mxu0
        %1580 = vmatprep.mubr.bf16.mxu0 %v1252
        %1581 = vmatmul.mubr.bf16.gmra.mrb[0].mxu0 %v1251
        %v1582 = vpop.f32.mrb[0].mxu0
        %v1583 = vadd.f32 %v1347, %v1582
        %v1584 = vpop.f32.mrb[0].mxu0
        %v1585 = vpop.f32.mrb[0].mxu0
        %v1586 = vadd.f32 %v1347, %v1585
        %v1587 = vpop.f32.mrb[0].mxu0
        %1588 = vmatprep.mubr.bf16.mxu0 %v1256
        %1589 = vmatmul.mubr.bf16.gmra.mrb[0].mxu0 %v1255
        %v1590 = vpop.f32.mrb[0].mxu0
        %v1591 = vadd.f32 %v1347, %v1590
        %v1592 = vpop.f32.mrb[0].mxu0
        %v1593 = vpop.f32.mrb[0].mxu0
        %v1594 = vadd.f32 %v1347, %v1593
        %v1595 = vpop.f32.mrb[0].mxu0
        %1596 = vmatprep.mubr.bf16.mxu0 %v1260
        %1597 = vmatmul.mubr.bf16.gmra.mrb[0].mxu0 %v1259
        %v1598 = vpop.f32.mrb[0].mxu0
        %v1599 = vadd.f32 %v1347, %v1598
        %v1600 = vpop.f32.mrb[0].mxu0
        %v1601 = vpop.f32.mrb[0].mxu0
        %v1602 = vadd.f32 %v1347, %v1601
        %v1603 = vpop.f32.mrb[0].mxu0
        %1604 = vmatprep.mubr.bf16.mxu0 %v1264
        %1605 = vmatmul.mubr.bf16.gmra.mrb[0].mxu0 %v1263
        %v1606 = vpop.f32.mrb[0].mxu0
        %v1607 = vadd.f32 %v1347, %v1606
        %v1608 = vpop.f32.mrb[0].mxu0
        %v1609 = vpop.f32.mrb[0].mxu0
        %v1610 = vadd.f32 %v1347, %v1609
        %v1611 = vpop.f32.mrb[0].mxu0
        %1612 = vmatprep.mubr.bf16.mxu0 %v1268
        %1613 = vmatmul.mubr.bf16.gmra.mrb[0].mxu0 %v1267
        %v1614 = vpop.f32.mrb[0].mxu0
        %v1615 = vadd.f32 %v1347, %v1614
        %v1616 = vpop.f32.mrb[0].mxu0
        %v1617 = vpop.f32.mrb[0].mxu0
        %v1618 = vadd.f32 %v1347, %v1617
        %v1619 = vpop.f32.mrb[0].mxu0
        %1620 = vmatprep.mubr.bf16.mxu0 %v1272
        %1621 = vmatmul.mubr.bf16.gmra.mrb[0].mxu0 %v1271
        %v1622 = vpop.f32.mrb[0].mxu0
        %v1623 = vadd.f32 %v1347, %v1622
        %v1624 = vpop.f32.mrb[0].mxu0
        %v1625 = vpop.f32.mrb[0].mxu0
        %v1626 = vadd.f32 %v1347, %v1625
        %v1627 = vpop.f32.mrb[0].mxu0
        %1628 = vmatprep.mubr.bf16.mxu0 %v1276
        %1629 = vmatmul.mubr.bf16.gmra.mrb[0].mxu0 %v1275
        %v1630 = vpop.f32.mrb[0].mxu0
        %v1631 = vadd.f32 %v1347, %v1630
        %v1632 = vpop.f32.mrb[0].mxu0
        %v1633 = vpop.f32.mrb[0].mxu0
        %v1634 = vadd.f32 %v1347, %v1633
        %v1635 = vpop.f32.mrb[0].mxu0
        %1636 = vdwg.mxu0
        %1637 = vmatprep.subr.bf16.mxu0 0
        %1638 = vmatpush1.bf16.msra.mxu0 %v1492
        %1639 = vmatprep.subr.bf16.mxu0 0
        %1640 = vmatpush1.bf16.msra.mxu0 %v1493
        %1641 = vmatprep.subr.bf16.mxu0 0
        %1642 = vmatpush1.bf16.msra.mxu0 %v1494
        %1643 = vmatprep.subr.bf16.mxu0 0
        %1644 = vmatpush1.bf16.msra.mxu0 %v1495
        %1645 = vmatprep.subr.bf16.mxu0 0
        %1646 = vmatpush1.bf16.msra.mxu0 %v1496
        %1647 = vmatprep.subr.bf16.mxu0 0
        %1648 = vmatpush1.bf16.msra.mxu0 %v1497
        %1649 = vmatprep.subr.bf16.mxu0 0
        %1650 = vmatpush1.bf16.msra.mxu0 %v1498
        %1651 = vmatprep.subr.bf16.mxu0 0
        %1652 = vmatpush1.bf16.msra.mxu0 %v1499
        %1653 = vmatprep.subr.bf16.mxu0 0
        %1654 = vmatpush1.bf16.msra.mxu0 %v1500
        %1655 = vmatprep.subr.bf16.mxu0 0
        %1656 = vmatpush1.bf16.msra.mxu0 %v1501
        %1657 = vmatprep.subr.bf16.mxu0 0
        %1658 = vmatpush1.bf16.msra.mxu0 %v1502
        %1659 = vmatprep.subr.bf16.mxu0 0
        %1660 = vmatpush1.bf16.msra.mxu0 %v1503
        %1661 = vmatprep.subr.bf16.mxu0 0
        %1662 = vmatpush1.bf16.msra.mxu0 %v1504
        %1663 = vmatprep.subr.bf16.mxu0 0
        %1664 = vmatpush1.bf16.msra.mxu0 %v1505
        %1665 = vmatprep.subr.bf16.mxu0 0
        %1666 = vmatpush1.bf16.msra.mxu0 %v1506
        %1667 = vmatprep.subr.bf16.mxu0 0
        %1668 = vmatpush1.bf16.msra.mxu0 %v1507
        %1669 = vmatprep.mubr.bf16.mxu0 %v1250
        %1670 = vmatmul.mubr.bf16.gmra.mrb[0].mxu0 %v1249
        %v1671 = vpop.f32.mrb[0].mxu0
        %v1672 = vadd.f32 %v1575, %v1671
        %v1673 = vpop.f32.mrb[0].mxu0
        %v1674 = vpop.f32.mrb[0].mxu0
        %v1675 = vadd.f32 %v1578, %v1674
        %v1676 = vpop.f32.mrb[0].mxu0
        %1677 = vmatprep.mubr.bf16.mxu0 %v1254
        %1678 = vmatmul.mubr.bf16.gmra.mrb[0].mxu0 %v1253
        %v1679 = vpop.f32.mrb[0].mxu0
        %v1680 = vadd.f32 %v1583, %v1679
        %v1681 = vpop.f32.mrb[0].mxu0
        %v1682 = vpop.f32.mrb[0].mxu0
        %v1683 = vadd.f32 %v1586, %v1682
        %v1684 = vpop.f32.mrb[0].mxu0
        %1685 = vmatprep.mubr.bf16.mxu0 %v1258
        %1686 = vmatmul.mubr.bf16.gmra.mrb[0].mxu0 %v1257
        %v1687 = vpop.f32.mrb[0].mxu0
        %v1688 = vadd.f32 %v1591, %v1687
        %v1689 = vpop.f32.mrb[0].mxu0
        %v1690 = vpop.f32.mrb[0].mxu0
        %v1691 = vadd.f32 %v1594, %v1690
        %v1692 = vpop.f32.mrb[0].mxu0
        %1693 = vmatprep.mubr.bf16.mxu0 %v1262
        %1694 = vmatmul.mubr.bf16.gmra.mrb[0].mxu0 %v1261
        %v1695 = vpop.f32.mrb[0].mxu0
        %v1696 = vadd.f32 %v1599, %v1695
        %v1697 = vpop.f32.mrb[0].mxu0
        %v1698 = vpop.f32.mrb[0].mxu0
        %v1699 = vadd.f32 %v1602, %v1698
        %v1700 = vpop.f32.mrb[0].mxu0
        %1701 = vmatprep.mubr.bf16.mxu0 %v1266
        %1702 = vmatmul.mubr.bf16.gmra.mrb[0].mxu0 %v1265
        %v1703 = vpop.f32.mrb[0].mxu0
        %v1704 = vadd.f32 %v1607, %v1703
        %v1705 = vpop.f32.mrb[0].mxu0
        %v1706 = vpop.f32.mrb[0].mxu0
        %v1707 = vadd.f32 %v1610, %v1706
        %v1708 = vpop.f32.mrb[0].mxu0
        %1709 = vmatprep.mubr.bf16.mxu0 %v1270
        %1710 = vmatmul.mubr.bf16.gmra.mrb[0].mxu0 %v1269
        %v1711 = vpop.f32.mrb[0].mxu0
        %v1712 = vadd.f32 %v1615, %v1711
        %v1713 = vpop.f32.mrb[0].mxu0
        %v1714 = vpop.f32.mrb[0].mxu0
        %v1715 = vadd.f32 %v1618, %v1714
        %v1716 = vpop.f32.mrb[0].mxu0
        %1717 = vmatprep.mubr.bf16.mxu0 %v1274
        %1718 = vmatmul.mubr.bf16.gmra.mrb[0].mxu0 %v1273
        %v1719 = vpop.f32.mrb[0].mxu0
        %v1720 = vadd.f32 %v1623, %v1719
        %v1721 = vpop.f32.mrb[0].mxu0
        %v1722 = vpop.f32.mrb[0].mxu0
        %v1723 = vadd.f32 %v1626, %v1722
        %v1724 = vpop.f32.mrb[0].mxu0
        %1725 = vmatprep.mubr.bf16.mxu0 %v1278
        %1726 = vmatmul.mubr.bf16.gmra.mrb[0].mxu0 %v1277
        %v1727 = vpop.f32.mrb[0].mxu0
        %v1728 = vadd.f32 %v1631, %v1727
        %v1729 = vpop.f32.mrb[0].mxu0
        %v1730 = vpop.f32.mrb[0].mxu0
        %v1731 = vadd.f32 %v1634, %v1730
        %v1732 = vpop.f32.mrb[0].mxu0
        %1733 = vdwg.mxu0
        %v1734 = vadd.f32 %v719, %v1672
        %v1735 = vadd.f32 %v720, %v1675
        %v1736 = vadd.f32 %v721, %v1680
        %v1737 = vadd.f32 %v722, %v1683
        %v1738 = vadd.f32 %v723, %v1688
        %v1739 = vadd.f32 %v724, %v1691
        %v1740 = vadd.f32 %v725, %v1696
        %v1741 = vadd.f32 %v726, %v1699
        %v1742 = vadd.f32 %v727, %v1704
        %v1743 = vadd.f32 %v728, %v1707
        %v1744 = vadd.f32 %v729, %v1712
        %v1745 = vadd.f32 %v730, %v1715
        %v1746 = vadd.f32 %v731, %v1720
        %v1747 = vadd.f32 %v732, %v1723
        %v1748 = vadd.f32 %v733, %v1728
        %v1749 = vadd.f32 %v734, %v1731
        %v1750 = vld [vmem:[%s4 + $0x5] sm:$0x1]
        %v1751 = vld [vmem:[%s4 + $0x6] sm:$0x1]
        %1752 = vadd.xlane.f32.xlu0 %v1734
        %v1753 = vpop.xlane.xlu0 %1752
        %1754 = vadd.xlane.f32.xlu0 %v1735
        %v1755 = vpop.xlane.xlu0 %1754
        %1756 = vadd.xlane.f32.xlu0 %v1736
        %v1757 = vpop.xlane.xlu0 %1756
        %1758 = vadd.xlane.f32.xlu0 %v1737
        %v1759 = vpop.xlane.xlu0 %1758
        %1760 = vadd.xlane.f32.xlu0 %v1738
        %v1761 = vpop.xlane.xlu0 %1760
        %1762 = vadd.xlane.f32.xlu0 %v1739
        %v1763 = vpop.xlane.xlu0 %1762
        %1764 = vadd.xlane.f32.xlu0 %v1740
        %v1765 = vpop.xlane.xlu0 %1764
        %1766 = vadd.xlane.f32.xlu0 %v1741
        %v1767 = vpop.xlane.xlu0 %1766
        %1768 = vadd.xlane.f32.xlu0 %v1742
        %v1769 = vpop.xlane.xlu0 %1768
        %1770 = vadd.xlane.f32.xlu0 %v1743
        %v1771 = vpop.xlane.xlu0 %1770
        %1772 = vadd.xlane.f32.xlu0 %v1744
        %v1773 = vpop.xlane.xlu0 %1772
        %1774 = vadd.xlane.f32.xlu0 %v1745
        %v1775 = vpop.xlane.xlu0 %1774
        %1776 = vadd.xlane.f32.xlu0 %v1746
        %v1777 = vpop.xlane.xlu0 %1776
        %1778 = vadd.xlane.f32.xlu0 %v1747
        %v1779 = vpop.xlane.xlu0 %1778
        %1780 = vadd.xlane.f32.xlu0 %v1748
        %v1781 = vpop.xlane.xlu0 %1780
        %1782 = vadd.xlane.f32.xlu0 %v1749
        %v1783 = vpop.xlane.xlu0 %1782
        %v1784 = vmul.f32 %v1753, %v550
        %v1785 = vmul.f32 %v1755, %v550
        %v1786 = vmul.f32 %v1757, %v550
        %v1787 = vmul.f32 %v1759, %v550
        %v1788 = vmul.f32 %v1761, %v550
        %v1789 = vmul.f32 %v1763, %v550
        %v1790 = vmul.f32 %v1765, %v550
        %v1791 = vmul.f32 %v1767, %v550
        %v1792 = vmul.f32 %v1769, %v550
        %v1793 = vmul.f32 %v1771, %v550
        %v1794 = vmul.f32 %v1773, %v550
        %v1795 = vmul.f32 %v1775, %v550
        %v1796 = vmul.f32 %v1777, %v550
        %v1797 = vmul.f32 %v1779, %v550
        %v1798 = vmul.f32 %v1781, %v550
        %v1799 = vmul.f32 %v1783, %v550
        %v1800 = vsub.f32 %v1734, %v1784
        %v1801 = vsub.f32 %v1735, %v1785
        %v1802 = vsub.f32 %v1736, %v1786
        %v1803 = vsub.f32 %v1737, %v1787
        %v1804 = vsub.f32 %v1738, %v1788
        %v1805 = vsub.f32 %v1739, %v1789
        %v1806 = vsub.f32 %v1740, %v1790
        %v1807 = vsub.f32 %v1741, %v1791
        %v1808 = vsub.f32 %v1742, %v1792
        %v1809 = vsub.f32 %v1743, %v1793
        %v1810 = vsub.f32 %v1744, %v1794
        %v1811 = vsub.f32 %v1745, %v1795
        %v1812 = vsub.f32 %v1746, %v1796
        %v1813 = vsub.f32 %v1747, %v1797
        %v1814 = vsub.f32 %v1748, %v1798
        %v1815 = vsub.f32 %v1749, %v1799
        %v1816 = vmul.f32 %v1800, %v1800
        %v1817 = vmul.f32 %v1801, %v1801
        %v1818 = vmul.f32 %v1802, %v1802
        %v1819 = vmul.f32 %v1803, %v1803
        %v1820 = vmul.f32 %v1804, %v1804
        %v1821 = vmul.f32 %v1805, %v1805
        %v1822 = vmul.f32 %v1806, %v1806
        %v1823 = vmul.f32 %v1807, %v1807
        %v1824 = vmul.f32 %v1808, %v1808
        %v1825 = vmul.f32 %v1809, %v1809
        %v1826 = vmul.f32 %v1810, %v1810
        %v1827 = vmul.f32 %v1811, %v1811
        %v1828 = vmul.f32 %v1812, %v1812
        %v1829 = vmul.f32 %v1813, %v1813
        %v1830 = vmul.f32 %v1814, %v1814
        %v1831 = vmul.f32 %v1815, %v1815
        %1832 = vadd.xlane.f32.xlu0 %v1816
        %v1833 = vpop.xlane.xlu0 %1832
        %1834 = vadd.xlane.f32.xlu0 %v1817
        %v1835 = vpop.xlane.xlu0 %1834
        %1836 = vadd.xlane.f32.xlu0 %v1818
        %v1837 = vpop.xlane.xlu0 %1836
        %1838 = vadd.xlane.f32.xlu0 %v1819
        %v1839 = vpop.xlane.xlu0 %1838
        %1840 = vadd.xlane.f32.xlu0 %v1820
        %v1841 = vpop.xlane.xlu0 %1840
        %1842 = vadd.xlane.f32.xlu0 %v1821
        %v1843 = vpop.xlane.xlu0 %1842
        %1844 = vadd.xlane.f32.xlu0 %v1822
        %v1845 = vpop.xlane.xlu0 %1844
        %1846 = vadd.xlane.f32.xlu0 %v1823
        %v1847 = vpop.xlane.xlu0 %1846
        %1848 = vadd.xlane.f32.xlu0 %v1824
        %v1849 = vpop.xlane.xlu0 %1848
        %1850 = vadd.xlane.f32.xlu0 %v1825
        %v1851 = vpop.xlane.xlu0 %1850
        %1852 = vadd.xlane.f32.xlu0 %v1826
        %v1853 = vpop.xlane.xlu0 %1852
        %1854 = vadd.xlane.f32.xlu0 %v1827
        %v1855 = vpop.xlane.xlu0 %1854
        %1856 = vadd.xlane.f32.xlu0 %v1828
        %v1857 = vpop.xlane.xlu0 %1856
        %1858 = vadd.xlane.f32.xlu0 %v1829
        %v1859 = vpop.xlane.xlu0 %1858
        %1860 = vadd.xlane.f32.xlu0 %v1830
        %v1861 = vpop.xlane.xlu0 %1860
        %1862 = vadd.xlane.f32.xlu0 %v1831
        %v1863 = vpop.xlane.xlu0 %1862
        %v1864 = vmul.f32 %v1833, %v550
        %v1865 = vmul.f32 %v1835, %v550
        %v1866 = vmul.f32 %v1837, %v550
        %v1867 = vmul.f32 %v1839, %v550
        %v1868 = vmul.f32 %v1841, %v550
        %v1869 = vmul.f32 %v1843, %v550
        %v1870 = vmul.f32 %v1845, %v550
        %v1871 = vmul.f32 %v1847, %v550
        %v1872 = vmul.f32 %v1849, %v550
        %v1873 = vmul.f32 %v1851, %v550
        %v1874 = vmul.f32 %v1853, %v550
        %v1875 = vmul.f32 %v1855, %v550
        %v1876 = vmul.f32 %v1857, %v550
        %v1877 = vmul.f32 %v1859, %v550
        %v1878 = vmul.f32 %v1861, %v550
        %v1879 = vmul.f32 %v1863, %v550
        %v1880 = vadd.f32 %v1864, 1e-05
        %v1881 = vadd.f32 %v1865, 1e-05
        %v1882 = vadd.f32 %v1866, 1e-05
        %v1883 = vadd.f32 %v1867, 1e-05
        %v1884 = vadd.f32 %v1868, 1e-05
        %v1885 = vadd.f32 %v1869, 1e-05
        %v1886 = vadd.f32 %v1870, 1e-05
        %v1887 = vadd.f32 %v1871, 1e-05
        %v1888 = vadd.f32 %v1872, 1e-05
        %v1889 = vadd.f32 %v1873, 1e-05
        %v1890 = vadd.f32 %v1874, 1e-05
        %v1891 = vadd.f32 %v1875, 1e-05
        %v1892 = vadd.f32 %v1876, 1e-05
        %v1893 = vadd.f32 %v1877, 1e-05
        %v1894 = vadd.f32 %v1878, 1e-05
        %v1895 = vadd.f32 %v1879, 1e-05
        %v1896 = vrsqrt.pop %v1880
        %v1897 = vrsqrt.pop %v1881
        %v1898 = vrsqrt.pop %v1882
        %v1899 = vrsqrt.pop %v1883
        %v1900 = vrsqrt.pop %v1884
        %v1901 = vrsqrt.pop %v1885
        %v1902 = vrsqrt.pop %v1886
        %v1903 = vrsqrt.pop %v1887
        %v1904 = vrsqrt.pop %v1888
        %v1905 = vrsqrt.pop %v1889
        %v1906 = vrsqrt.pop %v1890
        %v1907 = vrsqrt.pop %v1891
        %v1908 = vrsqrt.pop %v1892
        %v1909 = vrsqrt.pop %v1893
        %v1910 = vrsqrt.pop %v1894
        %v1911 = vrsqrt.pop %v1895
        %v1912 = vmul.f32 %v1800, %v1896
        %v1913 = vmul.f32 %v1801, %v1897
        %v1914 = vmul.f32 %v1802, %v1898
        %v1915 = vmul.f32 %v1803, %v1899
        %v1916 = vmul.f32 %v1804, %v1900
        %v1917 = vmul.f32 %v1805, %v1901
        %v1918 = vmul.f32 %v1806, %v1902
        %v1919 = vmul.f32 %v1807, %v1903
        %v1920 = vmul.f32 %v1808, %v1904
        %v1921 = vmul.f32 %v1809, %v1905
        %v1922 = vmul.f32 %v1810, %v1906
        %v1923 = vmul.f32 %v1811, %v1907
        %v1924 = vmul.f32 %v1812, %v1908
        %v1925 = vmul.f32 %v1813, %v1909
        %v1926 = vmul.f32 %v1814, %v1910
        %v1927 = vmul.f32 %v1815, %v1911
        %v1928 = vlaneseq
        %v1929 = vshrl.u32 %v1928, 7
        %v1930 = vsub.s32 0, %v1929
        %v1931 = vrot.slane %v1750, %v1930
        %v1932 = vmul.f32 %v1912, %v1931
        %v1933 = vmul.f32 %v1913, %v1931
        %v1934 = vmul.f32 %v1914, %v1931
        %v1935 = vmul.f32 %v1915, %v1931
        %v1936 = vmul.f32 %v1916, %v1931
        %v1937 = vmul.f32 %v1917, %v1931
        %v1938 = vmul.f32 %v1918, %v1931
        %v1939 = vmul.f32 %v1919, %v1931
        %v1940 = vmul.f32 %v1920, %v1931
        %v1941 = vmul.f32 %v1921, %v1931
        %v1942 = vmul.f32 %v1922, %v1931
        %v1943 = vmul.f32 %v1923, %v1931
        %v1944 = vmul.f32 %v1924, %v1931
        %v1945 = vmul.f32 %v1925, %v1931
        %v1946 = vmul.f32 %v1926, %v1931
        %v1947 = vmul.f32 %v1927, %v1931
        %v1948 = vlaneseq
        %v1949 = vshrl.u32 %v1948, 7
        %v1950 = vsub.s32 0, %v1949
        %v1951 = vrot.slane %v1751, %v1950
        %v1952 = vadd.f32 %v1932, %v1951
        %v1953 = vadd.f32 %v1933, %v1951
        %v1954 = vadd.f32 %v1934, %v1951
        %v1955 = vadd.f32 %v1935, %v1951
        %v1956 = vadd.f32 %v1936, %v1951
        %v1957 = vadd.f32 %v1937, %v1951
        %v1958 = vadd.f32 %v1938, %v1951
        %v1959 = vadd.f32 %v1939, %v1951
        %v1960 = vadd.f32 %v1940, %v1951
        %v1961 = vadd.f32 %v1941, %v1951
        %v1962 = vadd.f32 %v1942, %v1951
        %v1963 = vadd.f32 %v1943, %v1951
        %v1964 = vadd.f32 %v1944, %v1951
        %v1965 = vadd.f32 %v1945, %v1951
        %v1966 = vadd.f32 %v1946, %v1951
        %v1967 = vadd.f32 %v1947, %v1951
        %v1968 = vpack.c.bf16 %v1953, %v1952
        %v1969 = vpack.c.bf16 %v1955, %v1954
        %v1970 = vpack.c.bf16 %v1957, %v1956
        %v1971 = vpack.c.bf16 %v1959, %v1958
        %v1972 = vpack.c.bf16 %v1961, %v1960
        %v1973 = vpack.c.bf16 %v1963, %v1962
        %v1974 = vpack.c.bf16 %v1965, %v1964
        %v1975 = vpack.c.bf16 %v1967, %v1966
        %s1976 = scalar_lea.vmem %s1, 64
        %v1977 = vld [vmem:[%s1976] sm:$0xf]
        %v1978 = vld [vmem:[%s1976 + $0x4] sm:$0xf]
        %v1979 = vld [vmem:[%s1976 + $0x8] sm:$0xf]
        %v1980 = vld [vmem:[%s1976 + $0xc] sm:$0xf]
        %v1981 = vld [vmem:[%s1976 + $0x10] sm:$0xf]
        %v1982 = vld [vmem:[%s1976 + $0x14] sm:$0xf]
        %v1983 = vld [vmem:[%s1976 + $0x18] sm:$0xf]
        %v1984 = vld [vmem:[%s1976 + $0x1c] sm:$0xf]
        %v1985 = vld [vmem:[%s1976 + $0x20] sm:$0xf]
        %v1986 = vld [vmem:[%s1976 + $0x24] sm:$0xf]
        %v1987 = vld [vmem:[%s1976 + $0x28] sm:$0xf]
        %v1988 = vld [vmem:[%s1976 + $0x2c] sm:$0xf]
        %v1989 = vld [vmem:[%s1976 + $0x30] sm:$0xf]
        %v1990 = vld [vmem:[%s1976 + $0x34] sm:$0xf]
        %v1991 = vld [vmem:[%s1976 + $0x38] sm:$0xf]
        %v1992 = vld [vmem:[%s1976 + $0x3c] sm:$0xf]
        %v1993 = vld [vmem:[%s4 + $0x7] sm:$0x1]
        %v1994 = vlaneseq
        %v1995 = vshrl.u32 %v1994, 7
        %v1996 = vsub.s32 0, %v1995
        %v1997 = vrot.slane %v1993, %v1996
        %v2014 = vunpack.c.l.b16 %v1977
        %v2015 = vunpack.c.l.b16 %v1978
        %v2016 = vunpack.c.l.b16 %v1979
        %v2017 = vunpack.c.l.b16 %v1980
        %v2018 = vunpack.c.l.b16 %v1981
        %v2019 = vunpack.c.l.b16 %v1982
        %v2020 = vunpack.c.l.b16 %v1983
        %v2021 = vunpack.c.l.b16 %v1984
        %v2022 = vunpack.c.l.b16 %v1985
        %v2023 = vunpack.c.l.b16 %v1986
        %v2024 = vunpack.c.l.b16 %v1987
        %v2025 = vunpack.c.l.b16 %v1988
        %v2026 = vunpack.c.l.b16 %v1989
        %v2027 = vunpack.c.l.b16 %v1990
        %v2028 = vunpack.c.l.b16 %v1991
        %v2029 = vunpack.c.l.b16 %v1992
        %v2030 = vpack.c.b16 %v2015, %v2014
        %v2031 = vpack.c.b16 %v2017, %v2016
        %v2032 = vpack.c.b16 %v2019, %v2018
        %v2033 = vpack.c.b16 %v2021, %v2020
        %v2034 = vpack.c.b16 %v2023, %v2022
        %v2035 = vpack.c.b16 %v2025, %v2024
        %v2036 = vpack.c.b16 %v2027, %v2026
        %v2037 = vpack.c.b16 %v2029, %v2028
        %2046 = vmatprep.subr.bf16.mxu0 0
        %2047 = vmatpush1.bf16.msra.mxu0 %v2030
        %2048 = vmatprep.subr.bf16.mxu0 0
        %2049 = vmatpush1.bf16.msra.mxu0 %v2031
        %2050 = vmatprep.subr.bf16.mxu0 0
        %2051 = vmatpush1.bf16.msra.mxu0 %v2032
        %2052 = vmatprep.subr.bf16.mxu0 0
        %2053 = vmatpush1.bf16.msra.mxu0 %v2033
        %2054 = vmatprep.subr.bf16.mxu0 0
        %2055 = vmatpush1.bf16.msra.mxu0 %v2034
        %2056 = vmatprep.subr.bf16.mxu0 0
        %2057 = vmatpush1.bf16.msra.mxu0 %v2035
        %2058 = vmatprep.subr.bf16.mxu0 0
        %2059 = vmatpush1.bf16.msra.mxu0 %v2036
        %2060 = vmatprep.subr.bf16.mxu0 0
        %2061 = vmatpush1.bf16.msra.mxu0 %v2037
        %2062 = vmatprep.subr.bf16.mxu0 0
        %2063 = vmatpush1.bf16.msra.mxu0 0
        %2064 = vmatprep.subr.bf16.mxu0 0
        %2065 = vmatpush1.bf16.msra.mxu0 0
        %2066 = vmatprep.subr.bf16.mxu0 0
        %2067 = vmatpush1.bf16.msra.mxu0 0
        %2068 = vmatprep.subr.bf16.mxu0 0
        %2069 = vmatpush1.bf16.msra.mxu0 0
        %2070 = vmatprep.subr.bf16.mxu0 0
        %2071 = vmatpush1.bf16.msra.mxu0 0
        %2072 = vmatprep.subr.bf16.mxu0 0
        %2073 = vmatpush1.bf16.msra.mxu0 0
        %2074 = vmatprep.subr.bf16.mxu0 0
        %2075 = vmatpush1.bf16.msra.mxu0 0
        %2076 = vmatprep.subr.bf16.mxu0 0
        %2077 = vmatpush1.bf16.msra.mxu0 0
        %2078 = vmatprep.mubr.bf16.mxu0 0
        %2079 = vmatmul.mubr.bf16.gmra.mrb[0].mxu0 %v1968
        %v2080 = vpop.f32.mrb[0].mxu0
        %v2081 = vadd.f32 %v1997, %v2080
        %v2082 = vpop.f32.mrb[0].mxu0
        %v2083 = vpop.f32.mrb[0].mxu0
        %v2084 = vadd.f32 %v1997, %v2083
        %v2085 = vpop.f32.mrb[0].mxu0
        %2086 = vmatprep.mubr.bf16.mxu0 0
        %2087 = vmatmul.mubr.bf16.gmra.mrb[0].mxu0 %v1969
        %v2088 = vpop.f32.mrb[0].mxu0
        %v2089 = vadd.f32 %v1997, %v2088
        %v2090 = vpop.f32.mrb[0].mxu0
        %v2091 = vpop.f32.mrb[0].mxu0
        %v2092 = vadd.f32 %v1997, %v2091
        %v2093 = vpop.f32.mrb[0].mxu0
        %2094 = vmatprep.mubr.bf16.mxu0 0
        %2095 = vmatmul.mubr.bf16.gmra.mrb[0].mxu0 %v1970
        %v2096 = vpop.f32.mrb[0].mxu0
        %v2097 = vadd.f32 %v1997, %v2096
        %v2098 = vpop.f32.mrb[0].mxu0
        %v2099 = vpop.f32.mrb[0].mxu0
        %v2100 = vadd.f32 %v1997, %v2099
        %v2101 = vpop.f32.mrb[0].mxu0
        %2102 = vmatprep.mubr.bf16.mxu0 0
        %2103 = vmatmul.mubr.bf16.gmra.mrb[0].mxu0 %v1971
        %v2104 = vpop.f32.mrb[0].mxu0
        %v2105 = vadd.f32 %v1997, %v2104
        %v2106 = vpop.f32.mrb[0].mxu0
        %v2107 = vpop.f32.mrb[0].mxu0
        %v2108 = vadd.f32 %v1997, %v2107
        %v2109 = vpop.f32.mrb[0].mxu0
        %2110 = vmatprep.mubr.bf16.mxu0 0
        %2111 = vmatmul.mubr.bf16.gmra.mrb[0].mxu0 %v1972
        %v2112 = vpop.f32.mrb[0].mxu0
        %v2113 = vadd.f32 %v1997, %v2112
        %v2114 = vpop.f32.mrb[0].mxu0
        %v2115 = vpop.f32.mrb[0].mxu0
        %v2116 = vadd.f32 %v1997, %v2115
        %v2117 = vpop.f32.mrb[0].mxu0
        %2118 = vmatprep.mubr.bf16.mxu0 0
        %2119 = vmatmul.mubr.bf16.gmra.mrb[0].mxu0 %v1973
        %v2120 = vpop.f32.mrb[0].mxu0
        %v2121 = vadd.f32 %v1997, %v2120
        %v2122 = vpop.f32.mrb[0].mxu0
        %v2123 = vpop.f32.mrb[0].mxu0
        %v2124 = vadd.f32 %v1997, %v2123
        %v2125 = vpop.f32.mrb[0].mxu0
        %2126 = vmatprep.mubr.bf16.mxu0 0
        %2127 = vmatmul.mubr.bf16.gmra.mrb[0].mxu0 %v1974
        %v2128 = vpop.f32.mrb[0].mxu0
        %v2129 = vadd.f32 %v1997, %v2128
        %v2130 = vpop.f32.mrb[0].mxu0
        %v2131 = vpop.f32.mrb[0].mxu0
        %v2132 = vadd.f32 %v1997, %v2131
        %v2133 = vpop.f32.mrb[0].mxu0
        %2134 = vmatprep.mubr.bf16.mxu0 0
        %2135 = vmatmul.mubr.bf16.gmra.mrb[0].mxu0 %v1975
        %v2136 = vpop.f32.mrb[0].mxu0
        %v2137 = vadd.f32 %v1997, %v2136
        %v2138 = vpop.f32.mrb[0].mxu0
        %v2139 = vpop.f32.mrb[0].mxu0
        %v2140 = vadd.f32 %v1997, %v2139
        %v2141 = vpop.f32.mrb[0].mxu0
        %2142 = vdwg.mxu0
        %v2143 = vld [vmem:[%s4 + $0x8] sm:$0x1]
        %v2144 = vld [vmem:[%s4 + $0x9] sm:$0x1]
        %2145 = vadd.xlane.f32.xlu0 %v2081
        %v2146 = vpop.xlane.xlu0 %2145
        %2147 = vadd.xlane.f32.xlu0 %v2084
        %v2148 = vpop.xlane.xlu0 %2147
        %2149 = vadd.xlane.f32.xlu0 %v2089
        %v2150 = vpop.xlane.xlu0 %2149
        %2151 = vadd.xlane.f32.xlu0 %v2092
        %v2152 = vpop.xlane.xlu0 %2151
        %2153 = vadd.xlane.f32.xlu0 %v2097
        %v2154 = vpop.xlane.xlu0 %2153
        %2155 = vadd.xlane.f32.xlu0 %v2100
        %v2156 = vpop.xlane.xlu0 %2155
        %2157 = vadd.xlane.f32.xlu0 %v2105
        %v2158 = vpop.xlane.xlu0 %2157
        %2159 = vadd.xlane.f32.xlu0 %v2108
        %v2160 = vpop.xlane.xlu0 %2159
        %2161 = vadd.xlane.f32.xlu0 %v2113
        %v2162 = vpop.xlane.xlu0 %2161
        %2163 = vadd.xlane.f32.xlu0 %v2116
        %v2164 = vpop.xlane.xlu0 %2163
        %2165 = vadd.xlane.f32.xlu0 %v2121
        %v2166 = vpop.xlane.xlu0 %2165
        %2167 = vadd.xlane.f32.xlu0 %v2124
        %v2168 = vpop.xlane.xlu0 %2167
        %2169 = vadd.xlane.f32.xlu0 %v2129
        %v2170 = vpop.xlane.xlu0 %2169
        %2171 = vadd.xlane.f32.xlu0 %v2132
        %v2172 = vpop.xlane.xlu0 %2171
        %2173 = vadd.xlane.f32.xlu0 %v2137
        %v2174 = vpop.xlane.xlu0 %2173
        %2175 = vadd.xlane.f32.xlu0 %v2140
        %v2176 = vpop.xlane.xlu0 %2175
        %v2177 = vmul.f32 %v2146, %v550
        %v2178 = vmul.f32 %v2148, %v550
        %v2179 = vmul.f32 %v2150, %v550
        %v2180 = vmul.f32 %v2152, %v550
        %v2181 = vmul.f32 %v2154, %v550
        %v2182 = vmul.f32 %v2156, %v550
        %v2183 = vmul.f32 %v2158, %v550
        %v2184 = vmul.f32 %v2160, %v550
        %v2185 = vmul.f32 %v2162, %v550
        %v2186 = vmul.f32 %v2164, %v550
        %v2187 = vmul.f32 %v2166, %v550
        %v2188 = vmul.f32 %v2168, %v550
        %v2189 = vmul.f32 %v2170, %v550
        %v2190 = vmul.f32 %v2172, %v550
        %v2191 = vmul.f32 %v2174, %v550
        %v2192 = vmul.f32 %v2176, %v550
        %v2193 = vsub.f32 %v2081, %v2177
        %v2194 = vsub.f32 %v2084, %v2178
        %v2195 = vsub.f32 %v2089, %v2179
        %v2196 = vsub.f32 %v2092, %v2180
        %v2197 = vsub.f32 %v2097, %v2181
        %v2198 = vsub.f32 %v2100, %v2182
        %v2199 = vsub.f32 %v2105, %v2183
        %v2200 = vsub.f32 %v2108, %v2184
        %v2201 = vsub.f32 %v2113, %v2185
        %v2202 = vsub.f32 %v2116, %v2186
        %v2203 = vsub.f32 %v2121, %v2187
        %v2204 = vsub.f32 %v2124, %v2188
        %v2205 = vsub.f32 %v2129, %v2189
        %v2206 = vsub.f32 %v2132, %v2190
        %v2207 = vsub.f32 %v2137, %v2191
        %v2208 = vsub.f32 %v2140, %v2192
        %v2209 = vmul.f32 %v2193, %v2193
        %v2210 = vmul.f32 %v2194, %v2194
        %v2211 = vmul.f32 %v2195, %v2195
        %v2212 = vmul.f32 %v2196, %v2196
        %v2213 = vmul.f32 %v2197, %v2197
        %v2214 = vmul.f32 %v2198, %v2198
        %v2215 = vmul.f32 %v2199, %v2199
        %v2216 = vmul.f32 %v2200, %v2200
        %v2217 = vmul.f32 %v2201, %v2201
        %v2218 = vmul.f32 %v2202, %v2202
        %v2219 = vmul.f32 %v2203, %v2203
        %v2220 = vmul.f32 %v2204, %v2204
        %v2221 = vmul.f32 %v2205, %v2205
        %v2222 = vmul.f32 %v2206, %v2206
        %v2223 = vmul.f32 %v2207, %v2207
        %v2224 = vmul.f32 %v2208, %v2208
        %2225 = vadd.xlane.f32.xlu0 %v2209
        %v2226 = vpop.xlane.xlu0 %2225
        %2227 = vadd.xlane.f32.xlu0 %v2210
        %v2228 = vpop.xlane.xlu0 %2227
        %2229 = vadd.xlane.f32.xlu0 %v2211
        %v2230 = vpop.xlane.xlu0 %2229
        %2231 = vadd.xlane.f32.xlu0 %v2212
        %v2232 = vpop.xlane.xlu0 %2231
        %2233 = vadd.xlane.f32.xlu0 %v2213
        %v2234 = vpop.xlane.xlu0 %2233
        %2235 = vadd.xlane.f32.xlu0 %v2214
        %v2236 = vpop.xlane.xlu0 %2235
        %2237 = vadd.xlane.f32.xlu0 %v2215
        %v2238 = vpop.xlane.xlu0 %2237
        %2239 = vadd.xlane.f32.xlu0 %v2216
        %v2240 = vpop.xlane.xlu0 %2239
        %2241 = vadd.xlane.f32.xlu0 %v2217
        %v2242 = vpop.xlane.xlu0 %2241
        %2243 = vadd.xlane.f32.xlu0 %v2218
        %v2244 = vpop.xlane.xlu0 %2243
        %2245 = vadd.xlane.f32.xlu0 %v2219
        %v2246 = vpop.xlane.xlu0 %2245
        %2247 = vadd.xlane.f32.xlu0 %v2220
        %v2248 = vpop.xlane.xlu0 %2247
        %2249 = vadd.xlane.f32.xlu0 %v2221
        %v2250 = vpop.xlane.xlu0 %2249
        %2251 = vadd.xlane.f32.xlu0 %v2222
        %v2252 = vpop.xlane.xlu0 %2251
        %2253 = vadd.xlane.f32.xlu0 %v2223
        %v2254 = vpop.xlane.xlu0 %2253
        %2255 = vadd.xlane.f32.xlu0 %v2224
        %v2256 = vpop.xlane.xlu0 %2255
        %v2257 = vmul.f32 %v2226, %v550
        %v2258 = vmul.f32 %v2228, %v550
        %v2259 = vmul.f32 %v2230, %v550
        %v2260 = vmul.f32 %v2232, %v550
        %v2261 = vmul.f32 %v2234, %v550
        %v2262 = vmul.f32 %v2236, %v550
        %v2263 = vmul.f32 %v2238, %v550
        %v2264 = vmul.f32 %v2240, %v550
        %v2265 = vmul.f32 %v2242, %v550
        %v2266 = vmul.f32 %v2244, %v550
        %v2267 = vmul.f32 %v2246, %v550
        %v2268 = vmul.f32 %v2248, %v550
        %v2269 = vmul.f32 %v2250, %v550
        %v2270 = vmul.f32 %v2252, %v550
        %v2271 = vmul.f32 %v2254, %v550
        %v2272 = vmul.f32 %v2256, %v550
        %v2273 = vadd.f32 %v2257, 1e-05
        %v2274 = vadd.f32 %v2258, 1e-05
        %v2275 = vadd.f32 %v2259, 1e-05
        %v2276 = vadd.f32 %v2260, 1e-05
        %v2277 = vadd.f32 %v2261, 1e-05
        %v2278 = vadd.f32 %v2262, 1e-05
        %v2279 = vadd.f32 %v2263, 1e-05
        %v2280 = vadd.f32 %v2264, 1e-05
        %v2281 = vadd.f32 %v2265, 1e-05
        %v2282 = vadd.f32 %v2266, 1e-05
        %v2283 = vadd.f32 %v2267, 1e-05
        %v2284 = vadd.f32 %v2268, 1e-05
        %v2285 = vadd.f32 %v2269, 1e-05
        %v2286 = vadd.f32 %v2270, 1e-05
        %v2287 = vadd.f32 %v2271, 1e-05
        %v2288 = vadd.f32 %v2272, 1e-05
        %v2289 = vrsqrt.pop %v2273
        %v2290 = vrsqrt.pop %v2274
        %v2291 = vrsqrt.pop %v2275
        %v2292 = vrsqrt.pop %v2276
        %v2293 = vrsqrt.pop %v2277
        %v2294 = vrsqrt.pop %v2278
        %v2295 = vrsqrt.pop %v2279
        %v2296 = vrsqrt.pop %v2280
        %v2297 = vrsqrt.pop %v2281
        %v2298 = vrsqrt.pop %v2282
        %v2299 = vrsqrt.pop %v2283
        %v2300 = vrsqrt.pop %v2284
        %v2301 = vrsqrt.pop %v2285
        %v2302 = vrsqrt.pop %v2286
        %v2303 = vrsqrt.pop %v2287
        %v2304 = vrsqrt.pop %v2288
        %v2305 = vmul.f32 %v2193, %v2289
        %v2306 = vmul.f32 %v2194, %v2290
        %v2307 = vmul.f32 %v2195, %v2291
        %v2308 = vmul.f32 %v2196, %v2292
        %v2309 = vmul.f32 %v2197, %v2293
        %v2310 = vmul.f32 %v2198, %v2294
        %v2311 = vmul.f32 %v2199, %v2295
        %v2312 = vmul.f32 %v2200, %v2296
        %v2313 = vmul.f32 %v2201, %v2297
        %v2314 = vmul.f32 %v2202, %v2298
        %v2315 = vmul.f32 %v2203, %v2299
        %v2316 = vmul.f32 %v2204, %v2300
        %v2317 = vmul.f32 %v2205, %v2301
        %v2318 = vmul.f32 %v2206, %v2302
        %v2319 = vmul.f32 %v2207, %v2303
        %v2320 = vmul.f32 %v2208, %v2304
        %v2321 = vlaneseq
        %v2322 = vshrl.u32 %v2321, 7
        %v2323 = vsub.s32 0, %v2322
        %v2324 = vrot.slane %v2143, %v2323
        %v2325 = vmul.f32 %v2305, %v2324
        %v2326 = vmul.f32 %v2306, %v2324
        %v2327 = vmul.f32 %v2307, %v2324
        %v2328 = vmul.f32 %v2308, %v2324
        %v2329 = vmul.f32 %v2309, %v2324
        %v2330 = vmul.f32 %v2310, %v2324
        %v2331 = vmul.f32 %v2311, %v2324
        %v2332 = vmul.f32 %v2312, %v2324
        %v2333 = vmul.f32 %v2313, %v2324
        %v2334 = vmul.f32 %v2314, %v2324
        %v2335 = vmul.f32 %v2315, %v2324
        %v2336 = vmul.f32 %v2316, %v2324
        %v2337 = vmul.f32 %v2317, %v2324
        %v2338 = vmul.f32 %v2318, %v2324
        %v2339 = vmul.f32 %v2319, %v2324
        %v2340 = vmul.f32 %v2320, %v2324
        %v2341 = vlaneseq
        %v2342 = vshrl.u32 %v2341, 7
        %v2343 = vsub.s32 0, %v2342
        %v2344 = vrot.slane %v2144, %v2343
        %v2345 = vadd.f32 %v2325, %v2344
        %v2346 = vadd.f32 %v2326, %v2344
        %v2347 = vadd.f32 %v2327, %v2344
        %v2348 = vadd.f32 %v2328, %v2344
        %v2349 = vadd.f32 %v2329, %v2344
        %v2350 = vadd.f32 %v2330, %v2344
        %v2351 = vadd.f32 %v2331, %v2344
        %v2352 = vadd.f32 %v2332, %v2344
        %v2353 = vadd.f32 %v2333, %v2344
        %v2354 = vadd.f32 %v2334, %v2344
        %v2355 = vadd.f32 %v2335, %v2344
        %v2356 = vadd.f32 %v2336, %v2344
        %v2357 = vadd.f32 %v2337, %v2344
        %v2358 = vadd.f32 %v2338, %v2344
        %v2359 = vadd.f32 %v2339, %v2344
        %v2360 = vadd.f32 %v2340, %v2344
        %v2361 = vpack.c.bf16 %v2346, %v2345
        %v2362 = vpack.c.bf16 %v2348, %v2347
        %v2363 = vpack.c.bf16 %v2350, %v2349
        %v2364 = vpack.c.bf16 %v2352, %v2351
        %v2365 = vpack.c.bf16 %v2354, %v2353
        %v2366 = vpack.c.bf16 %v2356, %v2355
        %v2367 = vpack.c.bf16 %v2358, %v2357
        %v2368 = vpack.c.bf16 %v2360, %v2359
        %s2369 = scalar_lea.vmem [#allocation2], 256
        %v2370 = vld [vmem:[%s2369] sm:$0xff]
        %v2371 = vld [vmem:[%s2369 + $0x8] sm:$0xff]
        %v2372 = vld [vmem:[%s2369 + $0x10] sm:$0xff]
        %v2373 = vld [vmem:[%s2369 + $0x18] sm:$0xff]
        %v2374 = vld [vmem:[%s2369 + $0x20] sm:$0xff]
        %v2375 = vld [vmem:[%s2369 + $0x28] sm:$0xff]
        %v2376 = vld [vmem:[%s2369 + $0x30] sm:$0xff]
        %v2377 = vld [vmem:[%s2369 + $0x38] sm:$0xff]
        %v2378 = vld [vmem:[%s2369 + $0x40] sm:$0xff]
        %v2379 = vld [vmem:[%s2369 + $0x48] sm:$0xff]
        %v2380 = vld [vmem:[%s2369 + $0x50] sm:$0xff]
        %v2381 = vld [vmem:[%s2369 + $0x58] sm:$0xff]
        %v2382 = vld [vmem:[%s2369 + $0x60] sm:$0xff]
        %v2383 = vld [vmem:[%s2369 + $0x68] sm:$0xff]
        %v2384 = vld [vmem:[%s2369 + $0x70] sm:$0xff]
        %v2385 = vld [vmem:[%s2369 + $0x78] sm:$0xff]
        %v2386 = vld [vmem:[%s2369 + $0x80] sm:$0xff]
        %v2387 = vld [vmem:[%s2369 + $0x88] sm:$0xff]
        %v2388 = vld [vmem:[%s2369 + $0x90] sm:$0xff]
        %v2389 = vld [vmem:[%s2369 + $0x98] sm:$0xff]
        %v2390 = vld [vmem:[%s2369 + $0xa0] sm:$0xff]
        %v2391 = vld [vmem:[%s2369 + $0xa8] sm:$0xff]
        %v2392 = vld [vmem:[%s2369 + $0xb0] sm:$0xff]
        %v2393 = vld [vmem:[%s2369 + $0xb8] sm:$0xff]
        %v2394 = vld [vmem:[%s2369 + $0xc0] sm:$0xff]
        %v2395 = vld [vmem:[%s2369 + $0xc8] sm:$0xff]
        %v2396 = vld [vmem:[%s2369 + $0xd0] sm:$0xff]
        %v2397 = vld [vmem:[%s2369 + $0xd8] sm:$0xff]
        %v2398 = vld [vmem:[%s2369 + $0xe0] sm:$0xff]
        %v2399 = vld [vmem:[%s2369 + $0xe8] sm:$0xff]
        %v2400 = vld [vmem:[%s2369 + $0xf0] sm:$0xff]
        %v2401 = vld [vmem:[%s2369 + $0xf8] sm:$0xff]
        %s2402 = scalar_lea.vmem %s5, 1
        %v2403 = vld [vmem:[%s2402] ss:$2 sm:$0xf]
        %v2405 = vlaneseq
        %v2406 = vshrl.u32 %v2405, 7
        %v2407 = vsub.s32 0, %v2406
        %v2408 = vrot.slane %v2403, %v2407
        %v2409 = vlaneseq
        %v2410 = vshrl.u32 %v2409, 7
        %v2411 = vsub.s32 1, %v2410
        %v2412 = vrot.slane %v2403, %v2411
        %v2413 = vlaneseq
        %v2414 = vshrl.u32 %v2413, 7
        %v2415 = vsub.s32 2, %v2414
        %v2416 = vrot.slane %v2403, %v2415
        %v2417 = vlaneseq
        %v2418 = vshrl.u32 %v2417, 7
        %v2419 = vsub.s32 3, %v2418
        %v2420 = vrot.slane %v2403, %v2419
        %v2457 = vunpack.c.l.b16 %v2370
        %v2458 = vunpack.c.h.b16 %v2370
        %v2459 = vunpack.c.l.b16 %v2371
        %v2460 = vunpack.c.h.b16 %v2371
        %v2461 = vunpack.c.l.b16 %v2372
        %v2462 = vunpack.c.h.b16 %v2372
        %v2463 = vunpack.c.l.b16 %v2373
        %v2464 = vunpack.c.h.b16 %v2373
        %v2465 = vunpack.c.l.b16 %v2374
        %v2466 = vunpack.c.h.b16 %v2374
        %v2467 = vunpack.c.l.b16 %v2375
        %v2468 = vunpack.c.h.b16 %v2375
        %v2469 = vunpack.c.l.b16 %v2376
        %v2470 = vunpack.c.h.b16 %v2376
        %v2471 = vunpack.c.l.b16 %v2377
        %v2472 = vunpack.c.h.b16 %v2377
        %v2473 = vunpack.c.l.b16 %v2378
        %v2474 = vunpack.c.h.b16 %v2378
        %v2475 = vunpack.c.l.b16 %v2379
        %v2476 = vunpack.c.h.b16 %v2379
        %v2477 = vunpack.c.l.b16 %v2380
        %v2478 = vunpack.c.h.b16 %v2380
        %v2479 = vunpack.c.l.b16 %v2381
        %v2480 = vunpack.c.h.b16 %v2381
        %v2481 = vunpack.c.l.b16 %v2382
        %v2482 = vunpack.c.h.b16 %v2382
        %v2483 = vunpack.c.l.b16 %v2383
        %v2484 = vunpack.c.h.b16 %v2383
        %v2485 = vunpack.c.l.b16 %v2384
        %v2486 = vunpack.c.h.b16 %v2384
        %v2487 = vunpack.c.l.b16 %v2385
        %v2488 = vunpack.c.h.b16 %v2385
        %v2489 = vunpack.c.l.b16 %v2386
        %v2490 = vunpack.c.h.b16 %v2386
        %v2491 = vunpack.c.l.b16 %v2387
        %v2492 = vunpack.c.h.b16 %v2387
        %v2493 = vunpack.c.l.b16 %v2388
        %v2494 = vunpack.c.h.b16 %v2388
        %v2495 = vunpack.c.l.b16 %v2389
        %v2496 = vunpack.c.h.b16 %v2389
        %v2497 = vunpack.c.l.b16 %v2390
        %v2498 = vunpack.c.h.b16 %v2390
        %v2499 = vunpack.c.l.b16 %v2391
        %v2500 = vunpack.c.h.b16 %v2391
        %v2501 = vunpack.c.l.b16 %v2392
        %v2502 = vunpack.c.h.b16 %v2392
        %v2503 = vunpack.c.l.b16 %v2393
        %v2504 = vunpack.c.h.b16 %v2393
        %v2505 = vunpack.c.l.b16 %v2394
        %v2506 = vunpack.c.h.b16 %v2394
        %v2507 = vunpack.c.l.b16 %v2395
        %v2508 = vunpack.c.h.b16 %v2395
        %v2509 = vunpack.c.l.b16 %v2396
        %v2510 = vunpack.c.h.b16 %v2396
        %v2511 = vunpack.c.l.b16 %v2397
        %v2512 = vunpack.c.h.b16 %v2397
        %v2513 = vunpack.c.l.b16 %v2398
        %v2514 = vunpack.c.h.b16 %v2398
        %v2515 = vunpack.c.l.b16 %v2399
        %v2516 = vunpack.c.h.b16 %v2399
        %v2517 = vunpack.c.l.b16 %v2400
        %v2518 = vunpack.c.h.b16 %v2400
        %v2519 = vunpack.c.l.b16 %v2401
        %v2520 = vunpack.c.h.b16 %v2401
        %v2521 = vpack.c.b16 %v2461, %v2457
        %v2522 = vpack.c.b16 %v2462, %v2458
        %v2523 = vpack.c.b16 %v2463, %v2459
        %v2524 = vpack.c.b16 %v2464, %v2460
        %v2525 = vpack.c.b16 %v2469, %v2465
        %v2526 = vpack.c.b16 %v2470, %v2466
        %v2527 = vpack.c.b16 %v2471, %v2467
        %v2528 = vpack.c.b16 %v2472, %v2468
        %v2529 = vpack.c.b16 %v2477, %v2473
        %v2530 = vpack.c.b16 %v2478, %v2474
        %v2531 = vpack.c.b16 %v2479, %v2475
        %v2532 = vpack.c.b16 %v2480, %v2476
        %v2533 = vpack.c.b16 %v2485, %v2481
        %v2534 = vpack.c.b16 %v2486, %v2482
        %v2535 = vpack.c.b16 %v2487, %v2483
        %v2536 = vpack.c.b16 %v2488, %v2484
        %v2537 = vpack.c.b16 %v2493, %v2489
        %v2538 = vpack.c.b16 %v2494, %v2490
        %v2539 = vpack.c.b16 %v2495, %v2491
        %v2540 = vpack.c.b16 %v2496, %v2492
        %v2541 = vpack.c.b16 %v2501, %v2497
        %v2542 = vpack.c.b16 %v2502, %v2498
        %v2543 = vpack.c.b16 %v2503, %v2499
        %v2544 = vpack.c.b16 %v2504, %v2500
        %v2545 = vpack.c.b16 %v2509, %v2505
        %v2546 = vpack.c.b16 %v2510, %v2506
        %v2547 = vpack.c.b16 %v2511, %v2507
        %v2548 = vpack.c.b16 %v2512, %v2508
        %v2549 = vpack.c.b16 %v2517, %v2513
        %v2550 = vpack.c.b16 %v2518, %v2514
        %v2551 = vpack.c.b16 %v2519, %v2515
        %v2552 = vpack.c.b16 %v2520, %v2516
        %2585 = vmatprep.subr.bf16.mxu0 %v2522
        %2586 = vmatpush1.bf16.msra.mxu0 %v2521
        %2587 = vmatprep.subr.bf16.mxu0 %v2526
        %2588 = vmatpush1.bf16.msra.mxu0 %v2525
        %2589 = vmatprep.subr.bf16.mxu0 %v2530
        %2590 = vmatpush1.bf16.msra.mxu0 %v2529
        %2591 = vmatprep.subr.bf16.mxu0 %v2534
        %2592 = vmatpush1.bf16.msra.mxu0 %v2533
        %2593 = vmatprep.subr.bf16.mxu0 %v2538
        %2594 = vmatpush1.bf16.msra.mxu0 %v2537
        %2595 = vmatprep.subr.bf16.mxu0 %v2542
        %2596 = vmatpush1.bf16.msra.mxu0 %v2541
        %2597 = vmatprep.subr.bf16.mxu0 %v2546
        %2598 = vmatpush1.bf16.msra.mxu0 %v2545
        %2599 = vmatprep.subr.bf16.mxu0 %v2550
        %2600 = vmatpush1.bf16.msra.mxu0 %v2549
        %2601 = vmatprep.subr.bf16.mxu0 0
        %2602 = vmatpush1.bf16.msra.mxu0 0
        %2603 = vmatprep.subr.bf16.mxu0 0
        %2604 = vmatpush1.bf16.msra.mxu0 0
        %2605 = vmatprep.subr.bf16.mxu0 0
        %2606 = vmatpush1.bf16.msra.mxu0 0
        %2607 = vmatprep.subr.bf16.mxu0 0
        %2608 = vmatpush1.bf16.msra.mxu0 0
        %2609 = vmatprep.subr.bf16.mxu0 0
        %2610 = vmatpush1.bf16.msra.mxu0 0
        %2611 = vmatprep.subr.bf16.mxu0 0
        %2612 = vmatpush1.bf16.msra.mxu0 0
        %2613 = vmatprep.subr.bf16.mxu0 0
        %2614 = vmatpush1.bf16.msra.mxu0 0
        %2615 = vmatprep.subr.bf16.mxu0 0
        %2616 = vmatpush1.bf16.msra.mxu0 0
        %2617 = vmatprep.mubr.bf16.mxu0 0
        %2618 = vmatmul.mubr.bf16.gmra.mrb[0].mxu0 %v2361
        %v2619 = vpop.f32.mrb[0].mxu0
        %v2620 = vadd.f32 %v2408, %v2619
        %v2621 = vpop.f32.mrb[0].mxu0
        %v2622 = vadd.f32 %v2412, %v2621
        %v2623 = vpop.f32.mrb[0].mxu0
        %v2624 = vadd.f32 %v2408, %v2623
        %v2625 = vpop.f32.mrb[0].mxu0
        %v2626 = vadd.f32 %v2412, %v2625
        %2627 = vmatprep.mubr.bf16.mxu0 0
        %2628 = vmatmul.mubr.bf16.gmra.mrb[0].mxu0 %v2362
        %v2629 = vpop.f32.mrb[0].mxu0
        %v2630 = vadd.f32 %v2408, %v2629
        %v2631 = vpop.f32.mrb[0].mxu0
        %v2632 = vadd.f32 %v2412, %v2631
        %v2633 = vpop.f32.mrb[0].mxu0
        %v2634 = vadd.f32 %v2408, %v2633
        %v2635 = vpop.f32.mrb[0].mxu0
        %v2636 = vadd.f32 %v2412, %v2635
        %2637 = vmatprep.mubr.bf16.mxu0 0
        %2638 = vmatmul.mubr.bf16.gmra.mrb[0].mxu0 %v2363
        %v2639 = vpop.f32.mrb[0].mxu0
        %v2640 = vadd.f32 %v2408, %v2639
        %v2641 = vpop.f32.mrb[0].mxu0
        %v2642 = vadd.f32 %v2412, %v2641
        %v2643 = vpop.f32.mrb[0].mxu0
        %v2644 = vadd.f32 %v2408, %v2643
        %v2645 = vpop.f32.mrb[0].mxu0
        %v2646 = vadd.f32 %v2412, %v2645
        %2647 = vmatprep.mubr.bf16.mxu0 0
        %2648 = vmatmul.mubr.bf16.gmra.mrb[0].mxu0 %v2364
        %v2649 = vpop.f32.mrb[0].mxu0
        %v2650 = vadd.f32 %v2408, %v2649
        %v2651 = vpop.f32.mrb[0].mxu0
        %v2652 = vadd.f32 %v2412, %v2651
        %v2653 = vpop.f32.mrb[0].mxu0
        %v2654 = vadd.f32 %v2408, %v2653
        %v2655 = vpop.f32.mrb[0].mxu0
        %v2656 = vadd.f32 %v2412, %v2655
        %2657 = vmatprep.mubr.bf16.mxu0 0
        %2658 = vmatmul.mubr.bf16.gmra.mrb[0].mxu0 %v2365
        %v2659 = vpop.f32.mrb[0].mxu0
        %v2660 = vadd.f32 %v2408, %v2659
        %v2661 = vpop.f32.mrb[0].mxu0
        %v2662 = vadd.f32 %v2412, %v2661
        %v2663 = vpop.f32.mrb[0].mxu0
        %v2664 = vadd.f32 %v2408, %v2663
        %v2665 = vpop.f32.mrb[0].mxu0
        %v2666 = vadd.f32 %v2412, %v2665
        %2667 = vmatprep.mubr.bf16.mxu0 0
        %2668 = vmatmul.mubr.bf16.gmra.mrb[0].mxu0 %v2366
        %v2669 = vpop.f32.mrb[0].mxu0
        %v2670 = vadd.f32 %v2408, %v2669
        %v2671 = vpop.f32.mrb[0].mxu0
        %v2672 = vadd.f32 %v2412, %v2671
        %v2673 = vpop.f32.mrb[0].mxu0
        %v2674 = vadd.f32 %v2408, %v2673
        %v2675 = vpop.f32.mrb[0].mxu0
        %v2676 = vadd.f32 %v2412, %v2675
        %2677 = vmatprep.mubr.bf16.mxu0 0
        %2678 = vmatmul.mubr.bf16.gmra.mrb[0].mxu0 %v2367
        %v2679 = vpop.f32.mrb[0].mxu0
        %v2680 = vadd.f32 %v2408, %v2679
        %v2681 = vpop.f32.mrb[0].mxu0
        %v2682 = vadd.f32 %v2412, %v2681
        %v2683 = vpop.f32.mrb[0].mxu0
        %v2684 = vadd.f32 %v2408, %v2683
        %v2685 = vpop.f32.mrb[0].mxu0
        %v2686 = vadd.f32 %v2412, %v2685
        %2687 = vmatprep.mubr.bf16.mxu0 0
        %2688 = vmatmul.mubr.bf16.gmra.mrb[0].mxu0 %v2368
        %v2689 = vpop.f32.mrb[0].mxu0
        %v2690 = vadd.f32 %v2408, %v2689
        %v2691 = vpop.f32.mrb[0].mxu0
        %v2692 = vadd.f32 %v2412, %v2691
        %v2693 = vpop.f32.mrb[0].mxu0
        %v2694 = vadd.f32 %v2408, %v2693
        %v2695 = vpop.f32.mrb[0].mxu0
        %v2696 = vadd.f32 %v2412, %v2695
        %2697 = vdwg.mxu0
        %2698 = vmatprep.subr.bf16.mxu0 %v2524
        %2699 = vmatpush1.bf16.msra.mxu0 %v2523
        %2700 = vmatprep.subr.bf16.mxu0 %v2528
        %2701 = vmatpush1.bf16.msra.mxu0 %v2527
        %2702 = vmatprep.subr.bf16.mxu0 %v2532
        %2703 = vmatpush1.bf16.msra.mxu0 %v2531
        %2704 = vmatprep.subr.bf16.mxu0 %v2536
        %2705 = vmatpush1.bf16.msra.mxu0 %v2535
        %2706 = vmatprep.subr.bf16.mxu0 %v2540
        %2707 = vmatpush1.bf16.msra.mxu0 %v2539
        %2708 = vmatprep.subr.bf16.mxu0 %v2544
        %2709 = vmatpush1.bf16.msra.mxu0 %v2543
        %2710 = vmatprep.subr.bf16.mxu0 %v2548
        %2711 = vmatpush1.bf16.msra.mxu0 %v2547
        %2712 = vmatprep.subr.bf16.mxu0 %v2552
        %2713 = vmatpush1.bf16.msra.mxu0 %v2551
        %2714 = vmatprep.subr.bf16.mxu0 0
        %2715 = vmatpush1.bf16.msra.mxu0 0
        %2716 = vmatprep.subr.bf16.mxu0 0
        %2717 = vmatpush1.bf16.msra.mxu0 0
        %2718 = vmatprep.subr.bf16.mxu0 0
        %2719 = vmatpush1.bf16.msra.mxu0 0
        %2720 = vmatprep.subr.bf16.mxu0 0
        %2721 = vmatpush1.bf16.msra.mxu0 0
        %2722 = vmatprep.subr.bf16.mxu0 0
        %2723 = vmatpush1.bf16.msra.mxu0 0
        %2724 = vmatprep.subr.bf16.mxu0 0
        %2725 = vmatpush1.bf16.msra.mxu0 0
        %2726 = vmatprep.subr.bf16.mxu0 0
        %2727 = vmatpush1.bf16.msra.mxu0 0
        %2728 = vmatprep.subr.bf16.mxu0 0
        %2729 = vmatpush1.bf16.msra.mxu0 0
        %2730 = vmatprep.mubr.bf16.mxu0 0
        %2731 = vmatmul.mubr.bf16.gmra.mrb[0].mxu0 %v2361
        %v2732 = vpop.f32.mrb[0].mxu0
        %v2733 = vadd.f32 %v2416, %v2732
        %v2734 = vpop.f32.mrb[0].mxu0
        %v2735 = vadd.f32 %v2420, %v2734
        %v2736 = vpop.f32.mrb[0].mxu0
        %v2737 = vadd.f32 %v2416, %v2736
        %v2738 = vpop.f32.mrb[0].mxu0
        %v2739 = vadd.f32 %v2420, %v2738
        %2740 = vmatprep.mubr.bf16.mxu0 0
        %2741 = vmatmul.mubr.bf16.gmra.mrb[0].mxu0 %v2362
        %v2742 = vpop.f32.mrb[0].mxu0
        %v2743 = vadd.f32 %v2416, %v2742
        %v2744 = vpop.f32.mrb[0].mxu0
        %v2745 = vadd.f32 %v2420, %v2744
        %v2746 = vpop.f32.mrb[0].mxu0
        %v2747 = vadd.f32 %v2416, %v2746
        %v2748 = vpop.f32.mrb[0].mxu0
        %v2749 = vadd.f32 %v2420, %v2748
        %2750 = vmatprep.mubr.bf16.mxu0 0
        %2751 = vmatmul.mubr.bf16.gmra.mrb[0].mxu0 %v2363
        %v2752 = vpop.f32.mrb[0].mxu0
        %v2753 = vadd.f32 %v2416, %v2752
        %v2754 = vpop.f32.mrb[0].mxu0
        %v2755 = vadd.f32 %v2420, %v2754
        %v2756 = vpop.f32.mrb[0].mxu0
        %v2757 = vadd.f32 %v2416, %v2756
        %v2758 = vpop.f32.mrb[0].mxu0
        %v2759 = vadd.f32 %v2420, %v2758
        %2760 = vmatprep.mubr.bf16.mxu0 0
        %2761 = vmatmul.mubr.bf16.gmra.mrb[0].mxu0 %v2364
        %v2762 = vpop.f32.mrb[0].mxu0
        %v2763 = vadd.f32 %v2416, %v2762
        %v2764 = vpop.f32.mrb[0].mxu0
        %v2765 = vadd.f32 %v2420, %v2764
        %v2766 = vpop.f32.mrb[0].mxu0
        %v2767 = vadd.f32 %v2416, %v2766
        %v2768 = vpop.f32.mrb[0].mxu0
        %v2769 = vadd.f32 %v2420, %v2768
        %2770 = vmatprep.mubr.bf16.mxu0 0
        %2771 = vmatmul.mubr.bf16.gmra.mrb[0].mxu0 %v2365
        %v2772 = vpop.f32.mrb[0].mxu0
        %v2773 = vadd.f32 %v2416, %v2772
        %v2774 = vpop.f32.mrb[0].mxu0
        %v2775 = vadd.f32 %v2420, %v2774
        %v2776 = vpop.f32.mrb[0].mxu0
        %v2777 = vadd.f32 %v2416, %v2776
        %v2778 = vpop.f32.mrb[0].mxu0
        %v2779 = vadd.f32 %v2420, %v2778
        %2780 = vmatprep.mubr.bf16.mxu0 0
        %2781 = vmatmul.mubr.bf16.gmra.mrb[0].mxu0 %v2366
        %v2782 = vpop.f32.mrb[0].mxu0
        %v2783 = vadd.f32 %v2416, %v2782
        %v2784 = vpop.f32.mrb[0].mxu0
        %v2785 = vadd.f32 %v2420, %v2784
        %v2786 = vpop.f32.mrb[0].mxu0
        %v2787 = vadd.f32 %v2416, %v2786
        %v2788 = vpop.f32.mrb[0].mxu0
        %v2789 = vadd.f32 %v2420, %v2788
        %2790 = vmatprep.mubr.bf16.mxu0 0
        %2791 = vmatmul.mubr.bf16.gmra.mrb[0].mxu0 %v2367
        %v2792 = vpop.f32.mrb[0].mxu0
        %v2793 = vadd.f32 %v2416, %v2792
        %v2794 = vpop.f32.mrb[0].mxu0
        %v2795 = vadd.f32 %v2420, %v2794
        %v2796 = vpop.f32.mrb[0].mxu0
        %v2797 = vadd.f32 %v2416, %v2796
        %v2798 = vpop.f32.mrb[0].mxu0
        %v2799 = vadd.f32 %v2420, %v2798
        %2800 = vmatprep.mubr.bf16.mxu0 0
        %2801 = vmatmul.mubr.bf16.gmra.mrb[0].mxu0 %v2368
        %v2802 = vpop.f32.mrb[0].mxu0
        %v2803 = vadd.f32 %v2416, %v2802
        %v2804 = vpop.f32.mrb[0].mxu0
        %v2805 = vadd.f32 %v2420, %v2804
        %v2806 = vpop.f32.mrb[0].mxu0
        %v2807 = vadd.f32 %v2416, %v2806
        %v2808 = vpop.f32.mrb[0].mxu0
        %v2809 = vadd.f32 %v2420, %v2808
        %2810 = vdwg.mxu0
        %v2811 = vmax.f32 %v2620, 0.0
        %v2812 = vmax.f32 %v2622, 0.0
        %v2813 = vmax.f32 %v2733, 0.0
        %v2814 = vmax.f32 %v2735, 0.0
        %v2815 = vmax.f32 %v2624, 0.0
        %v2816 = vmax.f32 %v2626, 0.0
        %v2817 = vmax.f32 %v2737, 0.0
        %v2818 = vmax.f32 %v2739, 0.0
        %v2819 = vmax.f32 %v2630, 0.0
        %v2820 = vmax.f32 %v2632, 0.0
        %v2821 = vmax.f32 %v2743, 0.0
        %v2822 = vmax.f32 %v2745, 0.0
        %v2823 = vmax.f32 %v2634, 0.0
        %v2824 = vmax.f32 %v2636, 0.0
        %v2825 = vmax.f32 %v2747, 0.0
        %v2826 = vmax.f32 %v2749, 0.0
        %v2827 = vmax.f32 %v2640, 0.0
        %v2828 = vmax.f32 %v2642, 0.0
        %v2829 = vmax.f32 %v2753, 0.0
        %v2830 = vmax.f32 %v2755, 0.0
        %v2831 = vmax.f32 %v2644, 0.0
        %v2832 = vmax.f32 %v2646, 0.0
        %v2833 = vmax.f32 %v2757, 0.0
        %v2834 = vmax.f32 %v2759, 0.0
        %v2835 = vmax.f32 %v2650, 0.0
        %v2836 = vmax.f32 %v2652, 0.0
        %v2837 = vmax.f32 %v2763, 0.0
        %v2838 = vmax.f32 %v2765, 0.0
        %v2839 = vmax.f32 %v2654, 0.0
        %v2840 = vmax.f32 %v2656, 0.0
        %v2841 = vmax.f32 %v2767, 0.0
        %v2842 = vmax.f32 %v2769, 0.0
        %v2843 = vmax.f32 %v2660, 0.0
        %v2844 = vmax.f32 %v2662, 0.0
        %v2845 = vmax.f32 %v2773, 0.0
        %v2846 = vmax.f32 %v2775, 0.0
        %v2847 = vmax.f32 %v2664, 0.0
        %v2848 = vmax.f32 %v2666, 0.0
        %v2849 = vmax.f32 %v2777, 0.0
        %v2850 = vmax.f32 %v2779, 0.0
        %v2851 = vmax.f32 %v2670, 0.0
        %v2852 = vmax.f32 %v2672, 0.0
        %v2853 = vmax.f32 %v2783, 0.0
        %v2854 = vmax.f32 %v2785, 0.0
        %v2855 = vmax.f32 %v2674, 0.0
        %v2856 = vmax.f32 %v2676, 0.0
        %v2857 = vmax.f32 %v2787, 0.0
        %v2858 = vmax.f32 %v2789, 0.0
        %v2859 = vmax.f32 %v2680, 0.0
        %v2860 = vmax.f32 %v2682, 0.0
        %v2861 = vmax.f32 %v2793, 0.0
        %v2862 = vmax.f32 %v2795, 0.0
        %v2863 = vmax.f32 %v2684, 0.0
        %v2864 = vmax.f32 %v2686, 0.0
        %v2865 = vmax.f32 %v2797, 0.0
        %v2866 = vmax.f32 %v2799, 0.0
        %v2867 = vmax.f32 %v2690, 0.0
        %v2868 = vmax.f32 %v2692, 0.0
        %v2869 = vmax.f32 %v2803, 0.0
        %v2870 = vmax.f32 %v2805, 0.0
        %v2871 = vmax.f32 %v2694, 0.0
        %v2872 = vmax.f32 %v2696, 0.0
        %v2873 = vmax.f32 %v2807, 0.0
        %v2874 = vmax.f32 %v2809, 0.0
        %v2875 = vpack.c.bf16 %v2815, %v2811
        %v2876 = vpack.c.bf16 %v2816, %v2812
        %v2877 = vpack.c.bf16 %v2817, %v2813
        %v2878 = vpack.c.bf16 %v2818, %v2814
        %v2879 = vpack.c.bf16 %v2823, %v2819
        %v2880 = vpack.c.bf16 %v2824, %v2820
        %v2881 = vpack.c.bf16 %v2825, %v2821
        %v2882 = vpack.c.bf16 %v2826, %v2822
        %v2883 = vpack.c.bf16 %v2831, %v2827
        %v2884 = vpack.c.bf16 %v2832, %v2828
        %v2885 = vpack.c.bf16 %v2833, %v2829
        %v2886 = vpack.c.bf16 %v2834, %v2830
        %v2887 = vpack.c.bf16 %v2839, %v2835
        %v2888 = vpack.c.bf16 %v2840, %v2836
        %v2889 = vpack.c.bf16 %v2841, %v2837
        %v2890 = vpack.c.bf16 %v2842, %v2838
        %v2891 = vpack.c.bf16 %v2847, %v2843
        %v2892 = vpack.c.bf16 %v2848, %v2844
        %v2893 = vpack.c.bf16 %v2849, %v2845
        %v2894 = vpack.c.bf16 %v2850, %v2846
        %v2895 = vpack.c.bf16 %v2855, %v2851
        %v2896 = vpack.c.bf16 %v2856, %v2852
        %v2897 = vpack.c.bf16 %v2857, %v2853
        %v2898 = vpack.c.bf16 %v2858, %v2854
        %v2899 = vpack.c.bf16 %v2863, %v2859
        %v2900 = vpack.c.bf16 %v2864, %v2860
        %v2901 = vpack.c.bf16 %v2865, %v2861
        %v2902 = vpack.c.bf16 %v2866, %v2862
        %v2903 = vpack.c.bf16 %v2871, %v2867
        %v2904 = vpack.c.bf16 %v2872, %v2868
        %v2905 = vpack.c.bf16 %v2873, %v2869
        %v2906 = vpack.c.bf16 %v2874, %v2870
        %s2907 = scalar_lea.vmem [#allocation4], 256
        %v2908 = vld [vmem:[%s2907] sm:$0xf]
        %v2909 = vld [vmem:[%s2907 + $0x4] sm:$0xf]
        %v2910 = vld [vmem:[%s2907 + $0x8] sm:$0xf]
        %v2911 = vld [vmem:[%s2907 + $0xc] sm:$0xf]
        %v2912 = vld [vmem:[%s2907 + $0x10] sm:$0xf]
        %v2913 = vld [vmem:[%s2907 + $0x14] sm:$0xf]
        %v2914 = vld [vmem:[%s2907 + $0x18] sm:$0xf]
        %v2915 = vld [vmem:[%s2907 + $0x1c] sm:$0xf]
        %v2916 = vld [vmem:[%s2907 + $0x20] sm:$0xf]
        %v2917 = vld [vmem:[%s2907 + $0x24] sm:$0xf]
        %v2918 = vld [vmem:[%s2907 + $0x28] sm:$0xf]
        %v2919 = vld [vmem:[%s2907 + $0x2c] sm:$0xf]
        %v2920 = vld [vmem:[%s2907 + $0x30] sm:$0xf]
        %v2921 = vld [vmem:[%s2907 + $0x34] sm:$0xf]
        %v2922 = vld [vmem:[%s2907 + $0x38] sm:$0xf]
        %v2923 = vld [vmem:[%s2907 + $0x3c] sm:$0xf]
        %v2924 = vld [vmem:[%s2907 + $0x40] sm:$0xf]
        %v2925 = vld [vmem:[%s2907 + $0x44] sm:$0xf]
        %v2926 = vld [vmem:[%s2907 + $0x48] sm:$0xf]
        %v2927 = vld [vmem:[%s2907 + $0x4c] sm:$0xf]
        %v2928 = vld [vmem:[%s2907 + $0x50] sm:$0xf]
        %v2929 = vld [vmem:[%s2907 + $0x54] sm:$0xf]
        %v2930 = vld [vmem:[%s2907 + $0x58] sm:$0xf]
        %v2931 = vld [vmem:[%s2907 + $0x5c] sm:$0xf]
        %v2932 = vld [vmem:[%s2907 + $0x60] sm:$0xf]
        %v2933 = vld [vmem:[%s2907 + $0x64] sm:$0xf]
        %v2934 = vld [vmem:[%s2907 + $0x68] sm:$0xf]
        %v2935 = vld [vmem:[%s2907 + $0x6c] sm:$0xf]
        %v2936 = vld [vmem:[%s2907 + $0x70] sm:$0xf]
        %v2937 = vld [vmem:[%s2907 + $0x74] sm:$0xf]
        %v2938 = vld [vmem:[%s2907 + $0x78] sm:$0xf]
        %v2939 = vld [vmem:[%s2907 + $0x7c] sm:$0xf]
        %v2940 = vld [vmem:[%s2907 + $0x80] sm:$0xf]
        %v2941 = vld [vmem:[%s2907 + $0x84] sm:$0xf]
        %v2942 = vld [vmem:[%s2907 + $0x88] sm:$0xf]
        %v2943 = vld [vmem:[%s2907 + $0x8c] sm:$0xf]
        %v2944 = vld [vmem:[%s2907 + $0x90] sm:$0xf]
        %v2945 = vld [vmem:[%s2907 + $0x94] sm:$0xf]
        %v2946 = vld [vmem:[%s2907 + $0x98] sm:$0xf]
        %v2947 = vld [vmem:[%s2907 + $0x9c] sm:$0xf]
        %v2948 = vld [vmem:[%s2907 + $0xa0] sm:$0xf]
        %v2949 = vld [vmem:[%s2907 + $0xa4] sm:$0xf]
        %v2950 = vld [vmem:[%s2907 + $0xa8] sm:$0xf]
        %v2951 = vld [vmem:[%s2907 + $0xac] sm:$0xf]
        %v2952 = vld [vmem:[%s2907 + $0xb0] sm:$0xf]
        %v2953 = vld [vmem:[%s2907 + $0xb4] sm:$0xf]
        %v2954 = vld [vmem:[%s2907 + $0xb8] sm:$0xf]
        %v2955 = vld [vmem:[%s2907 + $0xbc] sm:$0xf]
        %v2956 = vld [vmem:[%s2907 + $0xc0] sm:$0xf]
        %v2957 = vld [vmem:[%s2907 + $0xc4] sm:$0xf]
        %v2958 = vld [vmem:[%s2907 + $0xc8] sm:$0xf]
        %v2959 = vld [vmem:[%s2907 + $0xcc] sm:$0xf]
        %v2960 = vld [vmem:[%s2907 + $0xd0] sm:$0xf]
        %v2961 = vld [vmem:[%s2907 + $0xd4] sm:$0xf]
        %v2962 = vld [vmem:[%s2907 + $0xd8] sm:$0xf]
        %v2963 = vld [vmem:[%s2907 + $0xdc] sm:$0xf]
        %v2964 = vld [vmem:[%s2907 + $0xe0] sm:$0xf]
        %v2965 = vld [vmem:[%s2907 + $0xe4] sm:$0xf]
        %v2966 = vld [vmem:[%s2907 + $0xe8] sm:$0xf]
        %v2967 = vld [vmem:[%s2907 + $0xec] sm:$0xf]
        %v2968 = vld [vmem:[%s2907 + $0xf0] sm:$0xf]
        %v2969 = vld [vmem:[%s2907 + $0xf4] sm:$0xf]
        %v2970 = vld [vmem:[%s2907 + $0xf8] sm:$0xf]
        %v2971 = vld [vmem:[%s2907 + $0xfc] sm:$0xf]
        %v2972 = vld [vmem:[%s4 + $0xa] sm:$0x1]
        %v2973 = vlaneseq
        %v2974 = vshrl.u32 %v2973, 7
        %v2975 = vsub.s32 0, %v2974
        %v2976 = vrot.slane %v2972, %v2975
        %v3041 = vunpack.c.l.b16 %v2908
        %v3042 = vunpack.c.l.b16 %v2909
        %v3043 = vunpack.c.l.b16 %v2910
        %v3044 = vunpack.c.l.b16 %v2911
        %v3045 = vunpack.c.l.b16 %v2912
        %v3046 = vunpack.c.l.b16 %v2913
        %v3047 = vunpack.c.l.b16 %v2914
        %v3048 = vunpack.c.l.b16 %v2915
        %v3049 = vunpack.c.l.b16 %v2916
        %v3050 = vunpack.c.l.b16 %v2917
        %v3051 = vunpack.c.l.b16 %v2918
        %v3052 = vunpack.c.l.b16 %v2919
        %v3053 = vunpack.c.l.b16 %v2920
        %v3054 = vunpack.c.l.b16 %v2921
        %v3055 = vunpack.c.l.b16 %v2922
        %v3056 = vunpack.c.l.b16 %v2923
        %v3057 = vunpack.c.l.b16 %v2924
        %v3058 = vunpack.c.l.b16 %v2925
        %v3059 = vunpack.c.l.b16 %v2926
        %v3060 = vunpack.c.l.b16 %v2927
        %v3061 = vunpack.c.l.b16 %v2928
        %v3062 = vunpack.c.l.b16 %v2929
        %v3063 = vunpack.c.l.b16 %v2930
        %v3064 = vunpack.c.l.b16 %v2931
        %v3065 = vunpack.c.l.b16 %v2932
        %v3066 = vunpack.c.l.b16 %v2933
        %v3067 = vunpack.c.l.b16 %v2934
        %v3068 = vunpack.c.l.b16 %v2935
        %v3069 = vunpack.c.l.b16 %v2936
        %v3070 = vunpack.c.l.b16 %v2937
        %v3071 = vunpack.c.l.b16 %v2938
        %v3072 = vunpack.c.l.b16 %v2939
        %v3073 = vunpack.c.l.b16 %v2940
        %v3074 = vunpack.c.l.b16 %v2941
        %v3075 = vunpack.c.l.b16 %v2942
        %v3076 = vunpack.c.l.b16 %v2943
        %v3077 = vunpack.c.l.b16 %v2944
        %v3078 = vunpack.c.l.b16 %v2945
        %v3079 = vunpack.c.l.b16 %v2946
        %v3080 = vunpack.c.l.b16 %v2947
        %v3081 = vunpack.c.l.b16 %v2948
        %v3082 = vunpack.c.l.b16 %v2949
        %v3083 = vunpack.c.l.b16 %v2950
        %v3084 = vunpack.c.l.b16 %v2951
        %v3085 = vunpack.c.l.b16 %v2952
        %v3086 = vunpack.c.l.b16 %v2953
        %v3087 = vunpack.c.l.b16 %v2954
        %v3088 = vunpack.c.l.b16 %v2955
        %v3089 = vunpack.c.l.b16 %v2956
        %v3090 = vunpack.c.l.b16 %v2957
        %v3091 = vunpack.c.l.b16 %v2958
        %v3092 = vunpack.c.l.b16 %v2959
        %v3093 = vunpack.c.l.b16 %v2960
        %v3094 = vunpack.c.l.b16 %v2961
        %v3095 = vunpack.c.l.b16 %v2962
        %v3096 = vunpack.c.l.b16 %v2963
        %v3097 = vunpack.c.l.b16 %v2964
        %v3098 = vunpack.c.l.b16 %v2965
        %v3099 = vunpack.c.l.b16 %v2966
        %v3100 = vunpack.c.l.b16 %v2967
        %v3101 = vunpack.c.l.b16 %v2968
        %v3102 = vunpack.c.l.b16 %v2969
        %v3103 = vunpack.c.l.b16 %v2970
        %v3104 = vunpack.c.l.b16 %v2971
        %v3105 = vpack.c.b16 %v3042, %v3041
        %v3106 = vpack.c.b16 %v3044, %v3043
        %v3107 = vpack.c.b16 %v3046, %v3045
        %v3108 = vpack.c.b16 %v3048, %v3047
        %v3109 = vpack.c.b16 %v3050, %v3049
        %v3110 = vpack.c.b16 %v3052, %v3051
        %v3111 = vpack.c.b16 %v3054, %v3053
        %v3112 = vpack.c.b16 %v3056, %v3055
        %v3113 = vpack.c.b16 %v3058, %v3057
        %v3114 = vpack.c.b16 %v3060, %v3059
        %v3115 = vpack.c.b16 %v3062, %v3061
        %v3116 = vpack.c.b16 %v3064, %v3063
        %v3117 = vpack.c.b16 %v3066, %v3065
        %v3118 = vpack.c.b16 %v3068, %v3067
        %v3119 = vpack.c.b16 %v3070, %v3069
        %v3120 = vpack.c.b16 %v3072, %v3071
        %v3121 = vpack.c.b16 %v3074, %v3073
        %v3122 = vpack.c.b16 %v3076, %v3075
        %v3123 = vpack.c.b16 %v3078, %v3077
        %v3124 = vpack.c.b16 %v3080, %v3079
        %v3125 = vpack.c.b16 %v3082, %v3081
        %v3126 = vpack.c.b16 %v3084, %v3083
        %v3127 = vpack.c.b16 %v3086, %v3085
        %v3128 = vpack.c.b16 %v3088, %v3087
        %v3129 = vpack.c.b16 %v3090, %v3089
        %v3130 = vpack.c.b16 %v3092, %v3091
        %v3131 = vpack.c.b16 %v3094, %v3093
        %v3132 = vpack.c.b16 %v3096, %v3095
        %v3133 = vpack.c.b16 %v3098, %v3097
        %v3134 = vpack.c.b16 %v3100, %v3099
        %v3135 = vpack.c.b16 %v3102, %v3101
        %v3136 = vpack.c.b16 %v3104, %v3103
        %3169 = vmatprep.subr.bf16.mxu0 0
        %3170 = vmatpush1.bf16.msra.mxu0 %v3105
        %3171 = vmatprep.subr.bf16.mxu0 0
        %3172 = vmatpush1.bf16.msra.mxu0 %v3106
        %3173 = vmatprep.subr.bf16.mxu0 0
        %3174 = vmatpush1.bf16.msra.mxu0 %v3107
        %3175 = vmatprep.subr.bf16.mxu0 0
        %3176 = vmatpush1.bf16.msra.mxu0 %v3108
        %3177 = vmatprep.subr.bf16.mxu0 0
        %3178 = vmatpush1.bf16.msra.mxu0 %v3109
        %3179 = vmatprep.subr.bf16.mxu0 0
        %3180 = vmatpush1.bf16.msra.mxu0 %v3110
        %3181 = vmatprep.subr.bf16.mxu0 0
        %3182 = vmatpush1.bf16.msra.mxu0 %v3111
        %3183 = vmatprep.subr.bf16.mxu0 0
        %3184 = vmatpush1.bf16.msra.mxu0 %v3112
        %3185 = vmatprep.subr.bf16.mxu0 0
        %3186 = vmatpush1.bf16.msra.mxu0 %v3113
        %3187 = vmatprep.subr.bf16.mxu0 0
        %3188 = vmatpush1.bf16.msra.mxu0 %v3114
        %3189 = vmatprep.subr.bf16.mxu0 0
        %3190 = vmatpush1.bf16.msra.mxu0 %v3115
        %3191 = vmatprep.subr.bf16.mxu0 0
        %3192 = vmatpush1.bf16.msra.mxu0 %v3116
        %3193 = vmatprep.subr.bf16.mxu0 0
        %3194 = vmatpush1.bf16.msra.mxu0 %v3117
        %3195 = vmatprep.subr.bf16.mxu0 0
        %3196 = vmatpush1.bf16.msra.mxu0 %v3118
        %3197 = vmatprep.subr.bf16.mxu0 0
        %3198 = vmatpush1.bf16.msra.mxu0 %v3119
        %3199 = vmatprep.subr.bf16.mxu0 0
        %3200 = vmatpush1.bf16.msra.mxu0 %v3120
        %3201 = vmatprep.mubr.bf16.mxu0 %v2876
        %3202 = vmatmul.mubr.bf16.gmra.mrb[0].mxu0 %v2875
        %v3203 = vpop.f32.mrb[0].mxu0
        %v3204 = vadd.f32 %v2976, %v3203
        %v3205 = vpop.f32.mrb[0].mxu0
        %v3206 = vpop.f32.mrb[0].mxu0
        %v3207 = vadd.f32 %v2976, %v3206
        %v3208 = vpop.f32.mrb[0].mxu0
        %3209 = vmatprep.mubr.bf16.mxu0 %v2880
        %3210 = vmatmul.mubr.bf16.gmra.mrb[0].mxu0 %v2879
        %v3211 = vpop.f32.mrb[0].mxu0
        %v3212 = vadd.f32 %v2976, %v3211
        %v3213 = vpop.f32.mrb[0].mxu0
        %v3214 = vpop.f32.mrb[0].mxu0
        %v3215 = vadd.f32 %v2976, %v3214
        %v3216 = vpop.f32.mrb[0].mxu0
        %3217 = vmatprep.mubr.bf16.mxu0 %v2884
        %3218 = vmatmul.mubr.bf16.gmra.mrb[0].mxu0 %v2883
        %v3219 = vpop.f32.mrb[0].mxu0
        %v3220 = vadd.f32 %v2976, %v3219
        %v3221 = vpop.f32.mrb[0].mxu0
        %v3222 = vpop.f32.mrb[0].mxu0
        %v3223 = vadd.f32 %v2976, %v3222
        %v3224 = vpop.f32.mrb[0].mxu0
        %3225 = vmatprep.mubr.bf16.mxu0 %v2888
        %3226 = vmatmul.mubr.bf16.gmra.mrb[0].mxu0 %v2887
        %v3227 = vpop.f32.mrb[0].mxu0
        %v3228 = vadd.f32 %v2976, %v3227
        %v3229 = vpop.f32.mrb[0].mxu0
        %v3230 = vpop.f32.mrb[0].mxu0
        %v3231 = vadd.f32 %v2976, %v3230
        %v3232 = vpop.f32.mrb[0].mxu0
        %3233 = vmatprep.mubr.bf16.mxu0 %v2892
        %3234 = vmatmul.mubr.bf16.gmra.mrb[0].mxu0 %v2891
        %v3235 = vpop.f32.mrb[0].mxu0
        %v3236 = vadd.f32 %v2976, %v3235
        %v3237 = vpop.f32.mrb[0].mxu0
        %v3238 = vpop.f32.mrb[0].mxu0
        %v3239 = vadd.f32 %v2976, %v3238
        %v3240 = vpop.f32.mrb[0].mxu0
        %3241 = vmatprep.mubr.bf16.mxu0 %v2896
        %3242 = vmatmul.mubr.bf16.gmra.mrb[0].mxu0 %v2895
        %v3243 = vpop.f32.mrb[0].mxu0
        %v3244 = vadd.f32 %v2976, %v3243
        %v3245 = vpop.f32.mrb[0].mxu0
        %v3246 = vpop.f32.mrb[0].mxu0
        %v3247 = vadd.f32 %v2976, %v3246
        %v3248 = vpop.f32.mrb[0].mxu0
        %3249 = vmatprep.mubr.bf16.mxu0 %v2900
        %3250 = vmatmul.mubr.bf16.gmra.mrb[0].mxu0 %v2899
        %v3251 = vpop.f32.mrb[0].mxu0
        %v3252 = vadd.f32 %v2976, %v3251
        %v3253 = vpop.f32.mrb[0].mxu0
        %v3254 = vpop.f32.mrb[0].mxu0
        %v3255 = vadd.f32 %v2976, %v3254
        %v3256 = vpop.f32.mrb[0].mxu0
        %3257 = vmatprep.mubr.bf16.mxu0 %v2904
        %3258 = vmatmul.mubr.bf16.gmra.mrb[0].mxu0 %v2903
        %v3259 = vpop.f32.mrb[0].mxu0
        %v3260 = vadd.f32 %v2976, %v3259
        %v3261 = vpop.f32.mrb[0].mxu0
        %v3262 = vpop.f32.mrb[0].mxu0
        %v3263 = vadd.f32 %v2976, %v3262
        %v3264 = vpop.f32.mrb[0].mxu0
        %3265 = vdwg.mxu0
        %3266 = vmatprep.subr.bf16.mxu0 0
        %3267 = vmatpush1.bf16.msra.mxu0 %v3121
        %3268 = vmatprep.subr.bf16.mxu0 0
        %3269 = vmatpush1.bf16.msra.mxu0 %v3122
        %3270 = vmatprep.subr.bf16.mxu0 0
        %3271 = vmatpush1.bf16.msra.mxu0 %v3123
        %3272 = vmatprep.subr.bf16.mxu0 0
        %3273 = vmatpush1.bf16.msra.mxu0 %v3124
        %3274 = vmatprep.subr.bf16.mxu0 0
        %3275 = vmatpush1.bf16.msra.mxu0 %v3125
        %3276 = vmatprep.subr.bf16.mxu0 0
        %3277 = vmatpush1.bf16.msra.mxu0 %v3126
        %3278 = vmatprep.subr.bf16.mxu0 0
        %3279 = vmatpush1.bf16.msra.mxu0 %v3127
        %3280 = vmatprep.subr.bf16.mxu0 0
        %3281 = vmatpush1.bf16.msra.mxu0 %v3128
        %3282 = vmatprep.subr.bf16.mxu0 0
        %3283 = vmatpush1.bf16.msra.mxu0 %v3129
        %3284 = vmatprep.subr.bf16.mxu0 0
        %3285 = vmatpush1.bf16.msra.mxu0 %v3130
        %3286 = vmatprep.subr.bf16.mxu0 0
        %3287 = vmatpush1.bf16.msra.mxu0 %v3131
        %3288 = vmatprep.subr.bf16.mxu0 0
        %3289 = vmatpush1.bf16.msra.mxu0 %v3132
        %3290 = vmatprep.subr.bf16.mxu0 0
        %3291 = vmatpush1.bf16.msra.mxu0 %v3133
        %3292 = vmatprep.subr.bf16.mxu0 0
        %3293 = vmatpush1.bf16.msra.mxu0 %v3134
        %3294 = vmatprep.subr.bf16.mxu0 0
        %3295 = vmatpush1.bf16.msra.mxu0 %v3135
        %3296 = vmatprep.subr.bf16.mxu0 0
        %3297 = vmatpush1.bf16.msra.mxu0 %v3136
        %3298 = vmatprep.mubr.bf16.mxu0 %v2878
        %3299 = vmatmul.mubr.bf16.gmra.mrb[0].mxu0 %v2877
        %v3300 = vpop.f32.mrb[0].mxu0
        %v3301 = vadd.f32 %v3204, %v3300
        %v3302 = vpop.f32.mrb[0].mxu0
        %v3303 = vpop.f32.mrb[0].mxu0
        %v3304 = vadd.f32 %v3207, %v3303
        %v3305 = vpop.f32.mrb[0].mxu0
        %3306 = vmatprep.mubr.bf16.mxu0 %v2882
        %3307 = vmatmul.mubr.bf16.gmra.mrb[0].mxu0 %v2881
        %v3308 = vpop.f32.mrb[0].mxu0
        %v3309 = vadd.f32 %v3212, %v3308
        %v3310 = vpop.f32.mrb[0].mxu0
        %v3311 = vpop.f32.mrb[0].mxu0
        %v3312 = vadd.f32 %v3215, %v3311
        %v3313 = vpop.f32.mrb[0].mxu0
        %3314 = vmatprep.mubr.bf16.mxu0 %v2886
        %3315 = vmatmul.mubr.bf16.gmra.mrb[0].mxu0 %v2885
        %v3316 = vpop.f32.mrb[0].mxu0
        %v3317 = vadd.f32 %v3220, %v3316
        %v3318 = vpop.f32.mrb[0].mxu0
        %v3319 = vpop.f32.mrb[0].mxu0
        %v3320 = vadd.f32 %v3223, %v3319
        %v3321 = vpop.f32.mrb[0].mxu0
        %3322 = vmatprep.mubr.bf16.mxu0 %v2890
        %3323 = vmatmul.mubr.bf16.gmra.mrb[0].mxu0 %v2889
        %v3324 = vpop.f32.mrb[0].mxu0
        %v3325 = vadd.f32 %v3228, %v3324
        %v3326 = vpop.f32.mrb[0].mxu0
        %v3327 = vpop.f32.mrb[0].mxu0
        %v3328 = vadd.f32 %v3231, %v3327
        %v3329 = vpop.f32.mrb[0].mxu0
        %3330 = vmatprep.mubr.bf16.mxu0 %v2894
        %3331 = vmatmul.mubr.bf16.gmra.mrb[0].mxu0 %v2893
        %v3332 = vpop.f32.mrb[0].mxu0
        %v3333 = vadd.f32 %v3236, %v3332
        %v3334 = vpop.f32.mrb[0].mxu0
        %v3335 = vpop.f32.mrb[0].mxu0
        %v3336 = vadd.f32 %v3239, %v3335
        %v3337 = vpop.f32.mrb[0].mxu0
        %3338 = vmatprep.mubr.bf16.mxu0 %v2898
        %3339 = vmatmul.mubr.bf16.gmra.mrb[0].mxu0 %v2897
        %v3340 = vpop.f32.mrb[0].mxu0
        %v3341 = vadd.f32 %v3244, %v3340
        %v3342 = vpop.f32.mrb[0].mxu0
        %v3343 = vpop.f32.mrb[0].mxu0
        %v3344 = vadd.f32 %v3247, %v3343
        %v3345 = vpop.f32.mrb[0].mxu0
        %3346 = vmatprep.mubr.bf16.mxu0 %v2902
        %3347 = vmatmul.mubr.bf16.gmra.mrb[0].mxu0 %v2901
        %v3348 = vpop.f32.mrb[0].mxu0
        %v3349 = vadd.f32 %v3252, %v3348
        %v3350 = vpop.f32.mrb[0].mxu0
        %v3351 = vpop.f32.mrb[0].mxu0
        %v3352 = vadd.f32 %v3255, %v3351
        %v3353 = vpop.f32.mrb[0].mxu0
        %3354 = vmatprep.mubr.bf16.mxu0 %v2906
        %3355 = vmatmul.mubr.bf16.gmra.mrb[0].mxu0 %v2905
        %v3356 = vpop.f32.mrb[0].mxu0
        %v3357 = vadd.f32 %v3260, %v3356
        %v3358 = vpop.f32.mrb[0].mxu0
        %v3359 = vpop.f32.mrb[0].mxu0
        %v3360 = vadd.f32 %v3263, %v3359
        %v3361 = vpop.f32.mrb[0].mxu0
        %3362 = vdwg.mxu0
        %v3363 = vadd.f32 %v2345, %v3301
        %v3364 = vadd.f32 %v2346, %v3304
        %v3365 = vadd.f32 %v2347, %v3309
        %v3366 = vadd.f32 %v2348, %v3312
        %v3367 = vadd.f32 %v2349, %v3317
        %v3368 = vadd.f32 %v2350, %v3320
        %v3369 = vadd.f32 %v2351, %v3325
        %v3370 = vadd.f32 %v2352, %v3328
        %v3371 = vadd.f32 %v2353, %v3333
        %v3372 = vadd.f32 %v2354, %v3336
        %v3373 = vadd.f32 %v2355, %v3341
        %v3374 = vadd.f32 %v2356, %v3344
        %v3375 = vadd.f32 %v2357, %v3349
        %v3376 = vadd.f32 %v2358, %v3352
        %v3377 = vadd.f32 %v2359, %v3357
        %v3378 = vadd.f32 %v2360, %v3360
        %v3379 = vld [vmem:[%s4 + $0xb] sm:$0x1]
        %v3380 = vld [vmem:[%s4 + $0xc] sm:$0x1]
        %3381 = vadd.xlane.f32.xlu0 %v3363
        %v3382 = vpop.xlane.xlu0 %3381
        %3383 = vadd.xlane.f32.xlu0 %v3364
        %v3384 = vpop.xlane.xlu0 %3383
        %3385 = vadd.xlane.f32.xlu0 %v3365
        %v3386 = vpop.xlane.xlu0 %3385
        %3387 = vadd.xlane.f32.xlu0 %v3366
        %v3388 = vpop.xlane.xlu0 %3387
        %3389 = vadd.xlane.f32.xlu0 %v3367
        %v3390 = vpop.xlane.xlu0 %3389
        %3391 = vadd.xlane.f32.xlu0 %v3368
        %v3392 = vpop.xlane.xlu0 %3391
        %3393 = vadd.xlane.f32.xlu0 %v3369
        %v3394 = vpop.xlane.xlu0 %3393
        %3395 = vadd.xlane.f32.xlu0 %v3370
        %v3396 = vpop.xlane.xlu0 %3395
        %3397 = vadd.xlane.f32.xlu0 %v3371
        %v3398 = vpop.xlane.xlu0 %3397
        %3399 = vadd.xlane.f32.xlu0 %v3372
        %v3400 = vpop.xlane.xlu0 %3399
        %3401 = vadd.xlane.f32.xlu0 %v3373
        %v3402 = vpop.xlane.xlu0 %3401
        %3403 = vadd.xlane.f32.xlu0 %v3374
        %v3404 = vpop.xlane.xlu0 %3403
        %3405 = vadd.xlane.f32.xlu0 %v3375
        %v3406 = vpop.xlane.xlu0 %3405
        %3407 = vadd.xlane.f32.xlu0 %v3376
        %v3408 = vpop.xlane.xlu0 %3407
        %3409 = vadd.xlane.f32.xlu0 %v3377
        %v3410 = vpop.xlane.xlu0 %3409
        %3411 = vadd.xlane.f32.xlu0 %v3378
        %v3412 = vpop.xlane.xlu0 %3411
        %v3413 = vmul.f32 %v3382, %v550
        %v3414 = vmul.f32 %v3384, %v550
        %v3415 = vmul.f32 %v3386, %v550
        %v3416 = vmul.f32 %v3388, %v550
        %v3417 = vmul.f32 %v3390, %v550
        %v3418 = vmul.f32 %v3392, %v550
        %v3419 = vmul.f32 %v3394, %v550
        %v3420 = vmul.f32 %v3396, %v550
        %v3421 = vmul.f32 %v3398, %v550
        %v3422 = vmul.f32 %v3400, %v550
        %v3423 = vmul.f32 %v3402, %v550
        %v3424 = vmul.f32 %v3404, %v550
        %v3425 = vmul.f32 %v3406, %v550
        %v3426 = vmul.f32 %v3408, %v550
        %v3427 = vmul.f32 %v3410, %v550
        %v3428 = vmul.f32 %v3412, %v550
        %v3429 = vsub.f32 %v3363, %v3413
        %v3430 = vsub.f32 %v3364, %v3414
        %v3431 = vsub.f32 %v3365, %v3415
        %v3432 = vsub.f32 %v3366, %v3416
        %v3433 = vsub.f32 %v3367, %v3417
        %v3434 = vsub.f32 %v3368, %v3418
        %v3435 = vsub.f32 %v3369, %v3419
        %v3436 = vsub.f32 %v3370, %v3420
        %v3437 = vsub.f32 %v3371, %v3421
        %v3438 = vsub.f32 %v3372, %v3422
        %v3439 = vsub.f32 %v3373, %v3423
        %v3440 = vsub.f32 %v3374, %v3424
        %v3441 = vsub.f32 %v3375, %v3425
        %v3442 = vsub.f32 %v3376, %v3426
        %v3443 = vsub.f32 %v3377, %v3427
        %v3444 = vsub.f32 %v3378, %v3428
        %v3445 = vmul.f32 %v3429, %v3429
        %v3446 = vmul.f32 %v3430, %v3430
        %v3447 = vmul.f32 %v3431, %v3431
        %v3448 = vmul.f32 %v3432, %v3432
        %v3449 = vmul.f32 %v3433, %v3433
        %v3450 = vmul.f32 %v3434, %v3434
        %v3451 = vmul.f32 %v3435, %v3435
        %v3452 = vmul.f32 %v3436, %v3436
        %v3453 = vmul.f32 %v3437, %v3437
        %v3454 = vmul.f32 %v3438, %v3438
        %v3455 = vmul.f32 %v3439, %v3439
        %v3456 = vmul.f32 %v3440, %v3440
        %v3457 = vmul.f32 %v3441, %v3441
        %v3458 = vmul.f32 %v3442, %v3442
        %v3459 = vmul.f32 %v3443, %v3443
        %v3460 = vmul.f32 %v3444, %v3444
        %3461 = vadd.xlane.f32.xlu0 %v3445
        %v3462 = vpop.xlane.xlu0 %3461
        %3463 = vadd.xlane.f32.xlu0 %v3446
        %v3464 = vpop.xlane.xlu0 %3463
        %3465 = vadd.xlane.f32.xlu0 %v3447
        %v3466 = vpop.xlane.xlu0 %3465
        %3467 = vadd.xlane.f32.xlu0 %v3448
        %v3468 = vpop.xlane.xlu0 %3467
        %3469 = vadd.xlane.f32.xlu0 %v3449
        %v3470 = vpop.xlane.xlu0 %3469
        %3471 = vadd.xlane.f32.xlu0 %v3450
        %v3472 = vpop.xlane.xlu0 %3471
        %3473 = vadd.xlane.f32.xlu0 %v3451
        %v3474 = vpop.xlane.xlu0 %3473
        %3475 = vadd.xlane.f32.xlu0 %v3452
        %v3476 = vpop.xlane.xlu0 %3475
        %3477 = vadd.xlane.f32.xlu0 %v3453
        %v3478 = vpop.xlane.xlu0 %3477
        %3479 = vadd.xlane.f32.xlu0 %v3454
        %v3480 = vpop.xlane.xlu0 %3479
        %3481 = vadd.xlane.f32.xlu0 %v3455
        %v3482 = vpop.xlane.xlu0 %3481
        %3483 = vadd.xlane.f32.xlu0 %v3456
        %v3484 = vpop.xlane.xlu0 %3483
        %3485 = vadd.xlane.f32.xlu0 %v3457
        %v3486 = vpop.xlane.xlu0 %3485
        %3487 = vadd.xlane.f32.xlu0 %v3458
        %v3488 = vpop.xlane.xlu0 %3487
        %3489 = vadd.xlane.f32.xlu0 %v3459
        %v3490 = vpop.xlane.xlu0 %3489
        %3491 = vadd.xlane.f32.xlu0 %v3460
        %v3492 = vpop.xlane.xlu0 %3491
        %v3493 = vmul.f32 %v3462, %v550
        %v3494 = vmul.f32 %v3464, %v550
        %v3495 = vmul.f32 %v3466, %v550
        %v3496 = vmul.f32 %v3468, %v550
        %v3497 = vmul.f32 %v3470, %v550
        %v3498 = vmul.f32 %v3472, %v550
        %v3499 = vmul.f32 %v3474, %v550
        %v3500 = vmul.f32 %v3476, %v550
        %v3501 = vmul.f32 %v3478, %v550
        %v3502 = vmul.f32 %v3480, %v550
        %v3503 = vmul.f32 %v3482, %v550
        %v3504 = vmul.f32 %v3484, %v550
        %v3505 = vmul.f32 %v3486, %v550
        %v3506 = vmul.f32 %v3488, %v550
        %v3507 = vmul.f32 %v3490, %v550
        %v3508 = vmul.f32 %v3492, %v550
        %v3509 = vadd.f32 %v3493, 1e-05
        %v3510 = vadd.f32 %v3494, 1e-05
        %v3511 = vadd.f32 %v3495, 1e-05
        %v3512 = vadd.f32 %v3496, 1e-05
        %v3513 = vadd.f32 %v3497, 1e-05
        %v3514 = vadd.f32 %v3498, 1e-05
        %v3515 = vadd.f32 %v3499, 1e-05
        %v3516 = vadd.f32 %v3500, 1e-05
        %v3517 = vadd.f32 %v3501, 1e-05
        %v3518 = vadd.f32 %v3502, 1e-05
        %v3519 = vadd.f32 %v3503, 1e-05
        %v3520 = vadd.f32 %v3504, 1e-05
        %v3521 = vadd.f32 %v3505, 1e-05
        %v3522 = vadd.f32 %v3506, 1e-05
        %v3523 = vadd.f32 %v3507, 1e-05
        %v3524 = vadd.f32 %v3508, 1e-05
        %v3525 = vrsqrt.pop %v3509
        %v3526 = vrsqrt.pop %v3510
        %v3527 = vrsqrt.pop %v3511
        %v3528 = vrsqrt.pop %v3512
        %v3529 = vrsqrt.pop %v3513
        %v3530 = vrsqrt.pop %v3514
        %v3531 = vrsqrt.pop %v3515
        %v3532 = vrsqrt.pop %v3516
        %v3533 = vrsqrt.pop %v3517
        %v3534 = vrsqrt.pop %v3518
        %v3535 = vrsqrt.pop %v3519
        %v3536 = vrsqrt.pop %v3520
        %v3537 = vrsqrt.pop %v3521
        %v3538 = vrsqrt.pop %v3522
        %v3539 = vrsqrt.pop %v3523
        %v3540 = vrsqrt.pop %v3524
        %v3541 = vmul.f32 %v3429, %v3525
        %v3542 = vmul.f32 %v3430, %v3526
        %v3543 = vmul.f32 %v3431, %v3527
        %v3544 = vmul.f32 %v3432, %v3528
        %v3545 = vmul.f32 %v3433, %v3529
        %v3546 = vmul.f32 %v3434, %v3530
        %v3547 = vmul.f32 %v3435, %v3531
        %v3548 = vmul.f32 %v3436, %v3532
        %v3549 = vmul.f32 %v3437, %v3533
        %v3550 = vmul.f32 %v3438, %v3534
        %v3551 = vmul.f32 %v3439, %v3535
        %v3552 = vmul.f32 %v3440, %v3536
        %v3553 = vmul.f32 %v3441, %v3537
        %v3554 = vmul.f32 %v3442, %v3538
        %v3555 = vmul.f32 %v3443, %v3539
        %v3556 = vmul.f32 %v3444, %v3540
        %v3557 = vlaneseq
        %v3558 = vshrl.u32 %v3557, 7
        %v3559 = vsub.s32 0, %v3558
        %v3560 = vrot.slane %v3379, %v3559
        %v3561 = vmul.f32 %v3541, %v3560
        %v3562 = vmul.f32 %v3542, %v3560
        %v3563 = vmul.f32 %v3543, %v3560
        %v3564 = vmul.f32 %v3544, %v3560
        %v3565 = vmul.f32 %v3545, %v3560
        %v3566 = vmul.f32 %v3546, %v3560
        %v3567 = vmul.f32 %v3547, %v3560
        %v3568 = vmul.f32 %v3548, %v3560
        %v3569 = vmul.f32 %v3549, %v3560
        %v3570 = vmul.f32 %v3550, %v3560
        %v3571 = vmul.f32 %v3551, %v3560
        %v3572 = vmul.f32 %v3552, %v3560
        %v3573 = vmul.f32 %v3553, %v3560
        %v3574 = vmul.f32 %v3554, %v3560
        %v3575 = vmul.f32 %v3555, %v3560
        %v3576 = vmul.f32 %v3556, %v3560
        %v3577 = vlaneseq
        %v3578 = vshrl.u32 %v3577, 7
        %v3579 = vsub.s32 0, %v3578
        %v3580 = vrot.slane %v3380, %v3579
        %v3581 = vadd.f32 %v3561, %v3580
        %v3582 = vadd.f32 %v3562, %v3580
        %v3583 = vadd.f32 %v3563, %v3580
        %v3584 = vadd.f32 %v3564, %v3580
        %v3585 = vadd.f32 %v3565, %v3580
        %v3586 = vadd.f32 %v3566, %v3580
        %v3587 = vadd.f32 %v3567, %v3580
        %v3588 = vadd.f32 %v3568, %v3580
        %v3589 = vadd.f32 %v3569, %v3580
        %v3590 = vadd.f32 %v3570, %v3580
        %v3591 = vadd.f32 %v3571, %v3580
        %v3592 = vadd.f32 %v3572, %v3580
        %v3593 = vadd.f32 %v3573, %v3580
        %v3594 = vadd.f32 %v3574, %v3580
        %v3595 = vadd.f32 %v3575, %v3580
        %v3596 = vadd.f32 %v3576, %v3580
        %v3597 = vpack.c.bf16 %v3582, %v3581
        %v3598 = vpack.c.bf16 %v3584, %v3583
        %v3599 = vpack.c.bf16 %v3586, %v3585
        %v3600 = vpack.c.bf16 %v3588, %v3587
        %v3601 = vpack.c.bf16 %v3590, %v3589
        %v3602 = vpack.c.bf16 %v3592, %v3591
        %v3603 = vpack.c.bf16 %v3594, %v3593
        %v3604 = vpack.c.bf16 %v3596, %v3595
        %s3605 = scalar_lea.vmem %s1, 128
        %v3606 = vld [vmem:[%s3605] sm:$0xf]
        %v3607 = vld [vmem:[%s3605 + $0x4] sm:$0xf]
        %v3608 = vld [vmem:[%s3605 + $0x8] sm:$0xf]
        %v3609 = vld [vmem:[%s3605 + $0xc] sm:$0xf]
        %v3610 = vld [vmem:[%s3605 + $0x10] sm:$0xf]
        %v3611 = vld [vmem:[%s3605 + $0x14] sm:$0xf]
        %v3612 = vld [vmem:[%s3605 + $0x18] sm:$0xf]
        %v3613 = vld [vmem:[%s3605 + $0x1c] sm:$0xf]
        %v3614 = vld [vmem:[%s3605 + $0x20] sm:$0xf]
        %v3615 = vld [vmem:[%s3605 + $0x24] sm:$0xf]
        %v3616 = vld [vmem:[%s3605 + $0x28] sm:$0xf]
        %v3617 = vld [vmem:[%s3605 + $0x2c] sm:$0xf]
        %v3618 = vld [vmem:[%s3605 + $0x30] sm:$0xf]
        %v3619 = vld [vmem:[%s3605 + $0x34] sm:$0xf]
        %v3620 = vld [vmem:[%s3605 + $0x38] sm:$0xf]
        %v3621 = vld [vmem:[%s3605 + $0x3c] sm:$0xf]
        %v3622 = vld [vmem:[%s4 + $0xd] sm:$0x1]
        %v3623 = vlaneseq
        %v3624 = vshrl.u32 %v3623, 7
        %v3625 = vsub.s32 0, %v3624
        %v3626 = vrot.slane %v3622, %v3625
        %v3643 = vunpack.c.l.b16 %v3606
        %v3644 = vunpack.c.l.b16 %v3607
        %v3645 = vunpack.c.l.b16 %v3608
        %v3646 = vunpack.c.l.b16 %v3609
        %v3647 = vunpack.c.l.b16 %v3610
        %v3648 = vunpack.c.l.b16 %v3611
        %v3649 = vunpack.c.l.b16 %v3612
        %v3650 = vunpack.c.l.b16 %v3613
        %v3651 = vunpack.c.l.b16 %v3614
        %v3652 = vunpack.c.l.b16 %v3615
        %v3653 = vunpack.c.l.b16 %v3616
        %v3654 = vunpack.c.l.b16 %v3617
        %v3655 = vunpack.c.l.b16 %v3618
        %v3656 = vunpack.c.l.b16 %v3619
        %v3657 = vunpack.c.l.b16 %v3620
        %v3658 = vunpack.c.l.b16 %v3621
        %v3659 = vpack.c.b16 %v3644, %v3643
        %v3660 = vpack.c.b16 %v3646, %v3645
        %v3661 = vpack.c.b16 %v3648, %v3647
        %v3662 = vpack.c.b16 %v3650, %v3649
        %v3663 = vpack.c.b16 %v3652, %v3651
        %v3664 = vpack.c.b16 %v3654, %v3653
        %v3665 = vpack.c.b16 %v3656, %v3655
        %v3666 = vpack.c.b16 %v3658, %v3657
        %3675 = vmatprep.subr.bf16.mxu0 0
        %3676 = vmatpush1.bf16.msra.mxu0 %v3659
        %3677 = vmatprep.subr.bf16.mxu0 0
        %3678 = vmatpush1.bf16.msra.mxu0 %v3660
        %3679 = vmatprep.subr.bf16.mxu0 0
        %3680 = vmatpush1.bf16.msra.mxu0 %v3661
        %3681 = vmatprep.subr.bf16.mxu0 0
        %3682 = vmatpush1.bf16.msra.mxu0 %v3662
        %3683 = vmatprep.subr.bf16.mxu0 0
        %3684 = vmatpush1.bf16.msra.mxu0 %v3663
        %3685 = vmatprep.subr.bf16.mxu0 0
        %3686 = vmatpush1.bf16.msra.mxu0 %v3664
        %3687 = vmatprep.subr.bf16.mxu0 0
        %3688 = vmatpush1.bf16.msra.mxu0 %v3665
        %3689 = vmatprep.subr.bf16.mxu0 0
        %3690 = vmatpush1.bf16.msra.mxu0 %v3666
        %3691 = vmatprep.subr.bf16.mxu0 0
        %3692 = vmatpush1.bf16.msra.mxu0 0
        %3693 = vmatprep.subr.bf16.mxu0 0
        %3694 = vmatpush1.bf16.msra.mxu0 0
        %3695 = vmatprep.subr.bf16.mxu0 0
        %3696 = vmatpush1.bf16.msra.mxu0 0
        %3697 = vmatprep.subr.bf16.mxu0 0
        %3698 = vmatpush1.bf16.msra.mxu0 0
        %3699 = vmatprep.subr.bf16.mxu0 0
        %3700 = vmatpush1.bf16.msra.mxu0 0
        %3701 = vmatprep.subr.bf16.mxu0 0
        %3702 = vmatpush1.bf16.msra.mxu0 0
        %3703 = vmatprep.subr.bf16.mxu0 0
        %3704 = vmatpush1.bf16.msra.mxu0 0
        %3705 = vmatprep.subr.bf16.mxu0 0
        %3706 = vmatpush1.bf16.msra.mxu0 0
        %3707 = vmatprep.mubr.bf16.mxu0 0
        %3708 = vmatmul.mubr.bf16.gmra.mrb[0].mxu0 %v3597
        %v3709 = vpop.f32.mrb[0].mxu0
        %v3710 = vadd.f32 %v3626, %v3709
        %v3711 = vpop.f32.mrb[0].mxu0
        %v3712 = vpop.f32.mrb[0].mxu0
        %v3713 = vadd.f32 %v3626, %v3712
        %v3714 = vpop.f32.mrb[0].mxu0
        %3715 = vmatprep.mubr.bf16.mxu0 0
        %3716 = vmatmul.mubr.bf16.gmra.mrb[0].mxu0 %v3598
        %v3717 = vpop.f32.mrb[0].mxu0
        %v3718 = vadd.f32 %v3626, %v3717
        %v3719 = vpop.f32.mrb[0].mxu0
        %v3720 = vpop.f32.mrb[0].mxu0
        %v3721 = vadd.f32 %v3626, %v3720
        %v3722 = vpop.f32.mrb[0].mxu0
        %3723 = vmatprep.mubr.bf16.mxu0 0
        %3724 = vmatmul.mubr.bf16.gmra.mrb[0].mxu0 %v3599
        %v3725 = vpop.f32.mrb[0].mxu0
        %v3726 = vadd.f32 %v3626, %v3725
        %v3727 = vpop.f32.mrb[0].mxu0
        %v3728 = vpop.f32.mrb[0].mxu0
        %v3729 = vadd.f32 %v3626, %v3728
        %v3730 = vpop.f32.mrb[0].mxu0
        %3731 = vmatprep.mubr.bf16.mxu0 0
        %3732 = vmatmul.mubr.bf16.gmra.mrb[0].mxu0 %v3600
        %v3733 = vpop.f32.mrb[0].mxu0
        %v3734 = vadd.f32 %v3626, %v3733
        %v3735 = vpop.f32.mrb[0].mxu0
        %v3736 = vpop.f32.mrb[0].mxu0
        %v3737 = vadd.f32 %v3626, %v3736
        %v3738 = vpop.f32.mrb[0].mxu0
        %3739 = vmatprep.mubr.bf16.mxu0 0
        %3740 = vmatmul.mubr.bf16.gmra.mrb[0].mxu0 %v3601
        %v3741 = vpop.f32.mrb[0].mxu0
        %v3742 = vadd.f32 %v3626, %v3741
        %v3743 = vpop.f32.mrb[0].mxu0
        %v3744 = vpop.f32.mrb[0].mxu0
        %v3745 = vadd.f32 %v3626, %v3744
        %v3746 = vpop.f32.mrb[0].mxu0
        %3747 = vmatprep.mubr.bf16.mxu0 0
        %3748 = vmatmul.mubr.bf16.gmra.mrb[0].mxu0 %v3602
        %v3749 = vpop.f32.mrb[0].mxu0
        %v3750 = vadd.f32 %v3626, %v3749
        %v3751 = vpop.f32.mrb[0].mxu0
        %v3752 = vpop.f32.mrb[0].mxu0
        %v3753 = vadd.f32 %v3626, %v3752
        %v3754 = vpop.f32.mrb[0].mxu0
        %3755 = vmatprep.mubr.bf16.mxu0 0
        %3756 = vmatmul.mubr.bf16.gmra.mrb[0].mxu0 %v3603
        %v3757 = vpop.f32.mrb[0].mxu0
        %v3758 = vadd.f32 %v3626, %v3757
        %v3759 = vpop.f32.mrb[0].mxu0
        %v3760 = vpop.f32.mrb[0].mxu0
        %v3761 = vadd.f32 %v3626, %v3760
        %v3762 = vpop.f32.mrb[0].mxu0
        %3763 = vmatprep.mubr.bf16.mxu0 0
        %3764 = vmatmul.mubr.bf16.gmra.mrb[0].mxu0 %v3604
        %v3765 = vpop.f32.mrb[0].mxu0
        %v3766 = vadd.f32 %v3626, %v3765
        %v3767 = vpop.f32.mrb[0].mxu0
        %v3768 = vpop.f32.mrb[0].mxu0
        %v3769 = vadd.f32 %v3626, %v3768
        %v3770 = vpop.f32.mrb[0].mxu0
        %3771 = vdwg.mxu0
        %3772 = vadd.xlane.f32.xlu0 %v3710
        %v3773 = vpop.xlane.xlu0 %3772
        %3774 = vadd.xlane.f32.xlu0 %v3713
        %v3775 = vpop.xlane.xlu0 %3774
        %3776 = vadd.xlane.f32.xlu0 %v3718
        %v3777 = vpop.xlane.xlu0 %3776
        %3778 = vadd.xlane.f32.xlu0 %v3721
        %v3779 = vpop.xlane.xlu0 %3778
        %3780 = vadd.xlane.f32.xlu0 %v3726
        %v3781 = vpop.xlane.xlu0 %3780
        %3782 = vadd.xlane.f32.xlu0 %v3729
        %v3783 = vpop.xlane.xlu0 %3782
        %3784 = vadd.xlane.f32.xlu0 %v3734
        %v3785 = vpop.xlane.xlu0 %3784
        %3786 = vadd.xlane.f32.xlu0 %v3737
        %v3787 = vpop.xlane.xlu0 %3786
        %3788 = vadd.xlane.f32.xlu0 %v3742
        %v3789 = vpop.xlane.xlu0 %3788
        %3790 = vadd.xlane.f32.xlu0 %v3745
        %v3791 = vpop.xlane.xlu0 %3790
        %3792 = vadd.xlane.f32.xlu0 %v3750
        %v3793 = vpop.xlane.xlu0 %3792
        %3794 = vadd.xlane.f32.xlu0 %v3753
        %v3795 = vpop.xlane.xlu0 %3794
        %3796 = vadd.xlane.f32.xlu0 %v3758
        %v3797 = vpop.xlane.xlu0 %3796
        %3798 = vadd.xlane.f32.xlu0 %v3761
        %v3799 = vpop.xlane.xlu0 %3798
        %3800 = vadd.xlane.f32.xlu0 %v3766
        %v3801 = vpop.xlane.xlu0 %3800
        %3802 = vadd.xlane.f32.xlu0 %v3769
        %v3803 = vpop.xlane.xlu0 %3802
        %v3804 = vmul.f32 %v3773, 0.015625
        %v3805 = vmul.f32 %v3775, 0.015625
        %v3806 = vmul.f32 %v3777, 0.015625
        %v3807 = vmul.f32 %v3779, 0.015625
        %v3808 = vmul.f32 %v3781, 0.015625
        %v3809 = vmul.f32 %v3783, 0.015625
        %v3810 = vmul.f32 %v3785, 0.015625
        %v3811 = vmul.f32 %v3787, 0.015625
        %v3812 = vmul.f32 %v3789, 0.015625
        %v3813 = vmul.f32 %v3791, 0.015625
        %v3814 = vmul.f32 %v3793, 0.015625
        %v3815 = vmul.f32 %v3795, 0.015625
        %v3816 = vmul.f32 %v3797, 0.015625
        %v3817 = vmul.f32 %v3799, 0.015625
        %v3818 = vmul.f32 %v3801, 0.015625
        %v3819 = vmul.f32 %v3803, 0.015625
        %v3820 = vmul.f32 %v3710, %v3710
        %v3821 = vmul.f32 %v3713, %v3713
        %v3822 = vmul.f32 %v3718, %v3718
        %v3823 = vmul.f32 %v3721, %v3721
        %v3824 = vmul.f32 %v3726, %v3726
        %v3825 = vmul.f32 %v3729, %v3729
        %v3826 = vmul.f32 %v3734, %v3734
        %v3827 = vmul.f32 %v3737, %v3737
        %v3828 = vmul.f32 %v3742, %v3742
        %v3829 = vmul.f32 %v3745, %v3745
        %v3830 = vmul.f32 %v3750, %v3750
        %v3831 = vmul.f32 %v3753, %v3753
        %v3832 = vmul.f32 %v3758, %v3758
        %v3833 = vmul.f32 %v3761, %v3761
        %v3834 = vmul.f32 %v3766, %v3766
        %v3835 = vmul.f32 %v3769, %v3769
        %3836 = vadd.xlane.f32.xlu0 %v3820
        %v3837 = vpop.xlane.xlu0 %3836
        %3838 = vadd.xlane.f32.xlu0 %v3821
        %v3839 = vpop.xlane.xlu0 %3838
        %3840 = vadd.xlane.f32.xlu0 %v3822
        %v3841 = vpop.xlane.xlu0 %3840
        %3842 = vadd.xlane.f32.xlu0 %v3823
        %v3843 = vpop.xlane.xlu0 %3842
        %3844 = vadd.xlane.f32.xlu0 %v3824
        %v3845 = vpop.xlane.xlu0 %3844
        %3846 = vadd.xlane.f32.xlu0 %v3825
        %v3847 = vpop.xlane.xlu0 %3846
        %3848 = vadd.xlane.f32.xlu0 %v3826
        %v3849 = vpop.xlane.xlu0 %3848
        %3850 = vadd.xlane.f32.xlu0 %v3827
        %v3851 = vpop.xlane.xlu0 %3850
        %3852 = vadd.xlane.f32.xlu0 %v3828
        %v3853 = vpop.xlane.xlu0 %3852
        %3854 = vadd.xlane.f32.xlu0 %v3829
        %v3855 = vpop.xlane.xlu0 %3854
        %3856 = vadd.xlane.f32.xlu0 %v3830
        %v3857 = vpop.xlane.xlu0 %3856
        %3858 = vadd.xlane.f32.xlu0 %v3831
        %v3859 = vpop.xlane.xlu0 %3858
        %3860 = vadd.xlane.f32.xlu0 %v3832
        %v3861 = vpop.xlane.xlu0 %3860
        %3862 = vadd.xlane.f32.xlu0 %v3833
        %v3863 = vpop.xlane.xlu0 %3862
        %3864 = vadd.xlane.f32.xlu0 %v3834
        %v3865 = vpop.xlane.xlu0 %3864
        %3866 = vadd.xlane.f32.xlu0 %v3835
        %v3867 = vpop.xlane.xlu0 %3866
        %v3868 = vmul.f32 %v3837, 0.015625
        %v3869 = vmul.f32 %v3839, 0.015625
        %v3870 = vmul.f32 %v3841, 0.015625
        %v3871 = vmul.f32 %v3843, 0.015625
        %v3872 = vmul.f32 %v3845, 0.015625
        %v3873 = vmul.f32 %v3847, 0.015625
        %v3874 = vmul.f32 %v3849, 0.015625
        %v3875 = vmul.f32 %v3851, 0.015625
        %v3876 = vmul.f32 %v3853, 0.015625
        %v3877 = vmul.f32 %v3855, 0.015625
        %v3878 = vmul.f32 %v3857, 0.015625
        %v3879 = vmul.f32 %v3859, 0.015625
        %v3880 = vmul.f32 %v3861, 0.015625
        %v3881 = vmul.f32 %v3863, 0.015625
        %v3882 = vmul.f32 %v3865, 0.015625
        %v3883 = vmul.f32 %v3867, 0.015625
        %v3884 = vmul.f32 %v3804, %v3804
        %v3885 = vmul.f32 %v3805, %v3805
        %v3886 = vmul.f32 %v3806, %v3806
        %v3887 = vmul.f32 %v3807, %v3807
        %v3888 = vmul.f32 %v3808, %v3808
        %v3889 = vmul.f32 %v3809, %v3809
        %v3890 = vmul.f32 %v3810, %v3810
        %v3891 = vmul.f32 %v3811, %v3811
        %v3892 = vmul.f32 %v3812, %v3812
        %v3893 = vmul.f32 %v3813, %v3813
        %v3894 = vmul.f32 %v3814, %v3814
        %v3895 = vmul.f32 %v3815, %v3815
        %v3896 = vmul.f32 %v3816, %v3816
        %v3897 = vmul.f32 %v3817, %v3817
        %v3898 = vmul.f32 %v3818, %v3818
        %v3899 = vmul.f32 %v3819, %v3819
        %v3900 = vsub.f32 %v3868, %v3884
        %v3901 = vsub.f32 %v3869, %v3885
        %v3902 = vsub.f32 %v3870, %v3886
        %v3903 = vsub.f32 %v3871, %v3887
        %v3904 = vsub.f32 %v3872, %v3888
        %v3905 = vsub.f32 %v3873, %v3889
        %v3906 = vsub.f32 %v3874, %v3890
        %v3907 = vsub.f32 %v3875, %v3891
        %v3908 = vsub.f32 %v3876, %v3892
        %v3909 = vsub.f32 %v3877, %v3893
        %v3910 = vsub.f32 %v3878, %v3894
        %v3911 = vsub.f32 %v3879, %v3895
        %v3912 = vsub.f32 %v3880, %v3896
        %v3913 = vsub.f32 %v3881, %v3897
        %v3914 = vsub.f32 %v3882, %v3898
        %v3915 = vsub.f32 %v3883, %v3899
        %v3916 = vsub.f32 %v3710, %v3804
        %v3917 = vsub.f32 %v3713, %v3805
        %v3918 = vsub.f32 %v3718, %v3806
        %v3919 = vsub.f32 %v3721, %v3807
        %v3920 = vsub.f32 %v3726, %v3808
        %v3921 = vsub.f32 %v3729, %v3809
        %v3922 = vsub.f32 %v3734, %v3810
        %v3923 = vsub.f32 %v3737, %v3811
        %v3924 = vsub.f32 %v3742, %v3812
        %v3925 = vsub.f32 %v3745, %v3813
        %v3926 = vsub.f32 %v3750, %v3814
        %v3927 = vsub.f32 %v3753, %v3815
        %v3928 = vsub.f32 %v3758, %v3816
        %v3929 = vsub.f32 %v3761, %v3817
        %v3930 = vsub.f32 %v3766, %v3818
        %v3931 = vsub.f32 %v3769, %v3819
        %v3932 = vadd.f32 %v3900, 1e-05
        %v3933 = vadd.f32 %v3901, 1e-05
        %v3934 = vadd.f32 %v3902, 1e-05
        %v3935 = vadd.f32 %v3903, 1e-05
        %v3936 = vadd.f32 %v3904, 1e-05
        %v3937 = vadd.f32 %v3905, 1e-05
        %v3938 = vadd.f32 %v3906, 1e-05
        %v3939 = vadd.f32 %v3907, 1e-05
        %v3940 = vadd.f32 %v3908, 1e-05
        %v3941 = vadd.f32 %v3909, 1e-05
        %v3942 = vadd.f32 %v3910, 1e-05
        %v3943 = vadd.f32 %v3911, 1e-05
        %v3944 = vadd.f32 %v3912, 1e-05
        %v3945 = vadd.f32 %v3913, 1e-05
        %v3946 = vadd.f32 %v3914, 1e-05
        %v3947 = vadd.f32 %v3915, 1e-05
        %v3948 = vrsqrt.pop %v3932
        %v3949 = vrsqrt.pop %v3933
        %v3950 = vrsqrt.pop %v3934
        %v3951 = vrsqrt.pop %v3935
        %v3952 = vrsqrt.pop %v3936
        %v3953 = vrsqrt.pop %v3937
        %v3954 = vrsqrt.pop %v3938
        %v3955 = vrsqrt.pop %v3939
        %v3956 = vrsqrt.pop %v3940
        %v3957 = vrsqrt.pop %v3941
        %v3958 = vrsqrt.pop %v3942
        %v3959 = vrsqrt.pop %v3943
        %v3960 = vrsqrt.pop %v3944
        %v3961 = vrsqrt.pop %v3945
        %v3962 = vrsqrt.pop %v3946
        %v3963 = vrsqrt.pop %v3947
        %v3964 = vmul.f32 %v3916, %v3948
        %v3965 = vmul.f32 %v3917, %v3949
        %v3966 = vmul.f32 %v3918, %v3950
        %v3967 = vmul.f32 %v3919, %v3951
        %v3968 = vmul.f32 %v3920, %v3952
        %v3969 = vmul.f32 %v3921, %v3953
        %v3970 = vmul.f32 %v3922, %v3954
        %v3971 = vmul.f32 %v3923, %v3955
        %v3972 = vmul.f32 %v3924, %v3956
        %v3973 = vmul.f32 %v3925, %v3957
        %v3974 = vmul.f32 %v3926, %v3958
        %v3975 = vmul.f32 %v3927, %v3959
        %v3976 = vmul.f32 %v3928, %v3960
        %v3977 = vmul.f32 %v3929, %v3961
        %v3978 = vmul.f32 %v3930, %v3962
        %v3979 = vmul.f32 %v3931, %v3963
        %v3980 = vld [vmem:[%s4 + $0xe] sm:$0x1]
        %v3981 = vlaneseq
        %v3982 = vshrl.u32 %v3981, 7
        %v3983 = vsub.s32 0, %v3982
        %v3984 = vrot.slane %v3980, %v3983
        %v3985 = vmul.f32 %v3964, %v3984
        %v3986 = vmul.f32 %v3965, %v3984
        %v3987 = vmul.f32 %v3966, %v3984
        %v3988 = vmul.f32 %v3967, %v3984
        %v3989 = vmul.f32 %v3968, %v3984
        %v3990 = vmul.f32 %v3969, %v3984
        %v3991 = vmul.f32 %v3970, %v3984
        %v3992 = vmul.f32 %v3971, %v3984
        %v3993 = vmul.f32 %v3972, %v3984
        %v3994 = vmul.f32 %v3973, %v3984
        %v3995 = vmul.f32 %v3974, %v3984
        %v3996 = vmul.f32 %v3975, %v3984
        %v3997 = vmul.f32 %v3976, %v3984
        %v3998 = vmul.f32 %v3977, %v3984
        %v3999 = vmul.f32 %v3978, %v3984
        %v4000 = vmul.f32 %v3979, %v3984
        %v4001 = vld [vmem:[%s4 + $0xf] sm:$0x1]
        %v4002 = vlaneseq
        %v4003 = vshrl.u32 %v4002, 7
        %v4004 = vsub.s32 0, %v4003
        %v4005 = vrot.slane %v4001, %v4004
        %v4006 = vadd.f32 %v3985, %v4005
        %v4007 = vadd.f32 %v3986, %v4005
        %v4008 = vadd.f32 %v3987, %v4005
        %v4009 = vadd.f32 %v3988, %v4005
        %v4010 = vadd.f32 %v3989, %v4005
        %v4011 = vadd.f32 %v3990, %v4005
        %v4012 = vadd.f32 %v3991, %v4005
        %v4013 = vadd.f32 %v3992, %v4005
        %v4014 = vadd.f32 %v3993, %v4005
        %v4015 = vadd.f32 %v3994, %v4005
        %v4016 = vadd.f32 %v3995, %v4005
        %v4017 = vadd.f32 %v3996, %v4005
        %v4018 = vadd.f32 %v3997, %v4005
        %v4019 = vadd.f32 %v3998, %v4005
        %v4020 = vadd.f32 %v3999, %v4005
        %v4021 = vadd.f32 %v4000, %v4005
        %v4022 = vmul.f32 %v4006, %v4006
        %v4023 = vmul.f32 %v4007, %v4007
        %v4024 = vmul.f32 %v4008, %v4008
        %v4025 = vmul.f32 %v4009, %v4009
        %v4026 = vmul.f32 %v4010, %v4010
        %v4027 = vmul.f32 %v4011, %v4011
        %v4028 = vmul.f32 %v4012, %v4012
        %v4029 = vmul.f32 %v4013, %v4013
        %v4030 = vmul.f32 %v4014, %v4014
        %v4031 = vmul.f32 %v4015, %v4015
        %v4032 = vmul.f32 %v4016, %v4016
        %v4033 = vmul.f32 %v4017, %v4017
        %v4034 = vmul.f32 %v4018, %v4018
        %v4035 = vmul.f32 %v4019, %v4019
        %v4036 = vmul.f32 %v4020, %v4020
        %v4037 = vmul.f32 %v4021, %v4021
        %4038 = vadd.xlane.f32.xlu0 %v4022
        %v4039 = vpop.xlane.xlu0 %4038
        %4040 = vadd.xlane.f32.xlu0 %v4023
        %v4041 = vpop.xlane.xlu0 %4040
        %4042 = vadd.xlane.f32.xlu0 %v4024
        %v4043 = vpop.xlane.xlu0 %4042
        %4044 = vadd.xlane.f32.xlu0 %v4025
        %v4045 = vpop.xlane.xlu0 %4044
        %4046 = vadd.xlane.f32.xlu0 %v4026
        %v4047 = vpop.xlane.xlu0 %4046
        %4048 = vadd.xlane.f32.xlu0 %v4027
        %v4049 = vpop.xlane.xlu0 %4048
        %4050 = vadd.xlane.f32.xlu0 %v4028
        %v4051 = vpop.xlane.xlu0 %4050
        %4052 = vadd.xlane.f32.xlu0 %v4029
        %v4053 = vpop.xlane.xlu0 %4052
        %4054 = vadd.xlane.f32.xlu0 %v4030
        %v4055 = vpop.xlane.xlu0 %4054
        %4056 = vadd.xlane.f32.xlu0 %v4031
        %v4057 = vpop.xlane.xlu0 %4056
        %4058 = vadd.xlane.f32.xlu0 %v4032
        %v4059 = vpop.xlane.xlu0 %4058
        %4060 = vadd.xlane.f32.xlu0 %v4033
        %v4061 = vpop.xlane.xlu0 %4060
        %4062 = vadd.xlane.f32.xlu0 %v4034
        %v4063 = vpop.xlane.xlu0 %4062
        %4064 = vadd.xlane.f32.xlu0 %v4035
        %v4065 = vpop.xlane.xlu0 %4064
        %4066 = vadd.xlane.f32.xlu0 %v4036
        %v4067 = vpop.xlane.xlu0 %4066
        %4068 = vadd.xlane.f32.xlu0 %v4037
        %v4069 = vpop.xlane.xlu0 %4068
        %v4070 = vmax.f32 %v4039, 1e-24
        %v4071 = vmax.f32 %v4041, 1e-24
        %v4072 = vmax.f32 %v4043, 1e-24
        %v4073 = vmax.f32 %v4045, 1e-24
        %v4074 = vmax.f32 %v4047, 1e-24
        %v4075 = vmax.f32 %v4049, 1e-24
        %v4076 = vmax.f32 %v4051, 1e-24
        %v4077 = vmax.f32 %v4053, 1e-24
        %v4078 = vmax.f32 %v4055, 1e-24
        %v4079 = vmax.f32 %v4057, 1e-24
        %v4080 = vmax.f32 %v4059, 1e-24
        %v4081 = vmax.f32 %v4061, 1e-24
        %v4082 = vmax.f32 %v4063, 1e-24
        %v4083 = vmax.f32 %v4065, 1e-24
        %v4084 = vmax.f32 %v4067, 1e-24
        %v4085 = vmax.f32 %v4069, 1e-24
        %v4086 = vrsqrt.pop %v4070
        %v4087 = vrsqrt.pop %v4071
        %v4088 = vrsqrt.pop %v4072
        %v4089 = vrsqrt.pop %v4073
        %v4090 = vrsqrt.pop %v4074
        %v4091 = vrsqrt.pop %v4075
        %v4092 = vrsqrt.pop %v4076
        %v4093 = vrsqrt.pop %v4077
        %v4094 = vrsqrt.pop %v4078
        %v4095 = vrsqrt.pop %v4079
        %v4096 = vrsqrt.pop %v4080
        %v4097 = vrsqrt.pop %v4081
        %v4098 = vrsqrt.pop %v4082
        %v4099 = vrsqrt.pop %v4083
        %v4100 = vrsqrt.pop %v4084
        %v4101 = vrsqrt.pop %v4085
        %v4102 = vmul.f32 %v4006, %v4086
        %v4103 = vmul.f32 %v4007, %v4087
        %v4104 = vmul.f32 %v4008, %v4088
        %v4105 = vmul.f32 %v4009, %v4089
        %v4106 = vmul.f32 %v4010, %v4090
        %v4107 = vmul.f32 %v4011, %v4091
        %v4108 = vmul.f32 %v4012, %v4092
        %v4109 = vmul.f32 %v4013, %v4093
        %v4110 = vmul.f32 %v4014, %v4094
        %v4111 = vmul.f32 %v4015, %v4095
        %v4112 = vmul.f32 %v4016, %v4096
        %v4113 = vmul.f32 %v4017, %v4097
        %v4114 = vmul.f32 %v4018, %v4098
        %v4115 = vmul.f32 %v4019, %v4099
        %v4116 = vmul.f32 %v4020, %v4100
        %v4117 = vmul.f32 %v4021, %v4101
        %4118 = vst [vmem:[%s283] sm:$0xff] %v4102
        %4119 = vst [vmem:[%s283 + $0x8] sm:$0xff] %v4103
        %4120 = vst [vmem:[%s283 + $0x10] sm:$0xff] %v4104
        %4121 = vst [vmem:[%s283 + $0x18] sm:$0xff] %v4105
        %4122 = vst [vmem:[%s283 + $0x20] sm:$0xff] %v4106
        %4123 = vst [vmem:[%s283 + $0x28] sm:$0xff] %v4107
        %4124 = vst [vmem:[%s283 + $0x30] sm:$0xff] %v4108
        %4125 = vst [vmem:[%s283 + $0x38] sm:$0xff] %v4109
        %4126 = vst [vmem:[%s283 + $0x40] sm:$0xff] %v4110
        %4127 = vst [vmem:[%s283 + $0x48] sm:$0xff] %v4111
        %4128 = vst [vmem:[%s283 + $0x50] sm:$0xff] %v4112
        %4129 = vst [vmem:[%s283 + $0x58] sm:$0xff] %v4113
        %4130 = vst [vmem:[%s283 + $0x60] sm:$0xff] %v4114
        %4131 = vst [vmem:[%s283 + $0x68] sm:$0xff] %v4115
        %4132 = vst [vmem:[%s283 + $0x70] sm:$0xff] %v4116
        %4133 = vst [vmem:[%s283 + $0x78] sm:$0xff] %v4117
        %s4134 = smul.u32 16, %s19
        %p4135 = scmp.lt.s32.totalorder %s4134, 31
        %s4136 = scalar_select %p4135, %s4134, 31
        %s4137 = smul.addr %s4136, 8
        %s4138 = scalar_lea.vmem %s6, %s4137
        // Predicated region
        $region53: #{siamese_forward.1} parent=43 // pred_check
          %p4139 = pneg %p168
        $region54: #{siamese_forward.1} parent=43 // pred_check_branch
          %4141 = sbr.rel (%p4139) target = $region56
        $region55: #{siamese_forward.1} parent=43 // pred_region
          %s4142 = smul.u32 16, %s19
        $region56: #{siamese_forward.1} parent=43 // pred_fallthru
          _
      $region44: #{siamese_forward.1} parent=5 // pred_fallthru
        _
      %p4143 = scmp.le.s32.totalorder 2, %s14
      // Predicated region
      $region57: #{siamese_forward.1} parent=5 // pred_check
        %p4144 = pneg %p4143
      $region58: #{siamese_forward.1} parent=5 // pred_check_branch
        %4146 = sbr.rel (%p4144) target = $region60
      $region59: #{siamese_forward.1} parent=5 // pred_region
        %s4147 = ssub.s32 %s14, 2
        // Predicated region
        $region61: #{siamese_forward.1} parent=59 // pred_check
          %p4148 = pneg %p174
        $region62: #{siamese_forward.1} parent=59 // pred_check_branch
          %4150 = sbr.rel (%p4148) target = $region64
        $region63: #{siamese_forward.1} parent=59 // pred_region
          %s4151 = smul.u32 16, %s20
          %p4152 = scmp.lt.s32.totalorder %s4151, 31
          %s4153 = scalar_select %p4152, %s4151, 31
          %s4154 = smul.addr %s4153, 8
          %s4155 = scalar_lea.vmem %s6, %s4154
        $region64: #{siamese_forward.1} parent=59 // pred_fallthru
          _
      $region60: #{siamese_forward.1} parent=5 // pred_fallthru
        _
    $region6: #{siamese_forward.1} parent=1 // loop_footer
      %s18 = sadd.s32 1, %s14
    $region7: #{siamese_forward.1} parent=1 // loop_footer_branch
      %13 = sbr.rel target = $region3
    $region8: #{siamese_forward.1} parent=1 // loop_exit
      _
    %4156 = vsyncpa [#allocation3], 1
    %s4157 = scalar_lea.sflag [#allocation3], 1
    %4158 = vsyncpa %s4157, 1
    %4159 = vsyncpa [#allocation5], 1

</llo_original>
